<compile_context>
chip_gen: v6e
topology: v6e:2x2x1
jax: 0.10.0
libtpu: 0.0.40
codegen_flags: <defaults>
</compile_context>

<pallas_src>
import jax
import jax.numpy as jnp
from jax import lax
from jax.experimental import pallas as pl
from jax.experimental.pallas import tpu as pltpu

HIDDEN_SIZE = 64
INPUT_SIZE = 2
OUTPUT_SIZE = 1


def lstm_kernel(x_ref, w_ih_ref, w_hh_ref, b_ref, w_fc_ref, b_fc_ref, out_ref):
    """One grid step == one batch tile; the time loop runs inside the kernel.

    x_ref:    (S, I, TB)   input sequence for this batch tile (hidden-major)
    w_ih_ref: (4H, I)      PyTorch weight_ih_l0 as-is
    w_hh_ref: (4H, H)      PyTorch weight_hh_l0 as-is
    b_ref:    (4H, 1)      b_ih + b_hh
    w_fc_ref: (H, 1)       fc.weight^T
    b_fc_ref: (1, 1)       fc.bias
    out_ref:  (1, TB)      sigmoid(fc(h_final)) for this tile
    """
    S = x_ref.shape[0]
    I = x_ref.shape[1]
    TB = x_ref.shape[2]
    H = w_hh_ref.shape[1]

    # ---- Hoisted once-per-tile setup (off the serial chain). ---------------
    # Unified-activation trick: sigmoid(z) = 0.5*tanh(z/2) + 0.5.  Pre-scale
    # the i/f/o gate rows (PyTorch order i,f,g,o along 4H) by 0.5; g rows keep
    # scale 1.0.  Then one tanh over the full (4H, TB) block covers all gates.
    row = lax.broadcasted_iota(jnp.int32, (4 * H, 1), 0)
    gate_scale = jnp.where((row >= 2 * H) & (row < 3 * H),
                           jnp.float32(1.0), jnp.float32(0.5))     # (4H, 1)

    w_hh = w_hh_ref[...] * gate_scale                              # (4H, H)
    bias = b_ref[...] * gate_scale                                 # (4H, 1)
    # Per-input-feature weight columns for the rank-I VPU input projection
    # (intended for small I; I == 2 for this module).
    w_cols = [w_ih_ref[:, ii:ii + 1] * gate_scale for ii in range(I)]

    h0 = jnp.zeros((H, TB), jnp.float32)
    c0 = jnp.zeros((H, TB), jnp.float32)

    # ---- Recurrence: only W_hh @ h sits on the serial h/c chain. -----------
    def step(t, carry):
        h, c = carry                                               # (H, TB)
        x_t = x_ref[t]                                             # (I, TB)
        # Input projection as a rank-I VPU update: no scratch, no extra MXU
        # push; independent of h, so it overlaps the W_hh matmul drain.
        xp = bias
        for ii in range(I):
            xp = xp + w_cols[ii] * x_t[ii:ii + 1, :]               # (4H, TB)
        gates_half = xp + jnp.dot(w_hh, h,
                                  preferred_element_type=jnp.float32)
        t_all = jnp.tanh(gates_half)         # single EUP pass over all gates
        i_g = 0.5 * t_all[0 * H:1 * H] + 0.5
        f_g = 0.5 * t_all[1 * H:2 * H] + 0.5
        g_g = t_all[2 * H:3 * H]
        o_g = 0.5 * t_all[3 * H:4 * H] + 0.5
        c_new = f_g * c + i_g * g_g
        h_new = o_g * jnp.tanh(c_new)
        return (h_new, c_new)

    # Bounded unroll: full for short sequences, 8 otherwise (keeps LLO
    # scheduling visibility without instruction-memory / vreg-pressure blowup).
    unroll = S if S <= 32 else 8
    h_final, _ = lax.fori_loop(0, S, step, (h0, c0), unroll=unroll)

    # ---- Final FC (H -> 1) as VPU multiply + sublane reduction + sigmoid ---
    # (avoids an N=1 MXU matmul / extra MXU drain at the kernel tail).
    logits = (jnp.sum(h_final * w_fc_ref[...], axis=0, keepdims=True)
              + b_fc_ref[...])                                     # (1, TB)
    out_ref[...] = jax.nn.sigmoid(logits).astype(out_ref.dtype)


def _batch_tiling(B):
    """Returns (padded_B, tile_b). Lane-constraint safe: a tile either equals
    the (padded) batch or is a multiple of 128."""
    if B <= 128:
        return B, B                       # single tile, block == full array
    padded = ((B + 127) // 128) * 128     # pad batch to the lane width
    # 256-wide tiles feed the full MXU on v6e/v7x; keep >= 2 tiles so the
    # "parallel" axis can shard across v7x's two TensorCores.
    tile = 256 if (padded % 256 == 0 and padded >= 512) else 128
    return padded, tile


def lstm_classifier_forward(x, params):
    """x: (B, S, I) float32 (batch_first, like PyTorch). Returns (B, 1)."""
    B, S, I = x.shape
    H = HIDDEN_SIZE
    assert S >= 1, "sequence length must be >= 1 (hn undefined for S == 0)"

    padded_b, tile_b = _batch_tiling(B)
    if padded_b != B:
        x = jnp.pad(x, ((0, padded_b - B), (0, 0), (0, 0)))
    nb = padded_b // tile_b

    # Hidden-major input layout: (S, I, B); weights stay in PyTorch layout.
    x_sib = jnp.transpose(x, (1, 2, 0))                       # (S, I, Bp)
    b = (params["b_ih"] + params["b_hh"]).reshape(4 * H, 1)   # (4H, 1)
    w_fc_t = params["w_fc"].reshape(OUTPUT_SIZE, H).T         # (H, 1)
    b_fc = params["b_fc"].reshape(1, OUTPUT_SIZE)             # (1, 1)

    out = pl.pallas_call(
        lstm_kernel,
        out_shape=jax.ShapeDtypeStruct((1, padded_b), jnp.float32),
        grid_spec=pltpu.PrefetchScalarGridSpec(
            num_scalar_prefetch=0,
            grid=(nb,),
            in_specs=[
                pl.BlockSpec((S, I, tile_b), lambda bt: (0, 0, bt)),   # x
                pl.BlockSpec((4 * H, I), lambda bt: (0, 0)),           # W_ih
                pl.BlockSpec((4 * H, H), lambda bt: (0, 0)),           # W_hh
                pl.BlockSpec((4 * H, 1), lambda bt: (0, 0)),           # b_ih+b_hh
                pl.BlockSpec((H, OUTPUT_SIZE), lambda bt: (0, 0)),     # W_fc^T
                pl.BlockSpec((1, OUTPUT_SIZE), lambda bt: (0, 0)),     # b_fc
            ],
            out_specs=pl.BlockSpec((1, tile_b), lambda bt: (0, bt)),
        ),
        compiler_params=pltpu.CompilerParams(
            dimension_semantics=("parallel",)),
    )(x_sib, params["w_ih"], params["w_hh"], b, w_fc_t, b_fc)

    # (1, Bp) -> drop padding -> (B, 1); trivial layout plumbing outside.
    return out[:, :B].reshape(B, OUTPUT_SIZE)


def init_params(key, input_size=INPUT_SIZE, hidden_size=HIDDEN_SIZE,
                output_size=OUTPUT_SIZE):
    ks = jax.random.split(key, 6)
    bound = 1.0 / jnp.sqrt(hidden_size)
    u = lambda k, shape: jax.random.uniform(k, shape, jnp.float32, -bound, bound)
    return {
        "w_ih": u(ks[0], (4 * hidden_size, input_size)),
        "w_hh": u(ks[1], (4 * hidden_size, hidden_size)),
        "b_ih": u(ks[2], (4 * hidden_size,)),
        "b_hh": u(ks[3], (4 * hidden_size,)),
        "w_fc": u(ks[4], (output_size, hidden_size)),
        "b_fc": u(ks[5], (output_size,)),
    }


def reference_forward(x, params):
    """Pure-JAX reference of the PyTorch forward (lax.scan LSTM)."""
    B, S, I = x.shape
    H = HIDDEN_SIZE
    w_ih_t, w_hh_t = params["w_ih"].T, params["w_hh"].T
    b = params["b_ih"] + params["b_hh"]

    def step(carry, x_t):
        h, c = carry
        gates = x_t @ w_ih_t + h @ w_hh_t + b
        i_g = jax.nn.sigmoid(gates[:, 0 * H:1 * H])
        f_g = jax.nn.sigmoid(gates[:, 1 * H:2 * H])
        g_g = jnp.tanh(gates[:, 2 * H:3 * H])
        o_g = jax.nn.sigmoid(gates[:, 3 * H:4 * H])
        c_new = f_g * c + i_g * g_g
        h_new = o_g * jnp.tanh(c_new)
        return (h_new, c_new), None

    h0 = jnp.zeros((B, H), jnp.float32)
    c0 = jnp.zeros((B, H), jnp.float32)
    (h_final, _), _ = jax.lax.scan(step, (h0, c0), jnp.transpose(x, (1, 0, 2)))
    logits = h_final @ params["w_fc"].T + params["b_fc"]
    return jax.nn.sigmoid(logits)


if __name__ == "__main__":
    key = jax.random.PRNGKey(0)
    k_params, k_x = jax.random.split(key)

    B, S = 2, 8
    x = jax.random.normal(k_x, (B, S, INPUT_SIZE), jnp.float32)
    params = init_params(k_params)

    out = lstm_classifier_forward(x, params)
    out = jax.block_until_ready(out)

    ref = reference_forward(x, params)
    assert out.shape == (B, OUTPUT_SIZE)
    assert jnp.allclose(out, ref, atol=2e-5, rtol=2e-5), (out, ref)

    print("KERNEL_OK")
</pallas_src>

<mosaic_0001>
module attributes {stable_mosaic.version = 11 : i64} {
  func.func @lstm_kernel(%arg0: i32, %arg1: memref<8x2x2xf32, #tpu.memory_space<vmem>>, %arg2: memref<256x2xf32, #tpu.memory_space<vmem>>, %arg3: memref<256x64xf32, #tpu.memory_space<vmem>>, %arg4: memref<256x1xf32, #tpu.memory_space<vmem>>, %arg5: memref<64x1xf32, #tpu.memory_space<vmem>>, %arg6: memref<1x1xf32, #tpu.memory_space<vmem>>, %arg7: memref<1x2xf32, #tpu.memory_space<vmem>>) attributes {dimension_semantics = [#tpu.dimension_semantics<parallel>], iteration_bounds = array<i64: 1>, scalar_prefetch = 0 : i64, scratch_operands = 0 : i64, tpu.core_type = #tpu.core_type<tc>, window_params = [{transform_indices = @transform_0, window_bounds = array<i64: 8, 2, 2>}, {pipeline_mode = #tpu.pipeline_mode<synchronous>, transform_indices = @transform_1, window_bounds = array<i64: 256, 2>}, {pipeline_mode = #tpu.pipeline_mode<synchronous>, transform_indices = @transform_2, window_bounds = array<i64: 256, 64>}, {pipeline_mode = #tpu.pipeline_mode<synchronous>, transform_indices = @transform_3, window_bounds = array<i64: 256, 1>}, {pipeline_mode = #tpu.pipeline_mode<synchronous>, transform_indices = @transform_4, window_bounds = array<i64: 64, 1>}, {pipeline_mode = #tpu.pipeline_mode<synchronous>, transform_indices = @transform_5, window_bounds = array<i64: 1, 1>}, {transform_indices = @transform_6, window_bounds = array<i64: 1, 2>}]} {
    %0 = tpu.iota {dimensions = array<i32: 0>} : vector<256x1xi32>
    %c128_i32 = arith.constant 128 : i32
    %1 = vector.broadcast %c128_i32 : i32 to vector<256x1xi32>
    %2 = arith.cmpi sge, %0, %1 : vector<256x1xi32>
    %c192_i32 = arith.constant 192 : i32
    %3 = vector.broadcast %c192_i32 : i32 to vector<256x1xi32>
    %4 = arith.cmpi slt, %0, %3 : vector<256x1xi32>
    %5 = arith.andi %2, %4 : vector<256x1xi1>
    %cst = arith.constant 1.000000e+00 : f32
    %cst_0 = arith.constant 5.000000e-01 : f32
    %6 = vector.broadcast %cst : f32 to vector<256x1xf32>
    %7 = vector.broadcast %cst_0 : f32 to vector<256x1xf32>
    %8 = arith.select %5, %6, %7 : vector<256x1xi1>, vector<256x1xf32>
    %c0 = arith.constant 0 : index
    %c0_1 = arith.constant 0 : index
    %9 = vector.load %arg3[%c0, %c0_1] : memref<256x64xf32, #tpu.memory_space<vmem>>, vector<256x64xf32>
    %10 = vector.broadcast %8 : vector<256x1xf32> to vector<256x64xf32>
    %11 = arith.mulf %9, %10 : vector<256x64xf32>
    %c0_2 = arith.constant 0 : index
    %c0_3 = arith.constant 0 : index
    %12 = vector.load %arg4[%c0_2, %c0_3] : memref<256x1xf32, #tpu.memory_space<vmem>>, vector<256x1xf32>
    %13 = arith.mulf %12, %8 : vector<256x1xf32>
    %c0_4 = arith.constant 0 : index
    %c0_5 = arith.constant 0 : index
    %14 = vector.load %arg2[%c0_4, %c0_5] : memref<256x2xf32, #tpu.memory_space<vmem>>, vector<256x1xf32>
    %15 = arith.mulf %14, %8 : vector<256x1xf32>
    %c0_6 = arith.constant 0 : index
    %c1 = arith.constant 1 : index
    %16 = vector.load %arg2[%c0_6, %c1] : memref<256x2xf32, #tpu.memory_space<vmem>>, vector<256x1xf32>
    %17 = arith.mulf %16, %8 : vector<256x1xf32>
    %cst_7 = arith.constant 0.000000e+00 : f32
    %18 = vector.broadcast %cst_7 : f32 to vector<64x2xf32>
    %cst_8 = arith.constant 0.000000e+00 : f32
    %19 = vector.broadcast %cst_8 : f32 to vector<64x2xf32>
    %c0_i32 = arith.constant 0 : i32
    %20 = arith.index_cast %c0_i32 : i32 to index
    %c0_9 = arith.constant 0 : index
    %c0_10 = arith.constant 0 : index
    %21 = vector.load %arg1[%20, %c0_9, %c0_10] : memref<8x2x2xf32, #tpu.memory_space<vmem>>, vector<1x2x2xf32>
    %22 = vector.shape_cast %21 : vector<1x2x2xf32> to vector<2x2xf32>
    %23 = vector.extract_strided_slice %22 {offsets = [0, 0], sizes = [1, 2], strides = [1, 1]} : vector<2x2xf32> to vector<1x2xf32>
    %24 = vector.broadcast %15 : vector<256x1xf32> to vector<256x2xf32>
    %25 = vector.broadcast %23 : vector<1x2xf32> to vector<256x2xf32>
    %26 = arith.mulf %24, %25 : vector<256x2xf32>
    %27 = vector.broadcast %13 : vector<256x1xf32> to vector<256x2xf32>
    %28 = arith.addf %27, %26 : vector<256x2xf32>
    %29 = vector.extract_strided_slice %22 {offsets = [1, 0], sizes = [1, 2], strides = [1, 1]} : vector<2x2xf32> to vector<1x2xf32>
    %30 = vector.broadcast %17 : vector<256x1xf32> to vector<256x2xf32>
    %31 = vector.broadcast %29 : vector<1x2xf32> to vector<256x2xf32>
    %32 = arith.mulf %30, %31 : vector<256x2xf32>
    %33 = arith.addf %28, %32 : vector<256x2xf32>
    %cst_11 = arith.constant dense<0.000000e+00> : vector<256x2xf32>
    %34 = tpu.matmul %11, %18, %cst_11 {dimension_numbers = #tpu.dot_dimension_numbers<[1], [0], [0], [1], [0, 0, 1, 1], [], []>} : vector<256x64xf32>, vector<64x2xf32>, vector<256x2xf32> -> vector<256x2xf32>
    %35 = arith.addf %33, %34 : vector<256x2xf32>
    %36 = math.tanh %35 : vector<256x2xf32>
    %37 = vector.extract_strided_slice %36 {offsets = [0, 0], sizes = [64, 2], strides = [1, 1]} : vector<256x2xf32> to vector<64x2xf32>
    %cst_12 = arith.constant 5.000000e-01 : f32
    %38 = vector.broadcast %cst_12 : f32 to vector<64x2xf32>
    %39 = arith.mulf %38, %37 : vector<64x2xf32>
    %cst_13 = arith.constant 5.000000e-01 : f32
    %40 = vector.broadcast %cst_13 : f32 to vector<64x2xf32>
    %41 = arith.addf %39, %40 : vector<64x2xf32>
    %42 = vector.extract_strided_slice %36 {offsets = [64, 0], sizes = [64, 2], strides = [1, 1]} : vector<256x2xf32> to vector<64x2xf32>
    %cst_14 = arith.constant 5.000000e-01 : f32
    %43 = vector.broadcast %cst_14 : f32 to vector<64x2xf32>
    %44 = arith.mulf %43, %42 : vector<64x2xf32>
    %cst_15 = arith.constant 5.000000e-01 : f32
    %45 = vector.broadcast %cst_15 : f32 to vector<64x2xf32>
    %46 = arith.addf %44, %45 : vector<64x2xf32>
    %47 = vector.extract_strided_slice %36 {offsets = [128, 0], sizes = [64, 2], strides = [1, 1]} : vector<256x2xf32> to vector<64x2xf32>
    %48 = vector.extract_strided_slice %36 {offsets = [192, 0], sizes = [64, 2], strides = [1, 1]} : vector<256x2xf32> to vector<64x2xf32>
    %cst_16 = arith.constant 5.000000e-01 : f32
    %49 = vector.broadcast %cst_16 : f32 to vector<64x2xf32>
    %50 = arith.mulf %49, %48 : vector<64x2xf32>
    %cst_17 = arith.constant 5.000000e-01 : f32
    %51 = vector.broadcast %cst_17 : f32 to vector<64x2xf32>
    %52 = arith.addf %50, %51 : vector<64x2xf32>
    %53 = arith.mulf %46, %19 : vector<64x2xf32>
    %54 = arith.mulf %41, %47 : vector<64x2xf32>
    %55 = arith.addf %53, %54 : vector<64x2xf32>
    %56 = math.tanh %55 : vector<64x2xf32>
    %57 = arith.mulf %52, %56 : vector<64x2xf32>
    %c1_i32 = arith.constant 1 : i32
    %58 = arith.index_cast %c1_i32 : i32 to index
    %c0_18 = arith.constant 0 : index
    %c0_19 = arith.constant 0 : index
    %59 = vector.load %arg1[%58, %c0_18, %c0_19] : memref<8x2x2xf32, #tpu.memory_space<vmem>>, vector<1x2x2xf32>
    %60 = vector.shape_cast %59 : vector<1x2x2xf32> to vector<2x2xf32>
    %61 = vector.extract_strided_slice %60 {offsets = [0, 0], sizes = [1, 2], strides = [1, 1]} : vector<2x2xf32> to vector<1x2xf32>
    %62 = vector.broadcast %15 : vector<256x1xf32> to vector<256x2xf32>
    %63 = vector.broadcast %61 : vector<1x2xf32> to vector<256x2xf32>
    %64 = arith.mulf %62, %63 : vector<256x2xf32>
    %65 = vector.broadcast %13 : vector<256x1xf32> to vector<256x2xf32>
    %66 = arith.addf %65, %64 : vector<256x2xf32>
    %67 = vector.extract_strided_slice %60 {offsets = [1, 0], sizes = [1, 2], strides = [1, 1]} : vector<2x2xf32> to vector<1x2xf32>
    %68 = vector.broadcast %17 : vector<256x1xf32> to vector<256x2xf32>
    %69 = vector.broadcast %67 : vector<1x2xf32> to vector<256x2xf32>
    %70 = arith.mulf %68, %69 : vector<256x2xf32>
    %71 = arith.addf %66, %70 : vector<256x2xf32>
    %cst_20 = arith.constant dense<0.000000e+00> : vector<256x2xf32>
    %72 = tpu.matmul %11, %57, %cst_20 {dimension_numbers = #tpu.dot_dimension_numbers<[1], [0], [0], [1], [0, 0, 1, 1], [], []>} : vector<256x64xf32>, vector<64x2xf32>, vector<256x2xf32> -> vector<256x2xf32>
    %73 = arith.addf %71, %72 : vector<256x2xf32>
    %74 = math.tanh %73 : vector<256x2xf32>
    %75 = vector.extract_strided_slice %74 {offsets = [0, 0], sizes = [64, 2], strides = [1, 1]} : vector<256x2xf32> to vector<64x2xf32>
    %cst_21 = arith.constant 5.000000e-01 : f32
    %76 = vector.broadcast %cst_21 : f32 to vector<64x2xf32>
    %77 = arith.mulf %76, %75 : vector<64x2xf32>
    %cst_22 = arith.constant 5.000000e-01 : f32
    %78 = vector.broadcast %cst_22 : f32 to vector<64x2xf32>
    %79 = arith.addf %77, %78 : vector<64x2xf32>
    %80 = vector.extract_strided_slice %74 {offsets = [64, 0], sizes = [64, 2], strides = [1, 1]} : vector<256x2xf32> to vector<64x2xf32>
    %cst_23 = arith.constant 5.000000e-01 : f32
    %81 = vector.broadcast %cst_23 : f32 to vector<64x2xf32>
    %82 = arith.mulf %81, %80 : vector<64x2xf32>
    %cst_24 = arith.constant 5.000000e-01 : f32
    %83 = vector.broadcast %cst_24 : f32 to vector<64x2xf32>
    %84 = arith.addf %82, %83 : vector<64x2xf32>
    %85 = vector.extract_strided_slice %74 {offsets = [128, 0], sizes = [64, 2], strides = [1, 1]} : vector<256x2xf32> to vector<64x2xf32>
    %86 = vector.extract_strided_slice %74 {offsets = [192, 0], sizes = [64, 2], strides = [1, 1]} : vector<256x2xf32> to vector<64x2xf32>
    %cst_25 = arith.constant 5.000000e-01 : f32
    %87 = vector.broadcast %cst_25 : f32 to vector<64x2xf32>
    %88 = arith.mulf %87, %86 : vector<64x2xf32>
    %cst_26 = arith.constant 5.000000e-01 : f32
    %89 = vector.broadcast %cst_26 : f32 to vector<64x2xf32>
    %90 = arith.addf %88, %89 : vector<64x2xf32>
    %91 = arith.mulf %84, %55 : vector<64x2xf32>
    %92 = arith.mulf %79, %85 : vector<64x2xf32>
    %93 = arith.addf %91, %92 : vector<64x2xf32>
    %94 = math.tanh %93 : vector<64x2xf32>
    %95 = arith.mulf %90, %94 : vector<64x2xf32>
    %c2_i32 = arith.constant 2 : i32
    %96 = arith.index_cast %c2_i32 : i32 to index
    %c0_27 = arith.constant 0 : index
    %c0_28 = arith.constant 0 : index
    %97 = vector.load %arg1[%96, %c0_27, %c0_28] : memref<8x2x2xf32, #tpu.memory_space<vmem>>, vector<1x2x2xf32>
    %98 = vector.shape_cast %97 : vector<1x2x2xf32> to vector<2x2xf32>
    %99 = vector.extract_strided_slice %98 {offsets = [0, 0], sizes = [1, 2], strides = [1, 1]} : vector<2x2xf32> to vector<1x2xf32>
    %100 = vector.broadcast %15 : vector<256x1xf32> to vector<256x2xf32>
    %101 = vector.broadcast %99 : vector<1x2xf32> to vector<256x2xf32>
    %102 = arith.mulf %100, %101 : vector<256x2xf32>
    %103 = vector.broadcast %13 : vector<256x1xf32> to vector<256x2xf32>
    %104 = arith.addf %103, %102 : vector<256x2xf32>
    %105 = vector.extract_strided_slice %98 {offsets = [1, 0], sizes = [1, 2], strides = [1, 1]} : vector<2x2xf32> to vector<1x2xf32>
    %106 = vector.broadcast %17 : vector<256x1xf32> to vector<256x2xf32>
    %107 = vector.broadcast %105 : vector<1x2xf32> to vector<256x2xf32>
    %108 = arith.mulf %106, %107 : vector<256x2xf32>
    %109 = arith.addf %104, %108 : vector<256x2xf32>
    %cst_29 = arith.constant dense<0.000000e+00> : vector<256x2xf32>
    %110 = tpu.matmul %11, %95, %cst_29 {dimension_numbers = #tpu.dot_dimension_numbers<[1], [0], [0], [1], [0, 0, 1, 1], [], []>} : vector<256x64xf32>, vector<64x2xf32>, vector<256x2xf32> -> vector<256x2xf32>
    %111 = arith.addf %109, %110 : vector<256x2xf32>
    %112 = math.tanh %111 : vector<256x2xf32>
    %113 = vector.extract_strided_slice %112 {offsets = [0, 0], sizes = [64, 2], strides = [1, 1]} : vector<256x2xf32> to vector<64x2xf32>
    %cst_30 = arith.constant 5.000000e-01 : f32
    %114 = vector.broadcast %cst_30 : f32 to vector<64x2xf32>
    %115 = arith.mulf %114, %113 : vector<64x2xf32>
    %cst_31 = arith.constant 5.000000e-01 : f32
    %116 = vector.broadcast %cst_31 : f32 to vector<64x2xf32>
    %117 = arith.addf %115, %116 : vector<64x2xf32>
    %118 = vector.extract_strided_slice %112 {offsets = [64, 0], sizes = [64, 2], strides = [1, 1]} : vector<256x2xf32> to vector<64x2xf32>
    %cst_32 = arith.constant 5.000000e-01 : f32
    %119 = vector.broadcast %cst_32 : f32 to vector<64x2xf32>
    %120 = arith.mulf %119, %118 : vector<64x2xf32>
    %cst_33 = arith.constant 5.000000e-01 : f32
    %121 = vector.broadcast %cst_33 : f32 to vector<64x2xf32>
    %122 = arith.addf %120, %121 : vector<64x2xf32>
    %123 = vector.extract_strided_slice %112 {offsets = [128, 0], sizes = [64, 2], strides = [1, 1]} : vector<256x2xf32> to vector<64x2xf32>
    %124 = vector.extract_strided_slice %112 {offsets = [192, 0], sizes = [64, 2], strides = [1, 1]} : vector<256x2xf32> to vector<64x2xf32>
    %cst_34 = arith.constant 5.000000e-01 : f32
    %125 = vector.broadcast %cst_34 : f32 to vector<64x2xf32>
    %126 = arith.mulf %125, %124 : vector<64x2xf32>
    %cst_35 = arith.constant 5.000000e-01 : f32
    %127 = vector.broadcast %cst_35 : f32 to vector<64x2xf32>
    %128 = arith.addf %126, %127 : vector<64x2xf32>
    %129 = arith.mulf %122, %93 : vector<64x2xf32>
    %130 = arith.mulf %117, %123 : vector<64x2xf32>
    %131 = arith.addf %129, %130 : vector<64x2xf32>
    %132 = math.tanh %131 : vector<64x2xf32>
    %133 = arith.mulf %128, %132 : vector<64x2xf32>
    %c3_i32 = arith.constant 3 : i32
    %134 = arith.index_cast %c3_i32 : i32 to index
    %c0_36 = arith.constant 0 : index
    %c0_37 = arith.constant 0 : index
    %135 = vector.load %arg1[%134, %c0_36, %c0_37] : memref<8x2x2xf32, #tpu.memory_space<vmem>>, vector<1x2x2xf32>
    %136 = vector.shape_cast %135 : vector<1x2x2xf32> to vector<2x2xf32>
    %137 = vector.extract_strided_slice %136 {offsets = [0, 0], sizes = [1, 2], strides = [1, 1]} : vector<2x2xf32> to vector<1x2xf32>
    %138 = vector.broadcast %15 : vector<256x1xf32> to vector<256x2xf32>
    %139 = vector.broadcast %137 : vector<1x2xf32> to vector<256x2xf32>
    %140 = arith.mulf %138, %139 : vector<256x2xf32>
    %141 = vector.broadcast %13 : vector<256x1xf32> to vector<256x2xf32>
    %142 = arith.addf %141, %140 : vector<256x2xf32>
    %143 = vector.extract_strided_slice %136 {offsets = [1, 0], sizes = [1, 2], strides = [1, 1]} : vector<2x2xf32> to vector<1x2xf32>
    %144 = vector.broadcast %17 : vector<256x1xf32> to vector<256x2xf32>
    %145 = vector.broadcast %143 : vector<1x2xf32> to vector<256x2xf32>
    %146 = arith.mulf %144, %145 : vector<256x2xf32>
    %147 = arith.addf %142, %146 : vector<256x2xf32>
    %cst_38 = arith.constant dense<0.000000e+00> : vector<256x2xf32>
    %148 = tpu.matmul %11, %133, %cst_38 {dimension_numbers = #tpu.dot_dimension_numbers<[1], [0], [0], [1], [0, 0, 1, 1], [], []>} : vector<256x64xf32>, vector<64x2xf32>, vector<256x2xf32> -> vector<256x2xf32>
    %149 = arith.addf %147, %148 : vector<256x2xf32>
    %150 = math.tanh %149 : vector<256x2xf32>
    %151 = vector.extract_strided_slice %150 {offsets = [0, 0], sizes = [64, 2], strides = [1, 1]} : vector<256x2xf32> to vector<64x2xf32>
    %cst_39 = arith.constant 5.000000e-01 : f32
    %152 = vector.broadcast %cst_39 : f32 to vector<64x2xf32>
    %153 = arith.mulf %152, %151 : vector<64x2xf32>
    %cst_40 = arith.constant 5.000000e-01 : f32
    %154 = vector.broadcast %cst_40 : f32 to vector<64x2xf32>
    %155 = arith.addf %153, %154 : vector<64x2xf32>
    %156 = vector.extract_strided_slice %150 {offsets = [64, 0], sizes = [64, 2], strides = [1, 1]} : vector<256x2xf32> to vector<64x2xf32>
    %cst_41 = arith.constant 5.000000e-01 : f32
    %157 = vector.broadcast %cst_41 : f32 to vector<64x2xf32>
    %158 = arith.mulf %157, %156 : vector<64x2xf32>
    %cst_42 = arith.constant 5.000000e-01 : f32
    %159 = vector.broadcast %cst_42 : f32 to vector<64x2xf32>
    %160 = arith.addf %158, %159 : vector<64x2xf32>
    %161 = vector.extract_strided_slice %150 {offsets = [128, 0], sizes = [64, 2], strides = [1, 1]} : vector<256x2xf32> to vector<64x2xf32>
    %162 = vector.extract_strided_slice %150 {offsets = [192, 0], sizes = [64, 2], strides = [1, 1]} : vector<256x2xf32> to vector<64x2xf32>
    %cst_43 = arith.constant 5.000000e-01 : f32
    %163 = vector.broadcast %cst_43 : f32 to vector<64x2xf32>
    %164 = arith.mulf %163, %162 : vector<64x2xf32>
    %cst_44 = arith.constant 5.000000e-01 : f32
    %165 = vector.broadcast %cst_44 : f32 to vector<64x2xf32>
    %166 = arith.addf %164, %165 : vector<64x2xf32>
    %167 = arith.mulf %160, %131 : vector<64x2xf32>
    %168 = arith.mulf %155, %161 : vector<64x2xf32>
    %169 = arith.addf %167, %168 : vector<64x2xf32>
    %170 = math.tanh %169 : vector<64x2xf32>
    %171 = arith.mulf %166, %170 : vector<64x2xf32>
    %c4_i32 = arith.constant 4 : i32
    %172 = arith.index_cast %c4_i32 : i32 to index
    %c0_45 = arith.constant 0 : index
    %c0_46 = arith.constant 0 : index
    %173 = vector.load %arg1[%172, %c0_45, %c0_46] : memref<8x2x2xf32, #tpu.memory_space<vmem>>, vector<1x2x2xf32>
    %174 = vector.shape_cast %173 : vector<1x2x2xf32> to vector<2x2xf32>
    %175 = vector.extract_strided_slice %174 {offsets = [0, 0], sizes = [1, 2], strides = [1, 1]} : vector<2x2xf32> to vector<1x2xf32>
    %176 = vector.broadcast %15 : vector<256x1xf32> to vector<256x2xf32>
    %177 = vector.broadcast %175 : vector<1x2xf32> to vector<256x2xf32>
    %178 = arith.mulf %176, %177 : vector<256x2xf32>
    %179 = vector.broadcast %13 : vector<256x1xf32> to vector<256x2xf32>
    %180 = arith.addf %179, %178 : vector<256x2xf32>
    %181 = vector.extract_strided_slice %174 {offsets = [1, 0], sizes = [1, 2], strides = [1, 1]} : vector<2x2xf32> to vector<1x2xf32>
    %182 = vector.broadcast %17 : vector<256x1xf32> to vector<256x2xf32>
    %183 = vector.broadcast %181 : vector<1x2xf32> to vector<256x2xf32>
    %184 = arith.mulf %182, %183 : vector<256x2xf32>
    %185 = arith.addf %180, %184 : vector<256x2xf32>
    %cst_47 = arith.constant dense<0.000000e+00> : vector<256x2xf32>
    %186 = tpu.matmul %11, %171, %cst_47 {dimension_numbers = #tpu.dot_dimension_numbers<[1], [0], [0], [1], [0, 0, 1, 1], [], []>} : vector<256x64xf32>, vector<64x2xf32>, vector<256x2xf32> -> vector<256x2xf32>
    %187 = arith.addf %185, %186 : vector<256x2xf32>
    %188 = math.tanh %187 : vector<256x2xf32>
    %189 = vector.extract_strided_slice %188 {offsets = [0, 0], sizes = [64, 2], strides = [1, 1]} : vector<256x2xf32> to vector<64x2xf32>
    %cst_48 = arith.constant 5.000000e-01 : f32
    %190 = vector.broadcast %cst_48 : f32 to vector<64x2xf32>
    %191 = arith.mulf %190, %189 : vector<64x2xf32>
    %cst_49 = arith.constant 5.000000e-01 : f32
    %192 = vector.broadcast %cst_49 : f32 to vector<64x2xf32>
    %193 = arith.addf %191, %192 : vector<64x2xf32>
    %194 = vector.extract_strided_slice %188 {offsets = [64, 0], sizes = [64, 2], strides = [1, 1]} : vector<256x2xf32> to vector<64x2xf32>
    %cst_50 = arith.constant 5.000000e-01 : f32
    %195 = vector.broadcast %cst_50 : f32 to vector<64x2xf32>
    %196 = arith.mulf %195, %194 : vector<64x2xf32>
    %cst_51 = arith.constant 5.000000e-01 : f32
    %197 = vector.broadcast %cst_51 : f32 to vector<64x2xf32>
    %198 = arith.addf %196, %197 : vector<64x2xf32>
    %199 = vector.extract_strided_slice %188 {offsets = [128, 0], sizes = [64, 2], strides = [1, 1]} : vector<256x2xf32> to vector<64x2xf32>
    %200 = vector.extract_strided_slice %188 {offsets = [192, 0], sizes = [64, 2], strides = [1, 1]} : vector<256x2xf32> to vector<64x2xf32>
    %cst_52 = arith.constant 5.000000e-01 : f32
    %201 = vector.broadcast %cst_52 : f32 to vector<64x2xf32>
    %202 = arith.mulf %201, %200 : vector<64x2xf32>
    %cst_53 = arith.constant 5.000000e-01 : f32
    %203 = vector.broadcast %cst_53 : f32 to vector<64x2xf32>
    %204 = arith.addf %202, %203 : vector<64x2xf32>
    %205 = arith.mulf %198, %169 : vector<64x2xf32>
    %206 = arith.mulf %193, %199 : vector<64x2xf32>
    %207 = arith.addf %205, %206 : vector<64x2xf32>
    %208 = math.tanh %207 : vector<64x2xf32>
    %209 = arith.mulf %204, %208 : vector<64x2xf32>
    %c5_i32 = arith.constant 5 : i32
    %210 = arith.index_cast %c5_i32 : i32 to index
    %c0_54 = arith.constant 0 : index
    %c0_55 = arith.constant 0 : index
    %211 = vector.load %arg1[%210, %c0_54, %c0_55] : memref<8x2x2xf32, #tpu.memory_space<vmem>>, vector<1x2x2xf32>
    %212 = vector.shape_cast %211 : vector<1x2x2xf32> to vector<2x2xf32>
    %213 = vector.extract_strided_slice %212 {offsets = [0, 0], sizes = [1, 2], strides = [1, 1]} : vector<2x2xf32> to vector<1x2xf32>
    %214 = vector.broadcast %15 : vector<256x1xf32> to vector<256x2xf32>
    %215 = vector.broadcast %213 : vector<1x2xf32> to vector<256x2xf32>
    %216 = arith.mulf %214, %215 : vector<256x2xf32>
    %217 = vector.broadcast %13 : vector<256x1xf32> to vector<256x2xf32>
    %218 = arith.addf %217, %216 : vector<256x2xf32>
    %219 = vector.extract_strided_slice %212 {offsets = [1, 0], sizes = [1, 2], strides = [1, 1]} : vector<2x2xf32> to vector<1x2xf32>
    %220 = vector.broadcast %17 : vector<256x1xf32> to vector<256x2xf32>
    %221 = vector.broadcast %219 : vector<1x2xf32> to vector<256x2xf32>
    %222 = arith.mulf %220, %221 : vector<256x2xf32>
    %223 = arith.addf %218, %222 : vector<256x2xf32>
    %cst_56 = arith.constant dense<0.000000e+00> : vector<256x2xf32>
    %224 = tpu.matmul %11, %209, %cst_56 {dimension_numbers = #tpu.dot_dimension_numbers<[1], [0], [0], [1], [0, 0, 1, 1], [], []>} : vector<256x64xf32>, vector<64x2xf32>, vector<256x2xf32> -> vector<256x2xf32>
    %225 = arith.addf %223, %224 : vector<256x2xf32>
    %226 = math.tanh %225 : vector<256x2xf32>
    %227 = vector.extract_strided_slice %226 {offsets = [0, 0], sizes = [64, 2], strides = [1, 1]} : vector<256x2xf32> to vector<64x2xf32>
    %cst_57 = arith.constant 5.000000e-01 : f32
    %228 = vector.broadcast %cst_57 : f32 to vector<64x2xf32>
    %229 = arith.mulf %228, %227 : vector<64x2xf32>
    %cst_58 = arith.constant 5.000000e-01 : f32
    %230 = vector.broadcast %cst_58 : f32 to vector<64x2xf32>
    %231 = arith.addf %229, %230 : vector<64x2xf32>
    %232 = vector.extract_strided_slice %226 {offsets = [64, 0], sizes = [64, 2], strides = [1, 1]} : vector<256x2xf32> to vector<64x2xf32>
    %cst_59 = arith.constant 5.000000e-01 : f32
    %233 = vector.broadcast %cst_59 : f32 to vector<64x2xf32>
    %234 = arith.mulf %233, %232 : vector<64x2xf32>
    %cst_60 = arith.constant 5.000000e-01 : f32
    %235 = vector.broadcast %cst_60 : f32 to vector<64x2xf32>
    %236 = arith.addf %234, %235 : vector<64x2xf32>
    %237 = vector.extract_strided_slice %226 {offsets = [128, 0], sizes = [64, 2], strides = [1, 1]} : vector<256x2xf32> to vector<64x2xf32>
    %238 = vector.extract_strided_slice %226 {offsets = [192, 0], sizes = [64, 2], strides = [1, 1]} : vector<256x2xf32> to vector<64x2xf32>
    %cst_61 = arith.constant 5.000000e-01 : f32
    %239 = vector.broadcast %cst_61 : f32 to vector<64x2xf32>
    %240 = arith.mulf %239, %238 : vector<64x2xf32>
    %cst_62 = arith.constant 5.000000e-01 : f32
    %241 = vector.broadcast %cst_62 : f32 to vector<64x2xf32>
    %242 = arith.addf %240, %241 : vector<64x2xf32>
    %243 = arith.mulf %236, %207 : vector<64x2xf32>
    %244 = arith.mulf %231, %237 : vector<64x2xf32>
    %245 = arith.addf %243, %244 : vector<64x2xf32>
    %246 = math.tanh %245 : vector<64x2xf32>
    %247 = arith.mulf %242, %246 : vector<64x2xf32>
    %c6_i32 = arith.constant 6 : i32
    %248 = arith.index_cast %c6_i32 : i32 to index
    %c0_63 = arith.constant 0 : index
    %c0_64 = arith.constant 0 : index
    %249 = vector.load %arg1[%248, %c0_63, %c0_64] : memref<8x2x2xf32, #tpu.memory_space<vmem>>, vector<1x2x2xf32>
    %250 = vector.shape_cast %249 : vector<1x2x2xf32> to vector<2x2xf32>
    %251 = vector.extract_strided_slice %250 {offsets = [0, 0], sizes = [1, 2], strides = [1, 1]} : vector<2x2xf32> to vector<1x2xf32>
    %252 = vector.broadcast %15 : vector<256x1xf32> to vector<256x2xf32>
    %253 = vector.broadcast %251 : vector<1x2xf32> to vector<256x2xf32>
    %254 = arith.mulf %252, %253 : vector<256x2xf32>
    %255 = vector.broadcast %13 : vector<256x1xf32> to vector<256x2xf32>
    %256 = arith.addf %255, %254 : vector<256x2xf32>
    %257 = vector.extract_strided_slice %250 {offsets = [1, 0], sizes = [1, 2], strides = [1, 1]} : vector<2x2xf32> to vector<1x2xf32>
    %258 = vector.broadcast %17 : vector<256x1xf32> to vector<256x2xf32>
    %259 = vector.broadcast %257 : vector<1x2xf32> to vector<256x2xf32>
    %260 = arith.mulf %258, %259 : vector<256x2xf32>
    %261 = arith.addf %256, %260 : vector<256x2xf32>
    %cst_65 = arith.constant dense<0.000000e+00> : vector<256x2xf32>
    %262 = tpu.matmul %11, %247, %cst_65 {dimension_numbers = #tpu.dot_dimension_numbers<[1], [0], [0], [1], [0, 0, 1, 1], [], []>} : vector<256x64xf32>, vector<64x2xf32>, vector<256x2xf32> -> vector<256x2xf32>
    %263 = arith.addf %261, %262 : vector<256x2xf32>
    %264 = math.tanh %263 : vector<256x2xf32>
    %265 = vector.extract_strided_slice %264 {offsets = [0, 0], sizes = [64, 2], strides = [1, 1]} : vector<256x2xf32> to vector<64x2xf32>
    %cst_66 = arith.constant 5.000000e-01 : f32
    %266 = vector.broadcast %cst_66 : f32 to vector<64x2xf32>
    %267 = arith.mulf %266, %265 : vector<64x2xf32>
    %cst_67 = arith.constant 5.000000e-01 : f32
    %268 = vector.broadcast %cst_67 : f32 to vector<64x2xf32>
    %269 = arith.addf %267, %268 : vector<64x2xf32>
    %270 = vector.extract_strided_slice %264 {offsets = [64, 0], sizes = [64, 2], strides = [1, 1]} : vector<256x2xf32> to vector<64x2xf32>
    %cst_68 = arith.constant 5.000000e-01 : f32
    %271 = vector.broadcast %cst_68 : f32 to vector<64x2xf32>
    %272 = arith.mulf %271, %270 : vector<64x2xf32>
    %cst_69 = arith.constant 5.000000e-01 : f32
    %273 = vector.broadcast %cst_69 : f32 to vector<64x2xf32>
    %274 = arith.addf %272, %273 : vector<64x2xf32>
    %275 = vector.extract_strided_slice %264 {offsets = [128, 0], sizes = [64, 2], strides = [1, 1]} : vector<256x2xf32> to vector<64x2xf32>
    %276 = vector.extract_strided_slice %264 {offsets = [192, 0], sizes = [64, 2], strides = [1, 1]} : vector<256x2xf32> to vector<64x2xf32>
    %cst_70 = arith.constant 5.000000e-01 : f32
    %277 = vector.broadcast %cst_70 : f32 to vector<64x2xf32>
    %278 = arith.mulf %277, %276 : vector<64x2xf32>
    %cst_71 = arith.constant 5.000000e-01 : f32
    %279 = vector.broadcast %cst_71 : f32 to vector<64x2xf32>
    %280 = arith.addf %278, %279 : vector<64x2xf32>
    %281 = arith.mulf %274, %245 : vector<64x2xf32>
    %282 = arith.mulf %269, %275 : vector<64x2xf32>
    %283 = arith.addf %281, %282 : vector<64x2xf32>
    %284 = math.tanh %283 : vector<64x2xf32>
    %285 = arith.mulf %280, %284 : vector<64x2xf32>
    %c7_i32 = arith.constant 7 : i32
    %286 = arith.index_cast %c7_i32 : i32 to index
    %c0_72 = arith.constant 0 : index
    %c0_73 = arith.constant 0 : index
    %287 = vector.load %arg1[%286, %c0_72, %c0_73] : memref<8x2x2xf32, #tpu.memory_space<vmem>>, vector<1x2x2xf32>
    %288 = vector.shape_cast %287 : vector<1x2x2xf32> to vector<2x2xf32>
    %289 = vector.extract_strided_slice %288 {offsets = [0, 0], sizes = [1, 2], strides = [1, 1]} : vector<2x2xf32> to vector<1x2xf32>
    %290 = vector.broadcast %15 : vector<256x1xf32> to vector<256x2xf32>
    %291 = vector.broadcast %289 : vector<1x2xf32> to vector<256x2xf32>
    %292 = arith.mulf %290, %291 : vector<256x2xf32>
    %293 = vector.broadcast %13 : vector<256x1xf32> to vector<256x2xf32>
    %294 = arith.addf %293, %292 : vector<256x2xf32>
    %295 = vector.extract_strided_slice %288 {offsets = [1, 0], sizes = [1, 2], strides = [1, 1]} : vector<2x2xf32> to vector<1x2xf32>
    %296 = vector.broadcast %17 : vector<256x1xf32> to vector<256x2xf32>
    %297 = vector.broadcast %295 : vector<1x2xf32> to vector<256x2xf32>
    %298 = arith.mulf %296, %297 : vector<256x2xf32>
    %299 = arith.addf %294, %298 : vector<256x2xf32>
    %cst_74 = arith.constant dense<0.000000e+00> : vector<256x2xf32>
    %300 = tpu.matmul %11, %285, %cst_74 {dimension_numbers = #tpu.dot_dimension_numbers<[1], [0], [0], [1], [0, 0, 1, 1], [], []>} : vector<256x64xf32>, vector<64x2xf32>, vector<256x2xf32> -> vector<256x2xf32>
    %301 = arith.addf %299, %300 : vector<256x2xf32>
    %302 = math.tanh %301 : vector<256x2xf32>
    %303 = vector.extract_strided_slice %302 {offsets = [0, 0], sizes = [64, 2], strides = [1, 1]} : vector<256x2xf32> to vector<64x2xf32>
    %cst_75 = arith.constant 5.000000e-01 : f32
    %304 = vector.broadcast %cst_75 : f32 to vector<64x2xf32>
    %305 = arith.mulf %304, %303 : vector<64x2xf32>
    %cst_76 = arith.constant 5.000000e-01 : f32
    %306 = vector.broadcast %cst_76 : f32 to vector<64x2xf32>
    %307 = arith.addf %305, %306 : vector<64x2xf32>
    %308 = vector.extract_strided_slice %302 {offsets = [64, 0], sizes = [64, 2], strides = [1, 1]} : vector<256x2xf32> to vector<64x2xf32>
    %cst_77 = arith.constant 5.000000e-01 : f32
    %309 = vector.broadcast %cst_77 : f32 to vector<64x2xf32>
    %310 = arith.mulf %309, %308 : vector<64x2xf32>
    %cst_78 = arith.constant 5.000000e-01 : f32
    %311 = vector.broadcast %cst_78 : f32 to vector<64x2xf32>
    %312 = arith.addf %310, %311 : vector<64x2xf32>
    %313 = vector.extract_strided_slice %302 {offsets = [128, 0], sizes = [64, 2], strides = [1, 1]} : vector<256x2xf32> to vector<64x2xf32>
    %314 = vector.extract_strided_slice %302 {offsets = [192, 0], sizes = [64, 2], strides = [1, 1]} : vector<256x2xf32> to vector<64x2xf32>
    %cst_79 = arith.constant 5.000000e-01 : f32
    %315 = vector.broadcast %cst_79 : f32 to vector<64x2xf32>
    %316 = arith.mulf %315, %314 : vector<64x2xf32>
    %cst_80 = arith.constant 5.000000e-01 : f32
    %317 = vector.broadcast %cst_80 : f32 to vector<64x2xf32>
    %318 = arith.addf %316, %317 : vector<64x2xf32>
    %319 = arith.mulf %312, %283 : vector<64x2xf32>
    %320 = arith.mulf %307, %313 : vector<64x2xf32>
    %321 = arith.addf %319, %320 : vector<64x2xf32>
    %322 = math.tanh %321 : vector<64x2xf32>
    %323 = arith.mulf %318, %322 : vector<64x2xf32>
    %c8_i32 = arith.constant 8 : i32
    %c0_81 = arith.constant 0 : index
    %c0_82 = arith.constant 0 : index
    %324 = vector.load %arg5[%c0_81, %c0_82] : memref<64x1xf32, #tpu.memory_space<vmem>>, vector<64x1xf32>
    %325 = vector.broadcast %324 : vector<64x1xf32> to vector<64x2xf32>
    %326 = arith.mulf %323, %325 : vector<64x2xf32>
    %cst_83 = arith.constant dense<0.000000e+00> : vector<2xf32>
    %327 = vector.multi_reduction <add>, %326, %cst_83 [0] : vector<64x2xf32> to vector<2xf32>
    %328 = vector.shape_cast %327 : vector<2xf32> to vector<1x2xf32>
    %c0_84 = arith.constant 0 : index
    %c0_85 = arith.constant 0 : index
    %329 = vector.load %arg6[%c0_84, %c0_85] : memref<1x1xf32, #tpu.memory_space<vmem>>, vector<1x1xf32>
    %330 = vector.broadcast %329 : vector<1x1xf32> to vector<1x2xf32>
    %331 = arith.addf %328, %330 : vector<1x2xf32>
    %332 = arith.negf %331 : vector<1x2xf32>
    %333 = math.exp %332 : vector<1x2xf32>
    %cst_86 = arith.constant 1.000000e+00 : f32
    %334 = vector.broadcast %cst_86 : f32 to vector<1x2xf32>
    %335 = arith.addf %334, %333 : vector<1x2xf32>
    %336 = arith.divf %334, %335 : vector<1x2xf32>
    %c0_87 = arith.constant 0 : index
    %c0_88 = arith.constant 0 : index
    %337 = vector.load %arg7[%c0_87, %c0_88] : memref<1x2xf32, #tpu.memory_space<vmem>>, vector<1x2xf32>
    tpu.vector_store %arg7[%c0_87, %c0_88], %336 {strides = array<i32>} : memref<1x2xf32, #tpu.memory_space<vmem>>, vector<1x2xf32>,
    return
  }
  func.func @transform_0(%arg0: i32) -> (i32, i32, i32) {
    %c0_i32 = arith.constant 0 : i32
    %c0_i32_0 = arith.constant 0 : i32
    %c0_i32_1 = arith.constant 0 : i32
    return %c0_i32, %c0_i32_0, %arg0 : i32, i32, i32
  }
  func.func @transform_1(%arg0: i32) -> (i32, i32) {
    %c0_i32 = arith.constant 0 : i32
    %c0_i32_0 = arith.constant 0 : i32
    %c0_i32_1 = arith.constant 0 : i32
    return %c0_i32, %c0_i32_0 : i32, i32
  }
  func.func @transform_2(%arg0: i32) -> (i32, i32) {
    %c0_i32 = arith.constant 0 : i32
    %c0_i32_0 = arith.constant 0 : i32
    %c0_i32_1 = arith.constant 0 : i32
    return %c0_i32, %c0_i32_0 : i32, i32
  }
  func.func @transform_3(%arg0: i32) -> (i32, i32) {
    %c0_i32 = arith.constant 0 : i32
    %c0_i32_0 = arith.constant 0 : i32
    %c0_i32_1 = arith.constant 0 : i32
    return %c0_i32, %c0_i32_0 : i32, i32
  }
  func.func @transform_4(%arg0: i32) -> (i32, i32) {
    %c0_i32 = arith.constant 0 : i32
    %c0_i32_0 = arith.constant 0 : i32
    %c0_i32_1 = arith.constant 0 : i32
    return %c0_i32, %c0_i32_0 : i32, i32
  }
  func.func @transform_5(%arg0: i32) -> (i32, i32) {
    %c0_i32 = arith.constant 0 : i32
    %c0_i32_0 = arith.constant 0 : i32
    %c0_i32_1 = arith.constant 0 : i32
    return %c0_i32, %c0_i32_0 : i32, i32
  }
  func.func @transform_6(%arg0: i32) -> (i32, i32) {
    %c0_i32 = arith.constant 0 : i32
    %c0_i32_0 = arith.constant 0 : i32
    return %c0_i32, %arg0 : i32, i32
  }
}

</mosaic_0001>

<llo_original>
// kernel: tpu_custom_call.1
$region0: #{tpu_custom_call.1}
  #allocation0 [shape = 'u32[]', space=smem, size = 0x4, offset = 0x4, fixed_abs, tag = 'smem constant byte address 0x4 - core index']
  #allocation1 [shape = 'u32[144,128]{1,0:T(1,128)}', space=vmem, size = 0x12000, scoped, tag = 'internal scratch']
  #allocation2 [shape = 'f32[1,1]{1,0:T(1,128)S(1)}', space=vmem, size = 0x200, scoped, tag = 'scoped memory for tpu_custom_call.1']
  %s0 = inlined_call_operand.vmem [shape: f32[8,2,2], index: 0, kind: input, shape index: {}]
  %s1 = inlined_call_operand.vmem [shape: f32[256,2], index: 1, kind: input, shape index: {}]
  %s2 = inlined_call_operand.vmem [shape: f32[256,64], index: 2, kind: input, shape index: {}]
  %s3 = inlined_call_operand.vmem [shape: f32[256,1], index: 3, kind: input, shape index: {}]
  %s4 = inlined_call_operand.vmem [shape: f32[64,1], index: 4, kind: input, shape index: {}]
  %s5 = inlined_call_operand.<no memory space> [shape: f32[1,1], index: 5, kind: input, shape index: {}]
  %s6 = inlined_call_operand.hbm [shape: f32[1,2], index: 6, kind: output, shape index: {}]
  %s7 = sld [smem:[#allocation0]]
  $region34: #{tpu_custom_call.1} parent=0
    _
  %s9 = ssub.s32 1, %s7
  %s10 = scalar_select 0, %s9, %s7
  %v11 = vstv %s5
  %12 = vst [vmem:[#allocation2] sm:$0x1] %v11
  $region1: #{tpu_custom_call.1} parent=0
    #allocation3 [shape = 'u8[512]{0}', space=vmem, size = 0x400, scoped, tag = 'output window, operand 0, single buffered']
    #allocation4 [shape = 's32[1]{0}', space=sflag, size = 0x4, scoped, tag = 'scoped memory for tpu_custom_call.1']
    %13 = vsyncpa [#allocation4], 0
    // Predicated region
    $region2: #{tpu_custom_call.1} parent=1 // pred_check
      _
    $region3: #{tpu_custom_call.1} parent=1 // pred_check_branch
      %15 = sbr.rel (0) target = $region5
    $region4: #{tpu_custom_call.1} parent=1 // pred_region
      _
    $region5: #{tpu_custom_call.1} parent=1 // pred_fallthru
      _
    // Predicated region
    $region6: #{tpu_custom_call.1} parent=1 // pred_check
      _
    $region7: #{tpu_custom_call.1} parent=1 // pred_check_branch
      %17 = sbr.rel (0) target = $region9
    $region8: #{tpu_custom_call.1} parent=1 // pred_region
      _
    $region9: #{tpu_custom_call.1} parent=1 // pred_fallthru
      _
    // Predicated region
    $region10: #{tpu_custom_call.1} parent=1 // pred_check
      _
    $region11: #{tpu_custom_call.1} parent=1 // pred_check_branch
      %19 = sbr.rel (0) target = $region13
    $region12: #{tpu_custom_call.1} parent=1 // pred_region
      _
    $region13: #{tpu_custom_call.1} parent=1 // pred_fallthru
      _
    // Predicated region
    $region14: #{tpu_custom_call.1} parent=1 // pred_check
      _
    $region15: #{tpu_custom_call.1} parent=1 // pred_check_branch
      %21 = sbr.rel (0) target = $region17
    $region16: #{tpu_custom_call.1} parent=1 // pred_region
      _
    $region17: #{tpu_custom_call.1} parent=1 // pred_fallthru
      _
    // Predicated region
    $region18: #{tpu_custom_call.1} parent=1 // pred_check
      _
    $region19: #{tpu_custom_call.1} parent=1 // pred_check_branch
      %23 = sbr.rel (0) target = $region21
    $region20: #{tpu_custom_call.1} parent=1 // pred_region
      _
    $region21: #{tpu_custom_call.1} parent=1 // pred_fallthru
      _
    // Predicated region
    $region22: #{tpu_custom_call.1} parent=1 // pred_check
      _
    $region23: #{tpu_custom_call.1} parent=1 // pred_check_branch
      %25 = sbr.rel (0) target = $region25
    $region24: #{tpu_custom_call.1} parent=1 // pred_region
      _
    $region25: #{tpu_custom_call.1} parent=1 // pred_fallthru
      _
    %v26 = vlaneseq
    %v27 = vshrl.u32 %v26, 7
    %v28 = vadd.s32 %v27, 8
    %v29 = vadd.s32 %v27, 16
    %v30 = vadd.s32 %v27, 24
    %v31 = vadd.s32 %v27, 32
    %v32 = vadd.s32 %v27, 40
    %v33 = vadd.s32 %v27, 48
    %v34 = vadd.s32 %v27, 56
    %v35 = vadd.s32 %v27, 64
    %v36 = vadd.s32 %v27, 72
    %v37 = vadd.s32 %v27, 80
    %v38 = vadd.s32 %v27, 88
    %v39 = vadd.s32 %v27, 96
    %v40 = vadd.s32 %v27, 104
    %v41 = vadd.s32 %v27, 112
    %v42 = vadd.s32 %v27, 120
    %v43 = vadd.s32 %v27, 128
    %v44 = vadd.s32 %v27, 136
    %v45 = vadd.s32 %v27, 144
    %v46 = vadd.s32 %v27, 152
    %v47 = vadd.s32 %v27, 160
    %v48 = vadd.s32 %v27, 168
    %v49 = vadd.s32 %v27, 176
    %v50 = vadd.s32 %v27, 184
    %v51 = vadd.s32 %v27, 192
    %v52 = vadd.s32 %v27, 200
    %v53 = vadd.s32 %v27, 208
    %v54 = vadd.s32 %v27, 216
    %v55 = vadd.s32 %v27, 224
    %v56 = vadd.s32 %v27, 232
    %v57 = vadd.s32 %v27, 240
    %v58 = vadd.s32 %v27, 248
    %vm59 = vcmp.ge.s32.totalorder %v27, 128
    %vm60 = vcmp.ge.s32.totalorder %v28, 128
    %vm61 = vcmp.ge.s32.totalorder %v29, 128
    %vm62 = vcmp.ge.s32.totalorder %v30, 128
    %vm63 = vcmp.ge.s32.totalorder %v31, 128
    %vm64 = vcmp.ge.s32.totalorder %v32, 128
    %vm65 = vcmp.ge.s32.totalorder %v33, 128
    %vm66 = vcmp.ge.s32.totalorder %v34, 128
    %vm67 = vcmp.ge.s32.totalorder %v35, 128
    %vm68 = vcmp.ge.s32.totalorder %v36, 128
    %vm69 = vcmp.ge.s32.totalorder %v37, 128
    %vm70 = vcmp.ge.s32.totalorder %v38, 128
    %vm71 = vcmp.ge.s32.totalorder %v39, 128
    %vm72 = vcmp.ge.s32.totalorder %v40, 128
    %vm73 = vcmp.ge.s32.totalorder %v41, 128
    %vm74 = vcmp.ge.s32.totalorder %v42, 128
    %vm75 = vcmp.ge.s32.totalorder %v43, 128
    %vm76 = vcmp.ge.s32.totalorder %v44, 128
    %vm77 = vcmp.ge.s32.totalorder %v45, 128
    %vm78 = vcmp.ge.s32.totalorder %v46, 128
    %vm79 = vcmp.ge.s32.totalorder %v47, 128
    %vm80 = vcmp.ge.s32.totalorder %v48, 128
    %vm81 = vcmp.ge.s32.totalorder %v49, 128
    %vm82 = vcmp.ge.s32.totalorder %v50, 128
    %vm83 = vcmp.ge.s32.totalorder %v51, 128
    %vm84 = vcmp.ge.s32.totalorder %v52, 128
    %vm85 = vcmp.ge.s32.totalorder %v53, 128
    %vm86 = vcmp.ge.s32.totalorder %v54, 128
    %vm87 = vcmp.ge.s32.totalorder %v55, 128
    %vm88 = vcmp.ge.s32.totalorder %v56, 128
    %vm89 = vcmp.ge.s32.totalorder %v57, 128
    %vm90 = vcmp.ge.s32.totalorder %v58, 128
    %vm91 = vcmp.lt.s32.totalorder %v27, 192
    %vm92 = vcmp.lt.s32.totalorder %v28, 192
    %vm93 = vcmp.lt.s32.totalorder %v29, 192
    %vm94 = vcmp.lt.s32.totalorder %v30, 192
    %vm95 = vcmp.lt.s32.totalorder %v31, 192
    %vm96 = vcmp.lt.s32.totalorder %v32, 192
    %vm97 = vcmp.lt.s32.totalorder %v33, 192
    %vm98 = vcmp.lt.s32.totalorder %v34, 192
    %vm99 = vcmp.lt.s32.totalorder %v35, 192
    %vm100 = vcmp.lt.s32.totalorder %v36, 192
    %vm101 = vcmp.lt.s32.totalorder %v37, 192
    %vm102 = vcmp.lt.s32.totalorder %v38, 192
    %vm103 = vcmp.lt.s32.totalorder %v39, 192
    %vm104 = vcmp.lt.s32.totalorder %v40, 192
    %vm105 = vcmp.lt.s32.totalorder %v41, 192
    %vm106 = vcmp.lt.s32.totalorder %v42, 192
    %vm107 = vcmp.lt.s32.totalorder %v43, 192
    %vm108 = vcmp.lt.s32.totalorder %v44, 192
    %vm109 = vcmp.lt.s32.totalorder %v45, 192
    %vm110 = vcmp.lt.s32.totalorder %v46, 192
    %vm111 = vcmp.lt.s32.totalorder %v47, 192
    %vm112 = vcmp.lt.s32.totalorder %v48, 192
    %vm113 = vcmp.lt.s32.totalorder %v49, 192
    %vm114 = vcmp.lt.s32.totalorder %v50, 192
    %vm115 = vcmp.lt.s32.totalorder %v51, 192
    %vm116 = vcmp.lt.s32.totalorder %v52, 192
    %vm117 = vcmp.lt.s32.totalorder %v53, 192
    %vm118 = vcmp.lt.s32.totalorder %v54, 192
    %vm119 = vcmp.lt.s32.totalorder %v55, 192
    %vm120 = vcmp.lt.s32.totalorder %v56, 192
    %vm121 = vcmp.lt.s32.totalorder %v57, 192
    %vm122 = vcmp.lt.s32.totalorder %v58, 192
    %vm123 = vmand %vm59, %vm91
    %vm124 = vmand %vm60, %vm92
    %vm125 = vmand %vm61, %vm93
    %vm126 = vmand %vm62, %vm94
    %vm127 = vmand %vm63, %vm95
    %vm128 = vmand %vm64, %vm96
    %vm129 = vmand %vm65, %vm97
    %vm130 = vmand %vm66, %vm98
    %vm131 = vmand %vm67, %vm99
    %vm132 = vmand %vm68, %vm100
    %vm133 = vmand %vm69, %vm101
    %vm134 = vmand %vm70, %vm102
    %vm135 = vmand %vm71, %vm103
    %vm136 = vmand %vm72, %vm104
    %vm137 = vmand %vm73, %vm105
    %vm138 = vmand %vm74, %vm106
    %vm139 = vmand %vm75, %vm107
    %vm140 = vmand %vm76, %vm108
    %vm141 = vmand %vm77, %vm109
    %vm142 = vmand %vm78, %vm110
    %vm143 = vmand %vm79, %vm111
    %vm144 = vmand %vm80, %vm112
    %vm145 = vmand %vm81, %vm113
    %vm146 = vmand %vm82, %vm114
    %vm147 = vmand %vm83, %vm115
    %vm148 = vmand %vm84, %vm116
    %vm149 = vmand %vm85, %vm117
    %vm150 = vmand %vm86, %vm118
    %vm151 = vmand %vm87, %vm119
    %vm152 = vmand %vm88, %vm120
    %vm153 = vmand %vm89, %vm121
    %vm154 = vmand %vm90, %vm122
    %v155 = vsel %vm123, 1.0, 0.5
    %v156 = vsel %vm124, 1.0, 0.5
    %v157 = vsel %vm125, 1.0, 0.5
    %v158 = vsel %vm126, 1.0, 0.5
    %v159 = vsel %vm127, 1.0, 0.5
    %v160 = vsel %vm128, 1.0, 0.5
    %v161 = vsel %vm129, 1.0, 0.5
    %v162 = vsel %vm130, 1.0, 0.5
    %v163 = vsel %vm131, 1.0, 0.5
    %v164 = vsel %vm132, 1.0, 0.5
    %v165 = vsel %vm133, 1.0, 0.5
    %v166 = vsel %vm134, 1.0, 0.5
    %v167 = vsel %vm135, 1.0, 0.5
    %v168 = vsel %vm136, 1.0, 0.5
    %v169 = vsel %vm137, 1.0, 0.5
    %v170 = vsel %vm138, 1.0, 0.5
    %v171 = vsel %vm139, 1.0, 0.5
    %v172 = vsel %vm140, 1.0, 0.5
    %v173 = vsel %vm141, 1.0, 0.5
    %v174 = vsel %vm142, 1.0, 0.5
    %v175 = vsel %vm143, 1.0, 0.5
    %v176 = vsel %vm144, 1.0, 0.5
    %v177 = vsel %vm145, 1.0, 0.5
    %v178 = vsel %vm146, 1.0, 0.5
    %v179 = vsel %vm147, 1.0, 0.5
    %v180 = vsel %vm148, 1.0, 0.5
    %v181 = vsel %vm149, 1.0, 0.5
    %v182 = vsel %vm150, 1.0, 0.5
    %v183 = vsel %vm151, 1.0, 0.5
    %v184 = vsel %vm152, 1.0, 0.5
    %v185 = vsel %vm153, 1.0, 0.5
    %v186 = vsel %vm154, 1.0, 0.5
    %v187 = vld [vmem:[%s2] sm:$0xff]
    %v188 = vld [vmem:[%s2 + $0x8] sm:$0xff]
    %v189 = vld [vmem:[%s2 + $0x10] sm:$0xff]
    %v190 = vld [vmem:[%s2 + $0x18] sm:$0xff]
    %v191 = vld [vmem:[%s2 + $0x20] sm:$0xff]
    %v192 = vld [vmem:[%s2 + $0x28] sm:$0xff]
    %v193 = vld [vmem:[%s2 + $0x30] sm:$0xff]
    %v194 = vld [vmem:[%s2 + $0x38] sm:$0xff]
    %v195 = vld [vmem:[%s2 + $0x40] sm:$0xff]
    %v196 = vld [vmem:[%s2 + $0x48] sm:$0xff]
    %v197 = vld [vmem:[%s2 + $0x50] sm:$0xff]
    %v198 = vld [vmem:[%s2 + $0x58] sm:$0xff]
    %v199 = vld [vmem:[%s2 + $0x60] sm:$0xff]
    %v200 = vld [vmem:[%s2 + $0x68] sm:$0xff]
    %v201 = vld [vmem:[%s2 + $0x70] sm:$0xff]
    %v202 = vld [vmem:[%s2 + $0x78] sm:$0xff]
    %v203 = vld [vmem:[%s2 + $0x80] sm:$0xff]
    %v204 = vld [vmem:[%s2 + $0x88] sm:$0xff]
    %v205 = vld [vmem:[%s2 + $0x90] sm:$0xff]
    %v206 = vld [vmem:[%s2 + $0x98] sm:$0xff]
    %v207 = vld [vmem:[%s2 + $0xa0] sm:$0xff]
    %v208 = vld [vmem:[%s2 + $0xa8] sm:$0xff]
    %v209 = vld [vmem:[%s2 + $0xb0] sm:$0xff]
    %v210 = vld [vmem:[%s2 + $0xb8] sm:$0xff]
    %v211 = vld [vmem:[%s2 + $0xc0] sm:$0xff]
    %v212 = vld [vmem:[%s2 + $0xc8] sm:$0xff]
    %v213 = vld [vmem:[%s2 + $0xd0] sm:$0xff]
    %v214 = vld [vmem:[%s2 + $0xd8] sm:$0xff]
    %v215 = vld [vmem:[%s2 + $0xe0] sm:$0xff]
    %v216 = vld [vmem:[%s2 + $0xe8] sm:$0xff]
    %v217 = vld [vmem:[%s2 + $0xf0] sm:$0xff]
    %v218 = vld [vmem:[%s2 + $0xf8] sm:$0xff]
    %v219 = vmul.f32 %v187, %v155
    %v220 = vmul.f32 %v188, %v156
    %v221 = vmul.f32 %v189, %v157
    %v222 = vmul.f32 %v190, %v158
    %v223 = vmul.f32 %v191, %v159
    %v224 = vmul.f32 %v192, %v160
    %v225 = vmul.f32 %v193, %v161
    %v226 = vmul.f32 %v194, %v162
    %v227 = vmul.f32 %v195, %v163
    %v228 = vmul.f32 %v196, %v164
    %v229 = vmul.f32 %v197, %v165
    %v230 = vmul.f32 %v198, %v166
    %v231 = vmul.f32 %v199, %v167
    %v232 = vmul.f32 %v200, %v168
    %v233 = vmul.f32 %v201, %v169
    %v234 = vmul.f32 %v202, %v170
    %v235 = vmul.f32 %v203, %v171
    %v236 = vmul.f32 %v204, %v172
    %v237 = vmul.f32 %v205, %v173
    %v238 = vmul.f32 %v206, %v174
    %v239 = vmul.f32 %v207, %v175
    %v240 = vmul.f32 %v208, %v176
    %v241 = vmul.f32 %v209, %v177
    %v242 = vmul.f32 %v210, %v178
    %v243 = vmul.f32 %v211, %v179
    %v244 = vmul.f32 %v212, %v180
    %v245 = vmul.f32 %v213, %v181
    %v246 = vmul.f32 %v214, %v182
    %v247 = vmul.f32 %v215, %v183
    %v248 = vmul.f32 %v216, %v184
    %v249 = vmul.f32 %v217, %v185
    %v250 = vmul.f32 %v218, %v186
    %v251 = vld [vmem:[%s3] sm:$0xff]
    %v252 = vld [vmem:[%s3 + $0x8] sm:$0xff]
    %v253 = vld [vmem:[%s3 + $0x10] sm:$0xff]
    %v254 = vld [vmem:[%s3 + $0x18] sm:$0xff]
    %v255 = vld [vmem:[%s3 + $0x20] sm:$0xff]
    %v256 = vld [vmem:[%s3 + $0x28] sm:$0xff]
    %v257 = vld [vmem:[%s3 + $0x30] sm:$0xff]
    %v258 = vld [vmem:[%s3 + $0x38] sm:$0xff]
    %v259 = vld [vmem:[%s3 + $0x40] sm:$0xff]
    %v260 = vld [vmem:[%s3 + $0x48] sm:$0xff]
    %v261 = vld [vmem:[%s3 + $0x50] sm:$0xff]
    %v262 = vld [vmem:[%s3 + $0x58] sm:$0xff]
    %v263 = vld [vmem:[%s3 + $0x60] sm:$0xff]
    %v264 = vld [vmem:[%s3 + $0x68] sm:$0xff]
    %v265 = vld [vmem:[%s3 + $0x70] sm:$0xff]
    %v266 = vld [vmem:[%s3 + $0x78] sm:$0xff]
    %v267 = vld [vmem:[%s3 + $0x80] sm:$0xff]
    %v268 = vld [vmem:[%s3 + $0x88] sm:$0xff]
    %v269 = vld [vmem:[%s3 + $0x90] sm:$0xff]
    %v270 = vld [vmem:[%s3 + $0x98] sm:$0xff]
    %v271 = vld [vmem:[%s3 + $0xa0] sm:$0xff]
    %v272 = vld [vmem:[%s3 + $0xa8] sm:$0xff]
    %v273 = vld [vmem:[%s3 + $0xb0] sm:$0xff]
    %v274 = vld [vmem:[%s3 + $0xb8] sm:$0xff]
    %v275 = vld [vmem:[%s3 + $0xc0] sm:$0xff]
    %v276 = vld [vmem:[%s3 + $0xc8] sm:$0xff]
    %v277 = vld [vmem:[%s3 + $0xd0] sm:$0xff]
    %v278 = vld [vmem:[%s3 + $0xd8] sm:$0xff]
    %v279 = vld [vmem:[%s3 + $0xe0] sm:$0xff]
    %v280 = vld [vmem:[%s3 + $0xe8] sm:$0xff]
    %v281 = vld [vmem:[%s3 + $0xf0] sm:$0xff]
    %v282 = vld [vmem:[%s3 + $0xf8] sm:$0xff]
    %v283 = vmul.f32 %v251, %v155
    %v284 = vmul.f32 %v252, %v156
    %v285 = vmul.f32 %v253, %v157
    %v286 = vmul.f32 %v254, %v158
    %v287 = vmul.f32 %v255, %v159
    %v288 = vmul.f32 %v256, %v160
    %v289 = vmul.f32 %v257, %v161
    %v290 = vmul.f32 %v258, %v162
    %v291 = vmul.f32 %v259, %v163
    %v292 = vmul.f32 %v260, %v164
    %v293 = vmul.f32 %v261, %v165
    %v294 = vmul.f32 %v262, %v166
    %v295 = vmul.f32 %v263, %v167
    %v296 = vmul.f32 %v264, %v168
    %v297 = vmul.f32 %v265, %v169
    %v298 = vmul.f32 %v266, %v170
    %v299 = vmul.f32 %v267, %v171
    %v300 = vmul.f32 %v268, %v172
    %v301 = vmul.f32 %v269, %v173
    %v302 = vmul.f32 %v270, %v174
    %v303 = vmul.f32 %v271, %v175
    %v304 = vmul.f32 %v272, %v176
    %v305 = vmul.f32 %v273, %v177
    %v306 = vmul.f32 %v274, %v178
    %v307 = vmul.f32 %v275, %v179
    %v308 = vmul.f32 %v276, %v180
    %v309 = vmul.f32 %v277, %v181
    %v310 = vmul.f32 %v278, %v182
    %v311 = vmul.f32 %v279, %v183
    %v312 = vmul.f32 %v280, %v184
    %v313 = vmul.f32 %v281, %v185
    %v314 = vmul.f32 %v282, %v186
    %v315 = vld [vmem:[%s1] sm:$0xff]
    %v316 = vld [vmem:[%s1 + $0x8] sm:$0xff]
    %v317 = vld [vmem:[%s1 + $0x10] sm:$0xff]
    %v318 = vld [vmem:[%s1 + $0x18] sm:$0xff]
    %v319 = vld [vmem:[%s1 + $0x20] sm:$0xff]
    %v320 = vld [vmem:[%s1 + $0x28] sm:$0xff]
    %v321 = vld [vmem:[%s1 + $0x30] sm:$0xff]
    %v322 = vld [vmem:[%s1 + $0x38] sm:$0xff]
    %v323 = vld [vmem:[%s1 + $0x40] sm:$0xff]
    %v324 = vld [vmem:[%s1 + $0x48] sm:$0xff]
    %v325 = vld [vmem:[%s1 + $0x50] sm:$0xff]
    %v326 = vld [vmem:[%s1 + $0x58] sm:$0xff]
    %v327 = vld [vmem:[%s1 + $0x60] sm:$0xff]
    %v328 = vld [vmem:[%s1 + $0x68] sm:$0xff]
    %v329 = vld [vmem:[%s1 + $0x70] sm:$0xff]
    %v330 = vld [vmem:[%s1 + $0x78] sm:$0xff]
    %v331 = vld [vmem:[%s1 + $0x80] sm:$0xff]
    %v332 = vld [vmem:[%s1 + $0x88] sm:$0xff]
    %v333 = vld [vmem:[%s1 + $0x90] sm:$0xff]
    %v334 = vld [vmem:[%s1 + $0x98] sm:$0xff]
    %v335 = vld [vmem:[%s1 + $0xa0] sm:$0xff]
    %v336 = vld [vmem:[%s1 + $0xa8] sm:$0xff]
    %v337 = vld [vmem:[%s1 + $0xb0] sm:$0xff]
    %v338 = vld [vmem:[%s1 + $0xb8] sm:$0xff]
    %v339 = vld [vmem:[%s1 + $0xc0] sm:$0xff]
    %v340 = vld [vmem:[%s1 + $0xc8] sm:$0xff]
    %v341 = vld [vmem:[%s1 + $0xd0] sm:$0xff]
    %v342 = vld [vmem:[%s1 + $0xd8] sm:$0xff]
    %v343 = vld [vmem:[%s1 + $0xe0] sm:$0xff]
    %v344 = vld [vmem:[%s1 + $0xe8] sm:$0xff]
    %v345 = vld [vmem:[%s1 + $0xf0] sm:$0xff]
    %v346 = vld [vmem:[%s1 + $0xf8] sm:$0xff]
    %v347 = vmul.f32 %v315, %v155
    %v348 = vmul.f32 %v316, %v156
    %v349 = vmul.f32 %v317, %v157
    %v350 = vmul.f32 %v318, %v158
    %v351 = vmul.f32 %v319, %v159
    %v352 = vmul.f32 %v320, %v160
    %v353 = vmul.f32 %v321, %v161
    %v354 = vmul.f32 %v322, %v162
    %v355 = vmul.f32 %v323, %v163
    %v356 = vmul.f32 %v324, %v164
    %v357 = vmul.f32 %v325, %v165
    %v358 = vmul.f32 %v326, %v166
    %v359 = vmul.f32 %v327, %v167
    %v360 = vmul.f32 %v328, %v168
    %v361 = vmul.f32 %v329, %v169
    %v362 = vmul.f32 %v330, %v170
    %v363 = vmul.f32 %v331, %v171
    %v364 = vmul.f32 %v332, %v172
    %v365 = vmul.f32 %v333, %v173
    %v366 = vmul.f32 %v334, %v174
    %v367 = vmul.f32 %v335, %v175
    %v368 = vmul.f32 %v336, %v176
    %v369 = vmul.f32 %v337, %v177
    %v370 = vmul.f32 %v338, %v178
    %v371 = vmul.f32 %v339, %v179
    %v372 = vmul.f32 %v340, %v180
    %v373 = vmul.f32 %v341, %v181
    %v374 = vmul.f32 %v342, %v182
    %v375 = vmul.f32 %v343, %v183
    %v376 = vmul.f32 %v344, %v184
    %v377 = vmul.f32 %v345, %v185
    %v378 = vmul.f32 %v346, %v186
    %v379 = vld [vmem:[%s0] sm:$0x3]
    %381 = vset.pattern.permute.xlu0 0
    %382 = vperm.xlu0 %381, %v347
    %v383 = vpop.permute.xlu0 %382
    %386 = vset.pattern.permute.xlu0 0
    %387 = vperm.xlu0 %386, %v348
    %v388 = vpop.permute.xlu0 %387
    %391 = vset.pattern.permute.xlu0 0
    %392 = vperm.xlu0 %391, %v349
    %v393 = vpop.permute.xlu0 %392
    %396 = vset.pattern.permute.xlu0 0
    %397 = vperm.xlu0 %396, %v350
    %v398 = vpop.permute.xlu0 %397
    %401 = vset.pattern.permute.xlu0 0
    %402 = vperm.xlu0 %401, %v351
    %v403 = vpop.permute.xlu0 %402
    %406 = vset.pattern.permute.xlu0 0
    %407 = vperm.xlu0 %406, %v352
    %v408 = vpop.permute.xlu0 %407
    %411 = vset.pattern.permute.xlu0 0
    %412 = vperm.xlu0 %411, %v353
    %v413 = vpop.permute.xlu0 %412
    %416 = vset.pattern.permute.xlu0 0
    %417 = vperm.xlu0 %416, %v354
    %v418 = vpop.permute.xlu0 %417
    %421 = vset.pattern.permute.xlu0 0
    %422 = vperm.xlu0 %421, %v355
    %v423 = vpop.permute.xlu0 %422
    %426 = vset.pattern.permute.xlu0 0
    %427 = vperm.xlu0 %426, %v356
    %v428 = vpop.permute.xlu0 %427
    %431 = vset.pattern.permute.xlu0 0
    %432 = vperm.xlu0 %431, %v357
    %v433 = vpop.permute.xlu0 %432
    %436 = vset.pattern.permute.xlu0 0
    %437 = vperm.xlu0 %436, %v358
    %v438 = vpop.permute.xlu0 %437
    %441 = vset.pattern.permute.xlu0 0
    %442 = vperm.xlu0 %441, %v359
    %v443 = vpop.permute.xlu0 %442
    %446 = vset.pattern.permute.xlu0 0
    %447 = vperm.xlu0 %446, %v360
    %v448 = vpop.permute.xlu0 %447
    %451 = vset.pattern.permute.xlu0 0
    %452 = vperm.xlu0 %451, %v361
    %v453 = vpop.permute.xlu0 %452
    %456 = vset.pattern.permute.xlu0 0
    %457 = vperm.xlu0 %456, %v362
    %v458 = vpop.permute.xlu0 %457
    %461 = vset.pattern.permute.xlu0 0
    %462 = vperm.xlu0 %461, %v363
    %v463 = vpop.permute.xlu0 %462
    %466 = vset.pattern.permute.xlu0 0
    %467 = vperm.xlu0 %466, %v364
    %v468 = vpop.permute.xlu0 %467
    %471 = vset.pattern.permute.xlu0 0
    %472 = vperm.xlu0 %471, %v365
    %v473 = vpop.permute.xlu0 %472
    %476 = vset.pattern.permute.xlu0 0
    %477 = vperm.xlu0 %476, %v366
    %v478 = vpop.permute.xlu0 %477
    %481 = vset.pattern.permute.xlu0 0
    %482 = vperm.xlu0 %481, %v367
    %v483 = vpop.permute.xlu0 %482
    %486 = vset.pattern.permute.xlu0 0
    %487 = vperm.xlu0 %486, %v368
    %v488 = vpop.permute.xlu0 %487
    %491 = vset.pattern.permute.xlu0 0
    %492 = vperm.xlu0 %491, %v369
    %v493 = vpop.permute.xlu0 %492
    %496 = vset.pattern.permute.xlu0 0
    %497 = vperm.xlu0 %496, %v370
    %v498 = vpop.permute.xlu0 %497
    %501 = vset.pattern.permute.xlu0 0
    %502 = vperm.xlu0 %501, %v371
    %v503 = vpop.permute.xlu0 %502
    %506 = vset.pattern.permute.xlu0 0
    %507 = vperm.xlu0 %506, %v372
    %v508 = vpop.permute.xlu0 %507
    %511 = vset.pattern.permute.xlu0 0
    %512 = vperm.xlu0 %511, %v373
    %v513 = vpop.permute.xlu0 %512
    %516 = vset.pattern.permute.xlu0 0
    %517 = vperm.xlu0 %516, %v374
    %v518 = vpop.permute.xlu0 %517
    %521 = vset.pattern.permute.xlu0 0
    %522 = vperm.xlu0 %521, %v375
    %v523 = vpop.permute.xlu0 %522
    %526 = vset.pattern.permute.xlu0 0
    %527 = vperm.xlu0 %526, %v376
    %v528 = vpop.permute.xlu0 %527
    %531 = vset.pattern.permute.xlu0 0
    %532 = vperm.xlu0 %531, %v377
    %v533 = vpop.permute.xlu0 %532
    %536 = vset.pattern.permute.xlu0 0
    %537 = vperm.xlu0 %536, %v378
    %v538 = vpop.permute.xlu0 %537
    %v540 = vlaneseq
    %v541 = vshrl.u32 %v540, 7
    %v542 = vsub.s32 0, %v541
    %v543 = vrot.slane %v379, %v542
    %v544 = vmul.f32 %v383, %v543
    %v545 = vmul.f32 %v388, %v543
    %v546 = vmul.f32 %v393, %v543
    %v547 = vmul.f32 %v398, %v543
    %v548 = vmul.f32 %v403, %v543
    %v549 = vmul.f32 %v408, %v543
    %v550 = vmul.f32 %v413, %v543
    %v551 = vmul.f32 %v418, %v543
    %v552 = vmul.f32 %v423, %v543
    %v553 = vmul.f32 %v428, %v543
    %v554 = vmul.f32 %v433, %v543
    %v555 = vmul.f32 %v438, %v543
    %v556 = vmul.f32 %v443, %v543
    %v557 = vmul.f32 %v448, %v543
    %v558 = vmul.f32 %v453, %v543
    %v559 = vmul.f32 %v458, %v543
    %v560 = vmul.f32 %v463, %v543
    %v561 = vmul.f32 %v468, %v543
    %v562 = vmul.f32 %v473, %v543
    %v563 = vmul.f32 %v478, %v543
    %v564 = vmul.f32 %v483, %v543
    %v565 = vmul.f32 %v488, %v543
    %v566 = vmul.f32 %v493, %v543
    %v567 = vmul.f32 %v498, %v543
    %v568 = vmul.f32 %v503, %v543
    %v569 = vmul.f32 %v508, %v543
    %v570 = vmul.f32 %v513, %v543
    %v571 = vmul.f32 %v518, %v543
    %v572 = vmul.f32 %v523, %v543
    %v573 = vmul.f32 %v528, %v543
    %v574 = vmul.f32 %v533, %v543
    %v575 = vmul.f32 %v538, %v543
    %577 = vset.pattern.permute.xlu0 0
    %578 = vperm.xlu0 %577, %v283
    %v579 = vpop.permute.xlu0 %578
    %582 = vset.pattern.permute.xlu0 0
    %583 = vperm.xlu0 %582, %v284
    %v584 = vpop.permute.xlu0 %583
    %587 = vset.pattern.permute.xlu0 0
    %588 = vperm.xlu0 %587, %v285
    %v589 = vpop.permute.xlu0 %588
    %592 = vset.pattern.permute.xlu0 0
    %593 = vperm.xlu0 %592, %v286
    %v594 = vpop.permute.xlu0 %593
    %597 = vset.pattern.permute.xlu0 0
    %598 = vperm.xlu0 %597, %v287
    %v599 = vpop.permute.xlu0 %598
    %602 = vset.pattern.permute.xlu0 0
    %603 = vperm.xlu0 %602, %v288
    %v604 = vpop.permute.xlu0 %603
    %607 = vset.pattern.permute.xlu0 0
    %608 = vperm.xlu0 %607, %v289
    %v609 = vpop.permute.xlu0 %608
    %612 = vset.pattern.permute.xlu0 0
    %613 = vperm.xlu0 %612, %v290
    %v614 = vpop.permute.xlu0 %613
    %617 = vset.pattern.permute.xlu0 0
    %618 = vperm.xlu0 %617, %v291
    %v619 = vpop.permute.xlu0 %618
    %622 = vset.pattern.permute.xlu0 0
    %623 = vperm.xlu0 %622, %v292
    %v624 = vpop.permute.xlu0 %623
    %627 = vset.pattern.permute.xlu0 0
    %628 = vperm.xlu0 %627, %v293
    %v629 = vpop.permute.xlu0 %628
    %632 = vset.pattern.permute.xlu0 0
    %633 = vperm.xlu0 %632, %v294
    %v634 = vpop.permute.xlu0 %633
    %637 = vset.pattern.permute.xlu0 0
    %638 = vperm.xlu0 %637, %v295
    %v639 = vpop.permute.xlu0 %638
    %642 = vset.pattern.permute.xlu0 0
    %643 = vperm.xlu0 %642, %v296
    %v644 = vpop.permute.xlu0 %643
    %647 = vset.pattern.permute.xlu0 0
    %648 = vperm.xlu0 %647, %v297
    %v649 = vpop.permute.xlu0 %648
    %652 = vset.pattern.permute.xlu0 0
    %653 = vperm.xlu0 %652, %v298
    %v654 = vpop.permute.xlu0 %653
    %657 = vset.pattern.permute.xlu0 0
    %658 = vperm.xlu0 %657, %v299
    %v659 = vpop.permute.xlu0 %658
    %662 = vset.pattern.permute.xlu0 0
    %663 = vperm.xlu0 %662, %v300
    %v664 = vpop.permute.xlu0 %663
    %667 = vset.pattern.permute.xlu0 0
    %668 = vperm.xlu0 %667, %v301
    %v669 = vpop.permute.xlu0 %668
    %672 = vset.pattern.permute.xlu0 0
    %673 = vperm.xlu0 %672, %v302
    %v674 = vpop.permute.xlu0 %673
    %677 = vset.pattern.permute.xlu0 0
    %678 = vperm.xlu0 %677, %v303
    %v679 = vpop.permute.xlu0 %678
    %682 = vset.pattern.permute.xlu0 0
    %683 = vperm.xlu0 %682, %v304
    %v684 = vpop.permute.xlu0 %683
    %687 = vset.pattern.permute.xlu0 0
    %688 = vperm.xlu0 %687, %v305
    %v689 = vpop.permute.xlu0 %688
    %692 = vset.pattern.permute.xlu0 0
    %693 = vperm.xlu0 %692, %v306
    %v694 = vpop.permute.xlu0 %693
    %697 = vset.pattern.permute.xlu0 0
    %698 = vperm.xlu0 %697, %v307
    %v699 = vpop.permute.xlu0 %698
    %702 = vset.pattern.permute.xlu0 0
    %703 = vperm.xlu0 %702, %v308
    %v704 = vpop.permute.xlu0 %703
    %707 = vset.pattern.permute.xlu0 0
    %708 = vperm.xlu0 %707, %v309
    %v709 = vpop.permute.xlu0 %708
    %712 = vset.pattern.permute.xlu0 0
    %713 = vperm.xlu0 %712, %v310
    %v714 = vpop.permute.xlu0 %713
    %717 = vset.pattern.permute.xlu0 0
    %718 = vperm.xlu0 %717, %v311
    %v719 = vpop.permute.xlu0 %718
    %722 = vset.pattern.permute.xlu0 0
    %723 = vperm.xlu0 %722, %v312
    %v724 = vpop.permute.xlu0 %723
    %727 = vset.pattern.permute.xlu0 0
    %728 = vperm.xlu0 %727, %v313
    %v729 = vpop.permute.xlu0 %728
    %732 = vset.pattern.permute.xlu0 0
    %733 = vperm.xlu0 %732, %v314
    %v734 = vpop.permute.xlu0 %733
    %v736 = vadd.f32 %v579, %v544
    %v737 = vadd.f32 %v584, %v545
    %v738 = vadd.f32 %v589, %v546
    %v739 = vadd.f32 %v594, %v547
    %v740 = vadd.f32 %v599, %v548
    %v741 = vadd.f32 %v604, %v549
    %v742 = vadd.f32 %v609, %v550
    %v743 = vadd.f32 %v614, %v551
    %v744 = vadd.f32 %v619, %v552
    %v745 = vadd.f32 %v624, %v553
    %v746 = vadd.f32 %v629, %v554
    %v747 = vadd.f32 %v634, %v555
    %v748 = vadd.f32 %v639, %v556
    %v749 = vadd.f32 %v644, %v557
    %v750 = vadd.f32 %v649, %v558
    %v751 = vadd.f32 %v654, %v559
    %v752 = vadd.f32 %v659, %v560
    %v753 = vadd.f32 %v664, %v561
    %v754 = vadd.f32 %v669, %v562
    %v755 = vadd.f32 %v674, %v563
    %v756 = vadd.f32 %v679, %v564
    %v757 = vadd.f32 %v684, %v565
    %v758 = vadd.f32 %v689, %v566
    %v759 = vadd.f32 %v694, %v567
    %v760 = vadd.f32 %v699, %v568
    %v761 = vadd.f32 %v704, %v569
    %v762 = vadd.f32 %v709, %v570
    %v763 = vadd.f32 %v714, %v571
    %v764 = vadd.f32 %v719, %v572
    %v765 = vadd.f32 %v724, %v573
    %v766 = vadd.f32 %v729, %v574
    %v767 = vadd.f32 %v734, %v575
    %768 = vset.pattern.permute.xlu0 1
    %769 = vperm.xlu0 %768, %v347
    %v770 = vpop.permute.xlu0 %769
    %772 = vset.pattern.permute.xlu0 1
    %773 = vperm.xlu0 %772, %v348
    %v774 = vpop.permute.xlu0 %773
    %776 = vset.pattern.permute.xlu0 1
    %777 = vperm.xlu0 %776, %v349
    %v778 = vpop.permute.xlu0 %777
    %780 = vset.pattern.permute.xlu0 1
    %781 = vperm.xlu0 %780, %v350
    %v782 = vpop.permute.xlu0 %781
    %784 = vset.pattern.permute.xlu0 1
    %785 = vperm.xlu0 %784, %v351
    %v786 = vpop.permute.xlu0 %785
    %788 = vset.pattern.permute.xlu0 1
    %789 = vperm.xlu0 %788, %v352
    %v790 = vpop.permute.xlu0 %789
    %792 = vset.pattern.permute.xlu0 1
    %793 = vperm.xlu0 %792, %v353
    %v794 = vpop.permute.xlu0 %793
    %796 = vset.pattern.permute.xlu0 1
    %797 = vperm.xlu0 %796, %v354
    %v798 = vpop.permute.xlu0 %797
    %800 = vset.pattern.permute.xlu0 1
    %801 = vperm.xlu0 %800, %v355
    %v802 = vpop.permute.xlu0 %801
    %804 = vset.pattern.permute.xlu0 1
    %805 = vperm.xlu0 %804, %v356
    %v806 = vpop.permute.xlu0 %805
    %808 = vset.pattern.permute.xlu0 1
    %809 = vperm.xlu0 %808, %v357
    %v810 = vpop.permute.xlu0 %809
    %812 = vset.pattern.permute.xlu0 1
    %813 = vperm.xlu0 %812, %v358
    %v814 = vpop.permute.xlu0 %813
    %816 = vset.pattern.permute.xlu0 1
    %817 = vperm.xlu0 %816, %v359
    %v818 = vpop.permute.xlu0 %817
    %820 = vset.pattern.permute.xlu0 1
    %821 = vperm.xlu0 %820, %v360
    %v822 = vpop.permute.xlu0 %821
    %824 = vset.pattern.permute.xlu0 1
    %825 = vperm.xlu0 %824, %v361
    %v826 = vpop.permute.xlu0 %825
    %828 = vset.pattern.permute.xlu0 1
    %829 = vperm.xlu0 %828, %v362
    %v830 = vpop.permute.xlu0 %829
    %832 = vset.pattern.permute.xlu0 1
    %833 = vperm.xlu0 %832, %v363
    %v834 = vpop.permute.xlu0 %833
    %836 = vset.pattern.permute.xlu0 1
    %837 = vperm.xlu0 %836, %v364
    %v838 = vpop.permute.xlu0 %837
    %840 = vset.pattern.permute.xlu0 1
    %841 = vperm.xlu0 %840, %v365
    %v842 = vpop.permute.xlu0 %841
    %844 = vset.pattern.permute.xlu0 1
    %845 = vperm.xlu0 %844, %v366
    %v846 = vpop.permute.xlu0 %845
    %848 = vset.pattern.permute.xlu0 1
    %849 = vperm.xlu0 %848, %v367
    %v850 = vpop.permute.xlu0 %849
    %852 = vset.pattern.permute.xlu0 1
    %853 = vperm.xlu0 %852, %v368
    %v854 = vpop.permute.xlu0 %853
    %856 = vset.pattern.permute.xlu0 1
    %857 = vperm.xlu0 %856, %v369
    %v858 = vpop.permute.xlu0 %857
    %860 = vset.pattern.permute.xlu0 1
    %861 = vperm.xlu0 %860, %v370
    %v862 = vpop.permute.xlu0 %861
    %864 = vset.pattern.permute.xlu0 1
    %865 = vperm.xlu0 %864, %v371
    %v866 = vpop.permute.xlu0 %865
    %868 = vset.pattern.permute.xlu0 1
    %869 = vperm.xlu0 %868, %v372
    %v870 = vpop.permute.xlu0 %869
    %872 = vset.pattern.permute.xlu0 1
    %873 = vperm.xlu0 %872, %v373
    %v874 = vpop.permute.xlu0 %873
    %876 = vset.pattern.permute.xlu0 1
    %877 = vperm.xlu0 %876, %v374
    %v878 = vpop.permute.xlu0 %877
    %880 = vset.pattern.permute.xlu0 1
    %881 = vperm.xlu0 %880, %v375
    %v882 = vpop.permute.xlu0 %881
    %884 = vset.pattern.permute.xlu0 1
    %885 = vperm.xlu0 %884, %v376
    %v886 = vpop.permute.xlu0 %885
    %888 = vset.pattern.permute.xlu0 1
    %889 = vperm.xlu0 %888, %v377
    %v890 = vpop.permute.xlu0 %889
    %892 = vset.pattern.permute.xlu0 1
    %893 = vperm.xlu0 %892, %v378
    %v894 = vpop.permute.xlu0 %893
    %v896 = vlaneseq
    %v897 = vshrl.u32 %v896, 7
    %v898 = vsub.s32 1, %v897
    %v899 = vrot.slane %v379, %v898
    %v900 = vmul.f32 %v770, %v899
    %v901 = vmul.f32 %v774, %v899
    %v902 = vmul.f32 %v778, %v899
    %v903 = vmul.f32 %v782, %v899
    %v904 = vmul.f32 %v786, %v899
    %v905 = vmul.f32 %v790, %v899
    %v906 = vmul.f32 %v794, %v899
    %v907 = vmul.f32 %v798, %v899
    %v908 = vmul.f32 %v802, %v899
    %v909 = vmul.f32 %v806, %v899
    %v910 = vmul.f32 %v810, %v899
    %v911 = vmul.f32 %v814, %v899
    %v912 = vmul.f32 %v818, %v899
    %v913 = vmul.f32 %v822, %v899
    %v914 = vmul.f32 %v826, %v899
    %v915 = vmul.f32 %v830, %v899
    %v916 = vmul.f32 %v834, %v899
    %v917 = vmul.f32 %v838, %v899
    %v918 = vmul.f32 %v842, %v899
    %v919 = vmul.f32 %v846, %v899
    %v920 = vmul.f32 %v850, %v899
    %v921 = vmul.f32 %v854, %v899
    %v922 = vmul.f32 %v858, %v899
    %v923 = vmul.f32 %v862, %v899
    %v924 = vmul.f32 %v866, %v899
    %v925 = vmul.f32 %v870, %v899
    %v926 = vmul.f32 %v874, %v899
    %v927 = vmul.f32 %v878, %v899
    %v928 = vmul.f32 %v882, %v899
    %v929 = vmul.f32 %v886, %v899
    %v930 = vmul.f32 %v890, %v899
    %v931 = vmul.f32 %v894, %v899
    %v932 = vadd.f32 %v736, %v900
    %v933 = vadd.f32 %v737, %v901
    %v934 = vadd.f32 %v738, %v902
    %v935 = vadd.f32 %v739, %v903
    %v936 = vadd.f32 %v740, %v904
    %v937 = vadd.f32 %v741, %v905
    %v938 = vadd.f32 %v742, %v906
    %v939 = vadd.f32 %v743, %v907
    %v940 = vadd.f32 %v744, %v908
    %v941 = vadd.f32 %v745, %v909
    %v942 = vadd.f32 %v746, %v910
    %v943 = vadd.f32 %v747, %v911
    %v944 = vadd.f32 %v748, %v912
    %v945 = vadd.f32 %v749, %v913
    %v946 = vadd.f32 %v750, %v914
    %v947 = vadd.f32 %v751, %v915
    %v948 = vadd.f32 %v752, %v916
    %v949 = vadd.f32 %v753, %v917
    %v950 = vadd.f32 %v754, %v918
    %v951 = vadd.f32 %v755, %v919
    %v952 = vadd.f32 %v756, %v920
    %v953 = vadd.f32 %v757, %v921
    %v954 = vadd.f32 %v758, %v922
    %v955 = vadd.f32 %v759, %v923
    %v956 = vadd.f32 %v760, %v924
    %v957 = vadd.f32 %v761, %v925
    %v958 = vadd.f32 %v762, %v926
    %v959 = vadd.f32 %v763, %v927
    %v960 = vadd.f32 %v764, %v928
    %v961 = vadd.f32 %v765, %v929
    %v962 = vadd.f32 %v766, %v930
    %v963 = vadd.f32 %v767, %v931
    %vm964 = vcmask 523264
    %v966 = vsel %vm964, %v219, 0
    %v969 = vsel %vm964, %v220, 0
    %v972 = vsel %vm964, %v221, 0
    %v975 = vsel %vm964, %v222, 0
    %v978 = vsel %vm964, %v223, 0
    %v981 = vsel %vm964, %v224, 0
    %v984 = vsel %vm964, %v225, 0
    %v987 = vsel %vm964, %v226, 0
    %v990 = vsel %vm964, %v227, 0
    %v993 = vsel %vm964, %v228, 0
    %v996 = vsel %vm964, %v229, 0
    %v999 = vsel %vm964, %v230, 0
    %v1002 = vsel %vm964, %v231, 0
    %v1005 = vsel %vm964, %v232, 0
    %v1008 = vsel %vm964, %v233, 0
    %v1011 = vsel %vm964, %v234, 0
    %v1014 = vsel %vm964, %v235, 0
    %v1017 = vsel %vm964, %v236, 0
    %v1020 = vsel %vm964, %v237, 0
    %v1023 = vsel %vm964, %v238, 0
    %v1026 = vsel %vm964, %v239, 0
    %v1029 = vsel %vm964, %v240, 0
    %v1032 = vsel %vm964, %v241, 0
    %v1035 = vsel %vm964, %v242, 0
    %v1038 = vsel %vm964, %v243, 0
    %v1041 = vsel %vm964, %v244, 0
    %v1044 = vsel %vm964, %v245, 0
    %v1047 = vsel %vm964, %v246, 0
    %v1050 = vsel %vm964, %v247, 0
    %v1053 = vsel %vm964, %v248, 0
    %v1056 = vsel %vm964, %v249, 0
    %v1059 = vsel %vm964, %v250, 0
    %1061 = vmatprep.subr.mxu0 0.0
    %1062 = vmatpush1.msra.mxu0 0.0
    %1063 = vmatprep.subr.mxu0 0.0
    %1064 = vmatpush1.msra.mxu0 0.0
    %1065 = vmatprep.subr.mxu0 0.0
    %1066 = vmatpush1.msra.mxu0 0.0
    %1067 = vmatprep.subr.mxu0 0.0
    %1068 = vmatpush1.msra.mxu0 0.0
    %1069 = vmatprep.subr.mxu0 0.0
    %1070 = vmatpush1.msra.mxu0 0.0
    %1071 = vmatprep.subr.mxu0 0.0
    %1072 = vmatpush1.msra.mxu0 0.0
    %1073 = vmatprep.subr.mxu0 0.0
    %1074 = vmatpush1.msra.mxu0 0.0
    %1075 = vmatprep.subr.mxu0 0.0
    %1076 = vmatpush1.msra.mxu0 0.0
    %1077 = vmatprep.subr.mxu0 0.0
    %1078 = vmatpush1.msra.mxu0 0.0
    %1079 = vmatprep.subr.mxu0 0.0
    %1080 = vmatpush1.msra.mxu0 0.0
    %1081 = vmatprep.subr.mxu0 0.0
    %1082 = vmatpush1.msra.mxu0 0.0
    %1083 = vmatprep.subr.mxu0 0.0
    %1084 = vmatpush1.msra.mxu0 0.0
    %1085 = vmatprep.subr.mxu0 0.0
    %1086 = vmatpush1.msra.mxu0 0.0
    %1087 = vmatprep.subr.mxu0 0.0
    %1088 = vmatpush1.msra.mxu0 0.0
    %1089 = vmatprep.subr.mxu0 0.0
    %1090 = vmatpush1.msra.mxu0 0.0
    %1091 = vmatprep.subr.mxu0 0.0
    %1092 = vmatpush1.msra.mxu0 0.0
    %1093 = vmatprep.subr.mxu0 0.0
    %1094 = vmatpush2.msra.mxu0 0.0
    %1095 = vmatprep.subr.mxu0 0.0
    %1096 = vmatpush2.msra.mxu0 0.0
    %1097 = vmatprep.subr.mxu0 0.0
    %1098 = vmatpush2.msra.mxu0 0.0
    %1099 = vmatprep.subr.mxu0 0.0
    %1100 = vmatpush2.msra.mxu0 0.0
    %1101 = vmatprep.subr.mxu0 0.0
    %1102 = vmatpush2.msra.mxu0 0.0
    %1103 = vmatprep.subr.mxu0 0.0
    %1104 = vmatpush2.msra.mxu0 0.0
    %1105 = vmatprep.subr.mxu0 0.0
    %1106 = vmatpush2.msra.mxu0 0.0
    %1107 = vmatprep.subr.mxu0 0.0
    %1108 = vmatpush2.msra.mxu0 0.0
    %1109 = vmatprep.subr.mxu0 0.0
    %1110 = vmatpush2.msra.mxu0 0.0
    %1111 = vmatprep.subr.mxu0 0.0
    %1112 = vmatpush2.msra.mxu0 0.0
    %1113 = vmatprep.subr.mxu0 0.0
    %1114 = vmatpush2.msra.mxu0 0.0
    %1115 = vmatprep.subr.mxu0 0.0
    %1116 = vmatpush2.msra.mxu0 0.0
    %1117 = vmatprep.subr.mxu0 0.0
    %1118 = vmatpush2.msra.mxu0 0.0
    %1119 = vmatprep.subr.mxu0 0.0
    %1120 = vmatpush2.msra.mxu0 0.0
    %1121 = vmatprep.subr.mxu0 0.0
    %1122 = vmatpush2.msra.mxu0 0.0
    %1123 = vmatprep.subr.mxu0 0.0
    %1124 = vmatpush2.msra.mxu0 0.0
    %1125 = vmatprep.mubr.f32.mxu0 0.0
    %1126 = vmatmul.mubr.f32.gmra.mxu0 %v966
    %v1127 = vpop.f32.mrf.mxu0
    %v1128 = vadd.f32 0.0, %v1127
    %v1129 = vpop.f32.mrf.mxu0
    %1130 = vmatprep.mubr.f32.mxu0 0.0
    %1131 = vmatmul.mubr.f32.gmra.mxu0 %v969
    %v1132 = vpop.f32.mrf.mxu0
    %v1133 = vadd.f32 0.0, %v1132
    %v1134 = vpop.f32.mrf.mxu0
    %1135 = vmatprep.mubr.f32.mxu0 0.0
    %1136 = vmatmul.mubr.f32.gmra.mxu0 %v972
    %v1137 = vpop.f32.mrf.mxu0
    %v1138 = vadd.f32 0.0, %v1137
    %v1139 = vpop.f32.mrf.mxu0
    %1140 = vmatprep.mubr.f32.mxu0 0.0
    %1141 = vmatmul.mubr.f32.gmra.mxu0 %v975
    %v1142 = vpop.f32.mrf.mxu0
    %v1143 = vadd.f32 0.0, %v1142
    %v1144 = vpop.f32.mrf.mxu0
    %1145 = vmatprep.mubr.f32.mxu0 0.0
    %1146 = vmatmul.mubr.f32.gmra.mxu0 %v978
    %v1147 = vpop.f32.mrf.mxu0
    %v1148 = vadd.f32 0.0, %v1147
    %v1149 = vpop.f32.mrf.mxu0
    %1150 = vmatprep.mubr.f32.mxu0 0.0
    %1151 = vmatmul.mubr.f32.gmra.mxu0 %v981
    %v1152 = vpop.f32.mrf.mxu0
    %v1153 = vadd.f32 0.0, %v1152
    %v1154 = vpop.f32.mrf.mxu0
    %1155 = vmatprep.mubr.f32.mxu0 0.0
    %1156 = vmatmul.mubr.f32.gmra.mxu0 %v984
    %v1157 = vpop.f32.mrf.mxu0
    %v1158 = vadd.f32 0.0, %v1157
    %v1159 = vpop.f32.mrf.mxu0
    %1160 = vmatprep.mubr.f32.mxu0 0.0
    %1161 = vmatmul.mubr.f32.gmra.mxu0 %v987
    %v1162 = vpop.f32.mrf.mxu0
    %v1163 = vadd.f32 0.0, %v1162
    %v1164 = vpop.f32.mrf.mxu0
    %1165 = vmatprep.mubr.f32.mxu0 0.0
    %1166 = vmatmul.mubr.f32.gmra.mxu0 %v990
    %v1167 = vpop.f32.mrf.mxu0
    %v1168 = vadd.f32 0.0, %v1167
    %v1169 = vpop.f32.mrf.mxu0
    %1170 = vmatprep.mubr.f32.mxu0 0.0
    %1171 = vmatmul.mubr.f32.gmra.mxu0 %v993
    %v1172 = vpop.f32.mrf.mxu0
    %v1173 = vadd.f32 0.0, %v1172
    %v1174 = vpop.f32.mrf.mxu0
    %1175 = vmatprep.mubr.f32.mxu0 0.0
    %1176 = vmatmul.mubr.f32.gmra.mxu0 %v996
    %v1177 = vpop.f32.mrf.mxu0
    %v1178 = vadd.f32 0.0, %v1177
    %v1179 = vpop.f32.mrf.mxu0
    %1180 = vmatprep.mubr.f32.mxu0 0.0
    %1181 = vmatmul.mubr.f32.gmra.mxu0 %v999
    %v1182 = vpop.f32.mrf.mxu0
    %v1183 = vadd.f32 0.0, %v1182
    %v1184 = vpop.f32.mrf.mxu0
    %1185 = vmatprep.mubr.f32.mxu0 0.0
    %1186 = vmatmul.mubr.f32.gmra.mxu0 %v1002
    %v1187 = vpop.f32.mrf.mxu0
    %v1188 = vadd.f32 0.0, %v1187
    %v1189 = vpop.f32.mrf.mxu0
    %1190 = vmatprep.mubr.f32.mxu0 0.0
    %1191 = vmatmul.mubr.f32.gmra.mxu0 %v1005
    %v1192 = vpop.f32.mrf.mxu0
    %v1193 = vadd.f32 0.0, %v1192
    %v1194 = vpop.f32.mrf.mxu0
    %1195 = vmatprep.mubr.f32.mxu0 0.0
    %1196 = vmatmul.mubr.f32.gmra.mxu0 %v1008
    %v1197 = vpop.f32.mrf.mxu0
    %v1198 = vadd.f32 0.0, %v1197
    %v1199 = vpop.f32.mrf.mxu0
    %1200 = vmatprep.mubr.f32.mxu0 0.0
    %1201 = vmatmul.mubr.f32.gmra.mxu0 %v1011
    %v1202 = vpop.f32.mrf.mxu0
    %v1203 = vadd.f32 0.0, %v1202
    %v1204 = vpop.f32.mrf.mxu0
    %1205 = vmatprep.mubr.f32.mxu0 0.0
    %1206 = vmatmul.mubr.f32.gmra.mxu0 %v1014
    %v1207 = vpop.f32.mrf.mxu0
    %v1208 = vadd.f32 0.0, %v1207
    %v1209 = vpop.f32.mrf.mxu0
    %1210 = vmatprep.mubr.f32.mxu0 0.0
    %1211 = vmatmul.mubr.f32.gmra.mxu0 %v1017
    %v1212 = vpop.f32.mrf.mxu0
    %v1213 = vadd.f32 0.0, %v1212
    %v1214 = vpop.f32.mrf.mxu0
    %1215 = vmatprep.mubr.f32.mxu0 0.0
    %1216 = vmatmul.mubr.f32.gmra.mxu0 %v1020
    %v1217 = vpop.f32.mrf.mxu0
    %v1218 = vadd.f32 0.0, %v1217
    %v1219 = vpop.f32.mrf.mxu0
    %1220 = vmatprep.mubr.f32.mxu0 0.0
    %1221 = vmatmul.mubr.f32.gmra.mxu0 %v1023
    %v1222 = vpop.f32.mrf.mxu0
    %v1223 = vadd.f32 0.0, %v1222
    %v1224 = vpop.f32.mrf.mxu0
    %1225 = vmatprep.mubr.f32.mxu0 0.0
    %1226 = vmatmul.mubr.f32.gmra.mxu0 %v1026
    %v1227 = vpop.f32.mrf.mxu0
    %v1228 = vadd.f32 0.0, %v1227
    %v1229 = vpop.f32.mrf.mxu0
    %1230 = vmatprep.mubr.f32.mxu0 0.0
    %1231 = vmatmul.mubr.f32.gmra.mxu0 %v1029
    %v1232 = vpop.f32.mrf.mxu0
    %v1233 = vadd.f32 0.0, %v1232
    %v1234 = vpop.f32.mrf.mxu0
    %1235 = vmatprep.mubr.f32.mxu0 0.0
    %1236 = vmatmul.mubr.f32.gmra.mxu0 %v1032
    %v1237 = vpop.f32.mrf.mxu0
    %v1238 = vadd.f32 0.0, %v1237
    %v1239 = vpop.f32.mrf.mxu0
    %1240 = vmatprep.mubr.f32.mxu0 0.0
    %1241 = vmatmul.mubr.f32.gmra.mxu0 %v1035
    %v1242 = vpop.f32.mrf.mxu0
    %v1243 = vadd.f32 0.0, %v1242
    %v1244 = vpop.f32.mrf.mxu0
    %1245 = vmatprep.mubr.f32.mxu0 0.0
    %1246 = vmatmul.mubr.f32.gmra.mxu0 %v1038
    %v1247 = vpop.f32.mrf.mxu0
    %v1248 = vadd.f32 0.0, %v1247
    %v1249 = vpop.f32.mrf.mxu0
    %1250 = vmatprep.mubr.f32.mxu0 0.0
    %1251 = vmatmul.mubr.f32.gmra.mxu0 %v1041
    %v1252 = vpop.f32.mrf.mxu0
    %v1253 = vadd.f32 0.0, %v1252
    %v1254 = vpop.f32.mrf.mxu0
    %1255 = vmatprep.mubr.f32.mxu0 0.0
    %1256 = vmatmul.mubr.f32.gmra.mxu0 %v1044
    %v1257 = vpop.f32.mrf.mxu0
    %v1258 = vadd.f32 0.0, %v1257
    %v1259 = vpop.f32.mrf.mxu0
    %1260 = vmatprep.mubr.f32.mxu0 0.0
    %1261 = vmatmul.mubr.f32.gmra.mxu0 %v1047
    %v1262 = vpop.f32.mrf.mxu0
    %v1263 = vadd.f32 0.0, %v1262
    %v1264 = vpop.f32.mrf.mxu0
    %1265 = vmatprep.mubr.f32.mxu0 0.0
    %1266 = vmatmul.mubr.f32.gmra.mxu0 %v1050
    %v1267 = vpop.f32.mrf.mxu0
    %v1268 = vadd.f32 0.0, %v1267
    %v1269 = vpop.f32.mrf.mxu0
    %1270 = vmatprep.mubr.f32.mxu0 0.0
    %1271 = vmatmul.mubr.f32.gmra.mxu0 %v1053
    %v1272 = vpop.f32.mrf.mxu0
    %v1273 = vadd.f32 0.0, %v1272
    %v1274 = vpop.f32.mrf.mxu0
    %1275 = vmatprep.mubr.f32.mxu0 0.0
    %1276 = vmatmul.mubr.f32.gmra.mxu0 %v1056
    %v1277 = vpop.f32.mrf.mxu0
    %v1278 = vadd.f32 0.0, %v1277
    %v1279 = vpop.f32.mrf.mxu0
    %1280 = vmatprep.mubr.f32.mxu0 0.0
    %1281 = vmatmul.mubr.f32.gmra.mxu0 %v1059
    %v1282 = vpop.f32.mrf.mxu0
    %v1283 = vadd.f32 0.0, %v1282
    %v1284 = vpop.f32.mrf.mxu0
    %1285 = vdwg.mxu0
    %v1286 = vadd.f32 %v932, %v1128
    %v1287 = vadd.f32 %v933, %v1133
    %v1288 = vadd.f32 %v934, %v1138
    %v1289 = vadd.f32 %v935, %v1143
    %v1290 = vadd.f32 %v936, %v1148
    %v1291 = vadd.f32 %v937, %v1153
    %v1292 = vadd.f32 %v938, %v1158
    %v1293 = vadd.f32 %v939, %v1163
    %v1294 = vadd.f32 %v940, %v1168
    %v1295 = vadd.f32 %v941, %v1173
    %v1296 = vadd.f32 %v942, %v1178
    %v1297 = vadd.f32 %v943, %v1183
    %v1298 = vadd.f32 %v944, %v1188
    %v1299 = vadd.f32 %v945, %v1193
    %v1300 = vadd.f32 %v946, %v1198
    %v1301 = vadd.f32 %v947, %v1203
    %v1302 = vadd.f32 %v948, %v1208
    %v1303 = vadd.f32 %v949, %v1213
    %v1304 = vadd.f32 %v950, %v1218
    %v1305 = vadd.f32 %v951, %v1223
    %v1306 = vadd.f32 %v952, %v1228
    %v1307 = vadd.f32 %v953, %v1233
    %v1308 = vadd.f32 %v954, %v1238
    %v1309 = vadd.f32 %v955, %v1243
    %v1310 = vadd.f32 %v956, %v1248
    %v1311 = vadd.f32 %v957, %v1253
    %v1312 = vadd.f32 %v958, %v1258
    %v1313 = vadd.f32 %v959, %v1263
    %v1314 = vadd.f32 %v960, %v1268
    %v1315 = vadd.f32 %v961, %v1273
    %v1316 = vadd.f32 %v962, %v1278
    %v1317 = vadd.f32 %v963, %v1283
    %v1318 = vtanh.pop %v1286
    %v1319 = vtanh.pop %v1287
    %v1320 = vtanh.pop %v1288
    %v1321 = vtanh.pop %v1289
    %v1322 = vtanh.pop %v1290
    %v1323 = vtanh.pop %v1291
    %v1324 = vtanh.pop %v1292
    %v1325 = vtanh.pop %v1293
    %v1326 = vtanh.pop %v1294
    %v1327 = vtanh.pop %v1295
    %v1328 = vtanh.pop %v1296
    %v1329 = vtanh.pop %v1297
    %v1330 = vtanh.pop %v1298
    %v1331 = vtanh.pop %v1299
    %v1332 = vtanh.pop %v1300
    %v1333 = vtanh.pop %v1301
    %v1334 = vtanh.pop %v1302
    %v1335 = vtanh.pop %v1303
    %v1336 = vtanh.pop %v1304
    %v1337 = vtanh.pop %v1305
    %v1338 = vtanh.pop %v1306
    %v1339 = vtanh.pop %v1307
    %v1340 = vtanh.pop %v1308
    %v1341 = vtanh.pop %v1309
    %v1342 = vtanh.pop %v1310
    %v1343 = vtanh.pop %v1311
    %v1344 = vtanh.pop %v1312
    %v1345 = vtanh.pop %v1313
    %v1346 = vtanh.pop %v1314
    %v1347 = vtanh.pop %v1315
    %v1348 = vtanh.pop %v1316
    %v1349 = vtanh.pop %v1317
    %v1350 = vmul.f32 %v1318, 0.5
    %v1351 = vmul.f32 %v1319, 0.5
    %v1352 = vmul.f32 %v1320, 0.5
    %v1353 = vmul.f32 %v1321, 0.5
    %v1354 = vmul.f32 %v1322, 0.5
    %v1355 = vmul.f32 %v1323, 0.5
    %v1356 = vmul.f32 %v1324, 0.5
    %v1357 = vmul.f32 %v1325, 0.5
    %v1358 = vadd.f32 %v1350, 0.5
    %v1359 = vadd.f32 %v1351, 0.5
    %v1360 = vadd.f32 %v1352, 0.5
    %v1361 = vadd.f32 %v1353, 0.5
    %v1362 = vadd.f32 %v1354, 0.5
    %v1363 = vadd.f32 %v1355, 0.5
    %v1364 = vadd.f32 %v1356, 0.5
    %v1365 = vadd.f32 %v1357, 0.5
    %v1366 = vmul.f32 %v1326, 0.5
    %v1367 = vmul.f32 %v1327, 0.5
    %v1368 = vmul.f32 %v1328, 0.5
    %v1369 = vmul.f32 %v1329, 0.5
    %v1370 = vmul.f32 %v1330, 0.5
    %v1371 = vmul.f32 %v1331, 0.5
    %v1372 = vmul.f32 %v1332, 0.5
    %v1373 = vmul.f32 %v1333, 0.5
    %v1374 = vadd.f32 %v1366, 0.5
    %v1375 = vadd.f32 %v1367, 0.5
    %v1376 = vadd.f32 %v1368, 0.5
    %v1377 = vadd.f32 %v1369, 0.5
    %v1378 = vadd.f32 %v1370, 0.5
    %v1379 = vadd.f32 %v1371, 0.5
    %v1380 = vadd.f32 %v1372, 0.5
    %v1381 = vadd.f32 %v1373, 0.5
    %v1382 = vmul.f32 %v1342, 0.5
    %v1383 = vmul.f32 %v1343, 0.5
    %v1384 = vmul.f32 %v1344, 0.5
    %v1385 = vmul.f32 %v1345, 0.5
    %v1386 = vmul.f32 %v1346, 0.5
    %v1387 = vmul.f32 %v1347, 0.5
    %v1388 = vmul.f32 %v1348, 0.5
    %v1389 = vmul.f32 %v1349, 0.5
    %v1390 = vadd.f32 %v1382, 0.5
    %v1391 = vadd.f32 %v1383, 0.5
    %v1392 = vadd.f32 %v1384, 0.5
    %v1393 = vadd.f32 %v1385, 0.5
    %v1394 = vadd.f32 %v1386, 0.5
    %v1395 = vadd.f32 %v1387, 0.5
    %v1396 = vadd.f32 %v1388, 0.5
    %v1397 = vadd.f32 %v1389, 0.5
    %v1398 = vmul.f32 %v1374, 0.0
    %v1399 = vmul.f32 %v1375, 0.0
    %v1400 = vmul.f32 %v1376, 0.0
    %v1401 = vmul.f32 %v1377, 0.0
    %v1402 = vmul.f32 %v1378, 0.0
    %v1403 = vmul.f32 %v1379, 0.0
    %v1404 = vmul.f32 %v1380, 0.0
    %v1405 = vmul.f32 %v1381, 0.0
    %v1406 = vmul.f32 %v1358, %v1334
    %v1407 = vmul.f32 %v1359, %v1335
    %v1408 = vmul.f32 %v1360, %v1336
    %v1409 = vmul.f32 %v1361, %v1337
    %v1410 = vmul.f32 %v1362, %v1338
    %v1411 = vmul.f32 %v1363, %v1339
    %v1412 = vmul.f32 %v1364, %v1340
    %v1413 = vmul.f32 %v1365, %v1341
    %v1414 = vadd.f32 %v1398, %v1406
    %v1415 = vadd.f32 %v1399, %v1407
    %v1416 = vadd.f32 %v1400, %v1408
    %v1417 = vadd.f32 %v1401, %v1409
    %v1418 = vadd.f32 %v1402, %v1410
    %v1419 = vadd.f32 %v1403, %v1411
    %v1420 = vadd.f32 %v1404, %v1412
    %v1421 = vadd.f32 %v1405, %v1413
    %v1422 = vtanh.pop %v1414
    %v1423 = vtanh.pop %v1415
    %v1424 = vtanh.pop %v1416
    %v1425 = vtanh.pop %v1417
    %v1426 = vtanh.pop %v1418
    %v1427 = vtanh.pop %v1419
    %v1428 = vtanh.pop %v1420
    %v1429 = vtanh.pop %v1421
    %v1430 = vmul.f32 %v1390, %v1422
    %v1431 = vmul.f32 %v1391, %v1423
    %v1432 = vmul.f32 %v1392, %v1424
    %v1433 = vmul.f32 %v1393, %v1425
    %v1434 = vmul.f32 %v1394, %v1426
    %v1435 = vmul.f32 %v1395, %v1427
    %v1436 = vmul.f32 %v1396, %v1428
    %v1437 = vmul.f32 %v1397, %v1429
    %s1438 = scalar_lea.vmem %s0, 2
    %v1439 = vld [vmem:[%s1438] sm:$0x3]
    %v1440 = vlaneseq
    %v1441 = vshrl.u32 %v1440, 7
    %v1442 = vsub.s32 0, %v1441
    %v1443 = vrot.slane %v1439, %v1442
    %v1444 = vmul.f32 %v383, %v1443
    %v1445 = vmul.f32 %v388, %v1443
    %v1446 = vmul.f32 %v393, %v1443
    %v1447 = vmul.f32 %v398, %v1443
    %v1448 = vmul.f32 %v403, %v1443
    %v1449 = vmul.f32 %v408, %v1443
    %v1450 = vmul.f32 %v413, %v1443
    %v1451 = vmul.f32 %v418, %v1443
    %v1452 = vmul.f32 %v423, %v1443
    %v1453 = vmul.f32 %v428, %v1443
    %v1454 = vmul.f32 %v433, %v1443
    %v1455 = vmul.f32 %v438, %v1443
    %v1456 = vmul.f32 %v443, %v1443
    %v1457 = vmul.f32 %v448, %v1443
    %v1458 = vmul.f32 %v453, %v1443
    %v1459 = vmul.f32 %v458, %v1443
    %v1460 = vmul.f32 %v463, %v1443
    %v1461 = vmul.f32 %v468, %v1443
    %v1462 = vmul.f32 %v473, %v1443
    %v1463 = vmul.f32 %v478, %v1443
    %v1464 = vmul.f32 %v483, %v1443
    %v1465 = vmul.f32 %v488, %v1443
    %v1466 = vmul.f32 %v493, %v1443
    %v1467 = vmul.f32 %v498, %v1443
    %v1468 = vmul.f32 %v503, %v1443
    %v1469 = vmul.f32 %v508, %v1443
    %v1470 = vmul.f32 %v513, %v1443
    %v1471 = vmul.f32 %v518, %v1443
    %v1472 = vmul.f32 %v523, %v1443
    %v1473 = vmul.f32 %v528, %v1443
    %v1474 = vmul.f32 %v533, %v1443
    %v1475 = vmul.f32 %v538, %v1443
    %v1476 = vadd.f32 %v579, %v1444
    %v1477 = vadd.f32 %v584, %v1445
    %v1478 = vadd.f32 %v589, %v1446
    %v1479 = vadd.f32 %v594, %v1447
    %v1480 = vadd.f32 %v599, %v1448
    %v1481 = vadd.f32 %v604, %v1449
    %v1482 = vadd.f32 %v609, %v1450
    %v1483 = vadd.f32 %v614, %v1451
    %v1484 = vadd.f32 %v619, %v1452
    %v1485 = vadd.f32 %v624, %v1453
    %v1486 = vadd.f32 %v629, %v1454
    %v1487 = vadd.f32 %v634, %v1455
    %v1488 = vadd.f32 %v639, %v1456
    %v1489 = vadd.f32 %v644, %v1457
    %v1490 = vadd.f32 %v649, %v1458
    %v1491 = vadd.f32 %v654, %v1459
    %v1492 = vadd.f32 %v659, %v1460
    %v1493 = vadd.f32 %v664, %v1461
    %v1494 = vadd.f32 %v669, %v1462
    %v1495 = vadd.f32 %v674, %v1463
    %v1496 = vadd.f32 %v679, %v1464
    %v1497 = vadd.f32 %v684, %v1465
    %v1498 = vadd.f32 %v689, %v1466
    %v1499 = vadd.f32 %v694, %v1467
    %v1500 = vadd.f32 %v699, %v1468
    %v1501 = vadd.f32 %v704, %v1469
    %v1502 = vadd.f32 %v709, %v1470
    %v1503 = vadd.f32 %v714, %v1471
    %v1504 = vadd.f32 %v719, %v1472
    %v1505 = vadd.f32 %v724, %v1473
    %v1506 = vadd.f32 %v729, %v1474
    %v1507 = vadd.f32 %v734, %v1475
    %v1508 = vlaneseq
    %v1509 = vshrl.u32 %v1508, 7
    %v1510 = vsub.s32 1, %v1509
    %v1511 = vrot.slane %v1439, %v1510
    %v1512 = vmul.f32 %v770, %v1511
    %v1513 = vmul.f32 %v774, %v1511
    %v1514 = vmul.f32 %v778, %v1511
    %v1515 = vmul.f32 %v782, %v1511
    %v1516 = vmul.f32 %v786, %v1511
    %v1517 = vmul.f32 %v790, %v1511
    %v1518 = vmul.f32 %v794, %v1511
    %v1519 = vmul.f32 %v798, %v1511
    %v1520 = vmul.f32 %v802, %v1511
    %v1521 = vmul.f32 %v806, %v1511
    %v1522 = vmul.f32 %v810, %v1511
    %v1523 = vmul.f32 %v814, %v1511
    %v1524 = vmul.f32 %v818, %v1511
    %v1525 = vmul.f32 %v822, %v1511
    %v1526 = vmul.f32 %v826, %v1511
    %v1527 = vmul.f32 %v830, %v1511
    %v1528 = vmul.f32 %v834, %v1511
    %v1529 = vmul.f32 %v838, %v1511
    %v1530 = vmul.f32 %v842, %v1511
    %v1531 = vmul.f32 %v846, %v1511
    %v1532 = vmul.f32 %v850, %v1511
    %v1533 = vmul.f32 %v854, %v1511
    %v1534 = vmul.f32 %v858, %v1511
    %v1535 = vmul.f32 %v862, %v1511
    %v1536 = vmul.f32 %v866, %v1511
    %v1537 = vmul.f32 %v870, %v1511
    %v1538 = vmul.f32 %v874, %v1511
    %v1539 = vmul.f32 %v878, %v1511
    %v1540 = vmul.f32 %v882, %v1511
    %v1541 = vmul.f32 %v886, %v1511
    %v1542 = vmul.f32 %v890, %v1511
    %v1543 = vmul.f32 %v894, %v1511
    %v1544 = vadd.f32 %v1476, %v1512
    %v1545 = vadd.f32 %v1477, %v1513
    %v1546 = vadd.f32 %v1478, %v1514
    %v1547 = vadd.f32 %v1479, %v1515
    %v1548 = vadd.f32 %v1480, %v1516
    %v1549 = vadd.f32 %v1481, %v1517
    %v1550 = vadd.f32 %v1482, %v1518
    %v1551 = vadd.f32 %v1483, %v1519
    %v1552 = vadd.f32 %v1484, %v1520
    %v1553 = vadd.f32 %v1485, %v1521
    %v1554 = vadd.f32 %v1486, %v1522
    %v1555 = vadd.f32 %v1487, %v1523
    %v1556 = vadd.f32 %v1488, %v1524
    %v1557 = vadd.f32 %v1489, %v1525
    %v1558 = vadd.f32 %v1490, %v1526
    %v1559 = vadd.f32 %v1491, %v1527
    %v1560 = vadd.f32 %v1492, %v1528
    %v1561 = vadd.f32 %v1493, %v1529
    %v1562 = vadd.f32 %v1494, %v1530
    %v1563 = vadd.f32 %v1495, %v1531
    %v1564 = vadd.f32 %v1496, %v1532
    %v1565 = vadd.f32 %v1497, %v1533
    %v1566 = vadd.f32 %v1498, %v1534
    %v1567 = vadd.f32 %v1499, %v1535
    %v1568 = vadd.f32 %v1500, %v1536
    %v1569 = vadd.f32 %v1501, %v1537
    %v1570 = vadd.f32 %v1502, %v1538
    %v1571 = vadd.f32 %v1503, %v1539
    %v1572 = vadd.f32 %v1504, %v1540
    %v1573 = vadd.f32 %v1505, %v1541
    %v1574 = vadd.f32 %v1506, %v1542
    %v1575 = vadd.f32 %v1507, %v1543
    %1576 = vmatprep.subr.mxu0 0.0
    %1577 = vmatpush1.msra.mxu0 0.0
    %1578 = vmatprep.subr.mxu0 0.0
    %1579 = vmatpush1.msra.mxu0 0.0
    %1580 = vmatprep.subr.mxu0 0.0
    %1581 = vmatpush1.msra.mxu0 0.0
    %1582 = vmatprep.subr.mxu0 0.0
    %1583 = vmatpush1.msra.mxu0 0.0
    %1584 = vmatprep.subr.mxu0 0.0
    %1585 = vmatpush1.msra.mxu0 0.0
    %1586 = vmatprep.subr.mxu0 0.0
    %1587 = vmatpush1.msra.mxu0 0.0
    %1588 = vmatprep.subr.mxu0 0.0
    %1589 = vmatpush1.msra.mxu0 0.0
    %1590 = vmatprep.subr.mxu0 0.0
    %1591 = vmatpush1.msra.mxu0 0.0
    %1592 = vmatprep.subr.mxu0 0.0
    %1593 = vmatpush1.msra.mxu0 %v1437
    %1594 = vmatprep.subr.mxu0 0.0
    %1595 = vmatpush1.msra.mxu0 %v1436
    %1596 = vmatprep.subr.mxu0 0.0
    %1597 = vmatpush1.msra.mxu0 %v1435
    %1598 = vmatprep.subr.mxu0 0.0
    %1599 = vmatpush1.msra.mxu0 %v1434
    %1600 = vmatprep.subr.mxu0 0.0
    %1601 = vmatpush1.msra.mxu0 %v1433
    %1602 = vmatprep.subr.mxu0 0.0
    %1603 = vmatpush1.msra.mxu0 %v1432
    %1604 = vmatprep.subr.mxu0 0.0
    %1605 = vmatpush1.msra.mxu0 %v1431
    %1606 = vmatprep.subr.mxu0 0.0
    %1607 = vmatpush1.msra.mxu0 %v1430
    %1608 = vmatprep.subr.mxu0 0.0
    %1609 = vmatpush2.msra.mxu0 0.0
    %1610 = vmatprep.subr.mxu0 0.0
    %1611 = vmatpush2.msra.mxu0 0.0
    %1612 = vmatprep.subr.mxu0 0.0
    %1613 = vmatpush2.msra.mxu0 0.0
    %1614 = vmatprep.subr.mxu0 0.0
    %1615 = vmatpush2.msra.mxu0 0.0
    %1616 = vmatprep.subr.mxu0 0.0
    %1617 = vmatpush2.msra.mxu0 0.0
    %1618 = vmatprep.subr.mxu0 0.0
    %1619 = vmatpush2.msra.mxu0 0.0
    %1620 = vmatprep.subr.mxu0 0.0
    %1621 = vmatpush2.msra.mxu0 0.0
    %1622 = vmatprep.subr.mxu0 0.0
    %1623 = vmatpush2.msra.mxu0 0.0
    %1624 = vmatprep.subr.mxu0 0.0
    %1625 = vmatpush2.msra.mxu0 0.0
    %1626 = vmatprep.subr.mxu0 0.0
    %1627 = vmatpush2.msra.mxu0 0.0
    %1628 = vmatprep.subr.mxu0 0.0
    %1629 = vmatpush2.msra.mxu0 0.0
    %1630 = vmatprep.subr.mxu0 0.0
    %1631 = vmatpush2.msra.mxu0 0.0
    %1632 = vmatprep.subr.mxu0 0.0
    %1633 = vmatpush2.msra.mxu0 0.0
    %1634 = vmatprep.subr.mxu0 0.0
    %1635 = vmatpush2.msra.mxu0 0.0
    %1636 = vmatprep.subr.mxu0 0.0
    %1637 = vmatpush2.msra.mxu0 0.0
    %1638 = vmatprep.subr.mxu0 0.0
    %1639 = vmatpush2.msra.mxu0 0.0
    %1640 = vmatprep.mubr.f32.mxu0 0.0
    %1641 = vmatmul.mubr.f32.gmra.mxu0 %v966
    %v1642 = vpop.f32.mrf.mxu0
    %v1643 = vadd.f32 0.0, %v1642
    %v1644 = vpop.f32.mrf.mxu0
    %1645 = vmatprep.mubr.f32.mxu0 0.0
    %1646 = vmatmul.mubr.f32.gmra.mxu0 %v969
    %v1647 = vpop.f32.mrf.mxu0
    %v1648 = vadd.f32 0.0, %v1647
    %v1649 = vpop.f32.mrf.mxu0
    %1650 = vmatprep.mubr.f32.mxu0 0.0
    %1651 = vmatmul.mubr.f32.gmra.mxu0 %v972
    %v1652 = vpop.f32.mrf.mxu0
    %v1653 = vadd.f32 0.0, %v1652
    %v1654 = vpop.f32.mrf.mxu0
    %1655 = vmatprep.mubr.f32.mxu0 0.0
    %1656 = vmatmul.mubr.f32.gmra.mxu0 %v975
    %v1657 = vpop.f32.mrf.mxu0
    %v1658 = vadd.f32 0.0, %v1657
    %v1659 = vpop.f32.mrf.mxu0
    %1660 = vmatprep.mubr.f32.mxu0 0.0
    %1661 = vmatmul.mubr.f32.gmra.mxu0 %v978
    %v1662 = vpop.f32.mrf.mxu0
    %v1663 = vadd.f32 0.0, %v1662
    %v1664 = vpop.f32.mrf.mxu0
    %1665 = vmatprep.mubr.f32.mxu0 0.0
    %1666 = vmatmul.mubr.f32.gmra.mxu0 %v981
    %v1667 = vpop.f32.mrf.mxu0
    %v1668 = vadd.f32 0.0, %v1667
    %v1669 = vpop.f32.mrf.mxu0
    %1670 = vmatprep.mubr.f32.mxu0 0.0
    %1671 = vmatmul.mubr.f32.gmra.mxu0 %v984
    %v1672 = vpop.f32.mrf.mxu0
    %v1673 = vadd.f32 0.0, %v1672
    %v1674 = vpop.f32.mrf.mxu0
    %1675 = vmatprep.mubr.f32.mxu0 0.0
    %1676 = vmatmul.mubr.f32.gmra.mxu0 %v987
    %v1677 = vpop.f32.mrf.mxu0
    %v1678 = vadd.f32 0.0, %v1677
    %v1679 = vpop.f32.mrf.mxu0
    %1680 = vmatprep.mubr.f32.mxu0 0.0
    %1681 = vmatmul.mubr.f32.gmra.mxu0 %v990
    %v1682 = vpop.f32.mrf.mxu0
    %v1683 = vadd.f32 0.0, %v1682
    %v1684 = vpop.f32.mrf.mxu0
    %1685 = vmatprep.mubr.f32.mxu0 0.0
    %1686 = vmatmul.mubr.f32.gmra.mxu0 %v993
    %v1687 = vpop.f32.mrf.mxu0
    %v1688 = vadd.f32 0.0, %v1687
    %v1689 = vpop.f32.mrf.mxu0
    %1690 = vmatprep.mubr.f32.mxu0 0.0
    %1691 = vmatmul.mubr.f32.gmra.mxu0 %v996
    %v1692 = vpop.f32.mrf.mxu0
    %v1693 = vadd.f32 0.0, %v1692
    %v1694 = vpop.f32.mrf.mxu0
    %1695 = vmatprep.mubr.f32.mxu0 0.0
    %1696 = vmatmul.mubr.f32.gmra.mxu0 %v999
    %v1697 = vpop.f32.mrf.mxu0
    %v1698 = vadd.f32 0.0, %v1697
    %v1699 = vpop.f32.mrf.mxu0
    %1700 = vmatprep.mubr.f32.mxu0 0.0
    %1701 = vmatmul.mubr.f32.gmra.mxu0 %v1002
    %v1702 = vpop.f32.mrf.mxu0
    %v1703 = vadd.f32 0.0, %v1702
    %v1704 = vpop.f32.mrf.mxu0
    %1705 = vmatprep.mubr.f32.mxu0 0.0
    %1706 = vmatmul.mubr.f32.gmra.mxu0 %v1005
    %v1707 = vpop.f32.mrf.mxu0
    %v1708 = vadd.f32 0.0, %v1707
    %v1709 = vpop.f32.mrf.mxu0
    %1710 = vmatprep.mubr.f32.mxu0 0.0
    %1711 = vmatmul.mubr.f32.gmra.mxu0 %v1008
    %v1712 = vpop.f32.mrf.mxu0
    %v1713 = vadd.f32 0.0, %v1712
    %v1714 = vpop.f32.mrf.mxu0
    %1715 = vmatprep.mubr.f32.mxu0 0.0
    %1716 = vmatmul.mubr.f32.gmra.mxu0 %v1011
    %v1717 = vpop.f32.mrf.mxu0
    %v1718 = vadd.f32 0.0, %v1717
    %v1719 = vpop.f32.mrf.mxu0
    %1720 = vmatprep.mubr.f32.mxu0 0.0
    %1721 = vmatmul.mubr.f32.gmra.mxu0 %v1014
    %v1722 = vpop.f32.mrf.mxu0
    %v1723 = vadd.f32 0.0, %v1722
    %v1724 = vpop.f32.mrf.mxu0
    %1725 = vmatprep.mubr.f32.mxu0 0.0
    %1726 = vmatmul.mubr.f32.gmra.mxu0 %v1017
    %v1727 = vpop.f32.mrf.mxu0
    %v1728 = vadd.f32 0.0, %v1727
    %v1729 = vpop.f32.mrf.mxu0
    %1730 = vmatprep.mubr.f32.mxu0 0.0
    %1731 = vmatmul.mubr.f32.gmra.mxu0 %v1020
    %v1732 = vpop.f32.mrf.mxu0
    %v1733 = vadd.f32 0.0, %v1732
    %v1734 = vpop.f32.mrf.mxu0
    %1735 = vmatprep.mubr.f32.mxu0 0.0
    %1736 = vmatmul.mubr.f32.gmra.mxu0 %v1023
    %v1737 = vpop.f32.mrf.mxu0
    %v1738 = vadd.f32 0.0, %v1737
    %v1739 = vpop.f32.mrf.mxu0
    %1740 = vmatprep.mubr.f32.mxu0 0.0
    %1741 = vmatmul.mubr.f32.gmra.mxu0 %v1026
    %v1742 = vpop.f32.mrf.mxu0
    %v1743 = vadd.f32 0.0, %v1742
    %v1744 = vpop.f32.mrf.mxu0
    %1745 = vmatprep.mubr.f32.mxu0 0.0
    %1746 = vmatmul.mubr.f32.gmra.mxu0 %v1029
    %v1747 = vpop.f32.mrf.mxu0
    %v1748 = vadd.f32 0.0, %v1747
    %v1749 = vpop.f32.mrf.mxu0
    %1750 = vmatprep.mubr.f32.mxu0 0.0
    %1751 = vmatmul.mubr.f32.gmra.mxu0 %v1032
    %v1752 = vpop.f32.mrf.mxu0
    %v1753 = vadd.f32 0.0, %v1752
    %v1754 = vpop.f32.mrf.mxu0
    %1755 = vmatprep.mubr.f32.mxu0 0.0
    %1756 = vmatmul.mubr.f32.gmra.mxu0 %v1035
    %v1757 = vpop.f32.mrf.mxu0
    %v1758 = vadd.f32 0.0, %v1757
    %v1759 = vpop.f32.mrf.mxu0
    %1760 = vmatprep.mubr.f32.mxu0 0.0
    %1761 = vmatmul.mubr.f32.gmra.mxu0 %v1038
    %v1762 = vpop.f32.mrf.mxu0
    %v1763 = vadd.f32 0.0, %v1762
    %v1764 = vpop.f32.mrf.mxu0
    %1765 = vmatprep.mubr.f32.mxu0 0.0
    %1766 = vmatmul.mubr.f32.gmra.mxu0 %v1041
    %v1767 = vpop.f32.mrf.mxu0
    %v1768 = vadd.f32 0.0, %v1767
    %v1769 = vpop.f32.mrf.mxu0
    %1770 = vmatprep.mubr.f32.mxu0 0.0
    %1771 = vmatmul.mubr.f32.gmra.mxu0 %v1044
    %v1772 = vpop.f32.mrf.mxu0
    %v1773 = vadd.f32 0.0, %v1772
    %v1774 = vpop.f32.mrf.mxu0
    %1775 = vmatprep.mubr.f32.mxu0 0.0
    %1776 = vmatmul.mubr.f32.gmra.mxu0 %v1047
    %v1777 = vpop.f32.mrf.mxu0
    %v1778 = vadd.f32 0.0, %v1777
    %v1779 = vpop.f32.mrf.mxu0
    %1780 = vmatprep.mubr.f32.mxu0 0.0
    %1781 = vmatmul.mubr.f32.gmra.mxu0 %v1050
    %v1782 = vpop.f32.mrf.mxu0
    %v1783 = vadd.f32 0.0, %v1782
    %v1784 = vpop.f32.mrf.mxu0
    %1785 = vmatprep.mubr.f32.mxu0 0.0
    %1786 = vmatmul.mubr.f32.gmra.mxu0 %v1053
    %v1787 = vpop.f32.mrf.mxu0
    %v1788 = vadd.f32 0.0, %v1787
    %v1789 = vpop.f32.mrf.mxu0
    %1790 = vmatprep.mubr.f32.mxu0 0.0
    %1791 = vmatmul.mubr.f32.gmra.mxu0 %v1056
    %v1792 = vpop.f32.mrf.mxu0
    %v1793 = vadd.f32 0.0, %v1792
    %v1794 = vpop.f32.mrf.mxu0
    %1795 = vmatprep.mubr.f32.mxu0 0.0
    %1796 = vmatmul.mubr.f32.gmra.mxu0 %v1059
    %v1797 = vpop.f32.mrf.mxu0
    %v1798 = vadd.f32 0.0, %v1797
    %v1799 = vpop.f32.mrf.mxu0
    %1800 = vdwg.mxu0
    %v1801 = vadd.f32 %v1544, %v1643
    %v1802 = vadd.f32 %v1545, %v1648
    %v1803 = vadd.f32 %v1546, %v1653
    %v1804 = vadd.f32 %v1547, %v1658
    %v1805 = vadd.f32 %v1548, %v1663
    %v1806 = vadd.f32 %v1549, %v1668
    %v1807 = vadd.f32 %v1550, %v1673
    %v1808 = vadd.f32 %v1551, %v1678
    %v1809 = vadd.f32 %v1552, %v1683
    %v1810 = vadd.f32 %v1553, %v1688
    %v1811 = vadd.f32 %v1554, %v1693
    %v1812 = vadd.f32 %v1555, %v1698
    %v1813 = vadd.f32 %v1556, %v1703
    %v1814 = vadd.f32 %v1557, %v1708
    %v1815 = vadd.f32 %v1558, %v1713
    %v1816 = vadd.f32 %v1559, %v1718
    %v1817 = vadd.f32 %v1560, %v1723
    %v1818 = vadd.f32 %v1561, %v1728
    %v1819 = vadd.f32 %v1562, %v1733
    %v1820 = vadd.f32 %v1563, %v1738
    %v1821 = vadd.f32 %v1564, %v1743
    %v1822 = vadd.f32 %v1565, %v1748
    %v1823 = vadd.f32 %v1566, %v1753
    %v1824 = vadd.f32 %v1567, %v1758
    %v1825 = vadd.f32 %v1568, %v1763
    %v1826 = vadd.f32 %v1569, %v1768
    %v1827 = vadd.f32 %v1570, %v1773
    %v1828 = vadd.f32 %v1571, %v1778
    %v1829 = vadd.f32 %v1572, %v1783
    %v1830 = vadd.f32 %v1573, %v1788
    %v1831 = vadd.f32 %v1574, %v1793
    %v1832 = vadd.f32 %v1575, %v1798
    %v1833 = vtanh.pop %v1801
    %v1834 = vtanh.pop %v1802
    %v1835 = vtanh.pop %v1803
    %v1836 = vtanh.pop %v1804
    %v1837 = vtanh.pop %v1805
    %v1838 = vtanh.pop %v1806
    %v1839 = vtanh.pop %v1807
    %v1840 = vtanh.pop %v1808
    %v1841 = vtanh.pop %v1809
    %v1842 = vtanh.pop %v1810
    %v1843 = vtanh.pop %v1811
    %v1844 = vtanh.pop %v1812
    %v1845 = vtanh.pop %v1813
    %v1846 = vtanh.pop %v1814
    %v1847 = vtanh.pop %v1815
    %v1848 = vtanh.pop %v1816
    %v1849 = vtanh.pop %v1817
    %v1850 = vtanh.pop %v1818
    %v1851 = vtanh.pop %v1819
    %v1852 = vtanh.pop %v1820
    %v1853 = vtanh.pop %v1821
    %v1854 = vtanh.pop %v1822
    %v1855 = vtanh.pop %v1823
    %v1856 = vtanh.pop %v1824
    %v1857 = vtanh.pop %v1825
    %v1858 = vtanh.pop %v1826
    %v1859 = vtanh.pop %v1827
    %v1860 = vtanh.pop %v1828
    %v1861 = vtanh.pop %v1829
    %v1862 = vtanh.pop %v1830
    %v1863 = vtanh.pop %v1831
    %v1864 = vtanh.pop %v1832
    %v1865 = vmul.f32 %v1833, 0.5
    %v1866 = vmul.f32 %v1834, 0.5
    %v1867 = vmul.f32 %v1835, 0.5
    %v1868 = vmul.f32 %v1836, 0.5
    %v1869 = vmul.f32 %v1837, 0.5
    %v1870 = vmul.f32 %v1838, 0.5
    %v1871 = vmul.f32 %v1839, 0.5
    %v1872 = vmul.f32 %v1840, 0.5
    %v1873 = vadd.f32 %v1865, 0.5
    %v1874 = vadd.f32 %v1866, 0.5
    %v1875 = vadd.f32 %v1867, 0.5
    %v1876 = vadd.f32 %v1868, 0.5
    %v1877 = vadd.f32 %v1869, 0.5
    %v1878 = vadd.f32 %v1870, 0.5
    %v1879 = vadd.f32 %v1871, 0.5
    %v1880 = vadd.f32 %v1872, 0.5
    %v1881 = vmul.f32 %v1841, 0.5
    %v1882 = vmul.f32 %v1842, 0.5
    %v1883 = vmul.f32 %v1843, 0.5
    %v1884 = vmul.f32 %v1844, 0.5
    %v1885 = vmul.f32 %v1845, 0.5
    %v1886 = vmul.f32 %v1846, 0.5
    %v1887 = vmul.f32 %v1847, 0.5
    %v1888 = vmul.f32 %v1848, 0.5
    %v1889 = vadd.f32 %v1881, 0.5
    %v1890 = vadd.f32 %v1882, 0.5
    %v1891 = vadd.f32 %v1883, 0.5
    %v1892 = vadd.f32 %v1884, 0.5
    %v1893 = vadd.f32 %v1885, 0.5
    %v1894 = vadd.f32 %v1886, 0.5
    %v1895 = vadd.f32 %v1887, 0.5
    %v1896 = vadd.f32 %v1888, 0.5
    %v1897 = vmul.f32 %v1857, 0.5
    %v1898 = vmul.f32 %v1858, 0.5
    %v1899 = vmul.f32 %v1859, 0.5
    %v1900 = vmul.f32 %v1860, 0.5
    %v1901 = vmul.f32 %v1861, 0.5
    %v1902 = vmul.f32 %v1862, 0.5
    %v1903 = vmul.f32 %v1863, 0.5
    %v1904 = vmul.f32 %v1864, 0.5
    %v1905 = vadd.f32 %v1897, 0.5
    %v1906 = vadd.f32 %v1898, 0.5
    %v1907 = vadd.f32 %v1899, 0.5
    %v1908 = vadd.f32 %v1900, 0.5
    %v1909 = vadd.f32 %v1901, 0.5
    %v1910 = vadd.f32 %v1902, 0.5
    %v1911 = vadd.f32 %v1903, 0.5
    %v1912 = vadd.f32 %v1904, 0.5
    %v1913 = vmul.f32 %v1889, %v1414
    %v1914 = vmul.f32 %v1890, %v1415
    %v1915 = vmul.f32 %v1891, %v1416
    %v1916 = vmul.f32 %v1892, %v1417
    %v1917 = vmul.f32 %v1893, %v1418
    %v1918 = vmul.f32 %v1894, %v1419
    %v1919 = vmul.f32 %v1895, %v1420
    %v1920 = vmul.f32 %v1896, %v1421
    %v1921 = vmul.f32 %v1873, %v1849
    %v1922 = vmul.f32 %v1874, %v1850
    %v1923 = vmul.f32 %v1875, %v1851
    %v1924 = vmul.f32 %v1876, %v1852
    %v1925 = vmul.f32 %v1877, %v1853
    %v1926 = vmul.f32 %v1878, %v1854
    %v1927 = vmul.f32 %v1879, %v1855
    %v1928 = vmul.f32 %v1880, %v1856
    %v1929 = vadd.f32 %v1913, %v1921
    %v1930 = vadd.f32 %v1914, %v1922
    %v1931 = vadd.f32 %v1915, %v1923
    %v1932 = vadd.f32 %v1916, %v1924
    %v1933 = vadd.f32 %v1917, %v1925
    %v1934 = vadd.f32 %v1918, %v1926
    %v1935 = vadd.f32 %v1919, %v1927
    %v1936 = vadd.f32 %v1920, %v1928
    %v1937 = vtanh.pop %v1929
    %v1938 = vtanh.pop %v1930
    %v1939 = vtanh.pop %v1931
    %v1940 = vtanh.pop %v1932
    %v1941 = vtanh.pop %v1933
    %v1942 = vtanh.pop %v1934
    %v1943 = vtanh.pop %v1935
    %v1944 = vtanh.pop %v1936
    %v1945 = vmul.f32 %v1905, %v1937
    %v1946 = vmul.f32 %v1906, %v1938
    %v1947 = vmul.f32 %v1907, %v1939
    %v1948 = vmul.f32 %v1908, %v1940
    %v1949 = vmul.f32 %v1909, %v1941
    %v1950 = vmul.f32 %v1910, %v1942
    %v1951 = vmul.f32 %v1911, %v1943
    %v1952 = vmul.f32 %v1912, %v1944
    %s1953 = scalar_lea.vmem %s0, 4
    %v1954 = vld [vmem:[%s1953] sm:$0x3]
    %v1955 = vlaneseq
    %v1956 = vshrl.u32 %v1955, 7
    %v1957 = vsub.s32 0, %v1956
    %v1958 = vrot.slane %v1954, %v1957
    %v1959 = vmul.f32 %v383, %v1958
    %v1960 = vmul.f32 %v388, %v1958
    %v1961 = vmul.f32 %v393, %v1958
    %v1962 = vmul.f32 %v398, %v1958
    %v1963 = vmul.f32 %v403, %v1958
    %v1964 = vmul.f32 %v408, %v1958
    %v1965 = vmul.f32 %v413, %v1958
    %v1966 = vmul.f32 %v418, %v1958
    %v1967 = vmul.f32 %v423, %v1958
    %v1968 = vmul.f32 %v428, %v1958
    %v1969 = vmul.f32 %v433, %v1958
    %v1970 = vmul.f32 %v438, %v1958
    %v1971 = vmul.f32 %v443, %v1958
    %v1972 = vmul.f32 %v448, %v1958
    %v1973 = vmul.f32 %v453, %v1958
    %v1974 = vmul.f32 %v458, %v1958
    %v1975 = vmul.f32 %v463, %v1958
    %v1976 = vmul.f32 %v468, %v1958
    %v1977 = vmul.f32 %v473, %v1958
    %v1978 = vmul.f32 %v478, %v1958
    %v1979 = vmul.f32 %v483, %v1958
    %v1980 = vmul.f32 %v488, %v1958
    %v1981 = vmul.f32 %v493, %v1958
    %v1982 = vmul.f32 %v498, %v1958
    %v1983 = vmul.f32 %v503, %v1958
    %v1984 = vmul.f32 %v508, %v1958
    %v1985 = vmul.f32 %v513, %v1958
    %v1986 = vmul.f32 %v518, %v1958
    %v1987 = vmul.f32 %v523, %v1958
    %v1988 = vmul.f32 %v528, %v1958
    %v1989 = vmul.f32 %v533, %v1958
    %v1990 = vmul.f32 %v538, %v1958
    %v1991 = vadd.f32 %v579, %v1959
    %v1992 = vadd.f32 %v584, %v1960
    %v1993 = vadd.f32 %v589, %v1961
    %v1994 = vadd.f32 %v594, %v1962
    %v1995 = vadd.f32 %v599, %v1963
    %v1996 = vadd.f32 %v604, %v1964
    %v1997 = vadd.f32 %v609, %v1965
    %v1998 = vadd.f32 %v614, %v1966
    %v1999 = vadd.f32 %v619, %v1967
    %v2000 = vadd.f32 %v624, %v1968
    %v2001 = vadd.f32 %v629, %v1969
    %v2002 = vadd.f32 %v634, %v1970
    %v2003 = vadd.f32 %v639, %v1971
    %v2004 = vadd.f32 %v644, %v1972
    %v2005 = vadd.f32 %v649, %v1973
    %v2006 = vadd.f32 %v654, %v1974
    %v2007 = vadd.f32 %v659, %v1975
    %v2008 = vadd.f32 %v664, %v1976
    %v2009 = vadd.f32 %v669, %v1977
    %v2010 = vadd.f32 %v674, %v1978
    %v2011 = vadd.f32 %v679, %v1979
    %v2012 = vadd.f32 %v684, %v1980
    %v2013 = vadd.f32 %v689, %v1981
    %v2014 = vadd.f32 %v694, %v1982
    %v2015 = vadd.f32 %v699, %v1983
    %v2016 = vadd.f32 %v704, %v1984
    %v2017 = vadd.f32 %v709, %v1985
    %v2018 = vadd.f32 %v714, %v1986
    %v2019 = vadd.f32 %v719, %v1987
    %v2020 = vadd.f32 %v724, %v1988
    %v2021 = vadd.f32 %v729, %v1989
    %v2022 = vadd.f32 %v734, %v1990
    %v2023 = vlaneseq
    %v2024 = vshrl.u32 %v2023, 7
    %v2025 = vsub.s32 1, %v2024
    %v2026 = vrot.slane %v1954, %v2025
    %v2027 = vmul.f32 %v770, %v2026
    %v2028 = vmul.f32 %v774, %v2026
    %v2029 = vmul.f32 %v778, %v2026
    %v2030 = vmul.f32 %v782, %v2026
    %v2031 = vmul.f32 %v786, %v2026
    %v2032 = vmul.f32 %v790, %v2026
    %v2033 = vmul.f32 %v794, %v2026
    %v2034 = vmul.f32 %v798, %v2026
    %v2035 = vmul.f32 %v802, %v2026
    %v2036 = vmul.f32 %v806, %v2026
    %v2037 = vmul.f32 %v810, %v2026
    %v2038 = vmul.f32 %v814, %v2026
    %v2039 = vmul.f32 %v818, %v2026
    %v2040 = vmul.f32 %v822, %v2026
    %v2041 = vmul.f32 %v826, %v2026
    %v2042 = vmul.f32 %v830, %v2026
    %v2043 = vmul.f32 %v834, %v2026
    %v2044 = vmul.f32 %v838, %v2026
    %v2045 = vmul.f32 %v842, %v2026
    %v2046 = vmul.f32 %v846, %v2026
    %v2047 = vmul.f32 %v850, %v2026
    %v2048 = vmul.f32 %v854, %v2026
    %v2049 = vmul.f32 %v858, %v2026
    %v2050 = vmul.f32 %v862, %v2026
    %v2051 = vmul.f32 %v866, %v2026
    %v2052 = vmul.f32 %v870, %v2026
    %v2053 = vmul.f32 %v874, %v2026
    %v2054 = vmul.f32 %v878, %v2026
    %v2055 = vmul.f32 %v882, %v2026
    %v2056 = vmul.f32 %v886, %v2026
    %v2057 = vmul.f32 %v890, %v2026
    %v2058 = vmul.f32 %v894, %v2026
    %v2059 = vadd.f32 %v1991, %v2027
    %v2060 = vadd.f32 %v1992, %v2028
    %v2061 = vadd.f32 %v1993, %v2029
    %v2062 = vadd.f32 %v1994, %v2030
    %v2063 = vadd.f32 %v1995, %v2031
    %v2064 = vadd.f32 %v1996, %v2032
    %v2065 = vadd.f32 %v1997, %v2033
    %v2066 = vadd.f32 %v1998, %v2034
    %v2067 = vadd.f32 %v1999, %v2035
    %v2068 = vadd.f32 %v2000, %v2036
    %v2069 = vadd.f32 %v2001, %v2037
    %v2070 = vadd.f32 %v2002, %v2038
    %v2071 = vadd.f32 %v2003, %v2039
    %v2072 = vadd.f32 %v2004, %v2040
    %v2073 = vadd.f32 %v2005, %v2041
    %v2074 = vadd.f32 %v2006, %v2042
    %v2075 = vadd.f32 %v2007, %v2043
    %v2076 = vadd.f32 %v2008, %v2044
    %v2077 = vadd.f32 %v2009, %v2045
    %v2078 = vadd.f32 %v2010, %v2046
    %v2079 = vadd.f32 %v2011, %v2047
    %v2080 = vadd.f32 %v2012, %v2048
    %v2081 = vadd.f32 %v2013, %v2049
    %v2082 = vadd.f32 %v2014, %v2050
    %v2083 = vadd.f32 %v2015, %v2051
    %v2084 = vadd.f32 %v2016, %v2052
    %v2085 = vadd.f32 %v2017, %v2053
    %v2086 = vadd.f32 %v2018, %v2054
    %v2087 = vadd.f32 %v2019, %v2055
    %v2088 = vadd.f32 %v2020, %v2056
    %v2089 = vadd.f32 %v2021, %v2057
    %v2090 = vadd.f32 %v2022, %v2058
    %2091 = vmatprep.subr.mxu0 0.0
    %2092 = vmatpush1.msra.mxu0 0.0
    %2093 = vmatprep.subr.mxu0 0.0
    %2094 = vmatpush1.msra.mxu0 0.0
    %2095 = vmatprep.subr.mxu0 0.0
    %2096 = vmatpush1.msra.mxu0 0.0
    %2097 = vmatprep.subr.mxu0 0.0
    %2098 = vmatpush1.msra.mxu0 0.0
    %2099 = vmatprep.subr.mxu0 0.0
    %2100 = vmatpush1.msra.mxu0 0.0
    %2101 = vmatprep.subr.mxu0 0.0
    %2102 = vmatpush1.msra.mxu0 0.0
    %2103 = vmatprep.subr.mxu0 0.0
    %2104 = vmatpush1.msra.mxu0 0.0
    %2105 = vmatprep.subr.mxu0 0.0
    %2106 = vmatpush1.msra.mxu0 0.0
    %2107 = vmatprep.subr.mxu0 0.0
    %2108 = vmatpush1.msra.mxu0 %v1952
    %2109 = vmatprep.subr.mxu0 0.0
    %2110 = vmatpush1.msra.mxu0 %v1951
    %2111 = vmatprep.subr.mxu0 0.0
    %2112 = vmatpush1.msra.mxu0 %v1950
    %2113 = vmatprep.subr.mxu0 0.0
    %2114 = vmatpush1.msra.mxu0 %v1949
    %2115 = vmatprep.subr.mxu0 0.0
    %2116 = vmatpush1.msra.mxu0 %v1948
    %2117 = vmatprep.subr.mxu0 0.0
    %2118 = vmatpush1.msra.mxu0 %v1947
    %2119 = vmatprep.subr.mxu0 0.0
    %2120 = vmatpush1.msra.mxu0 %v1946
    %2121 = vmatprep.subr.mxu0 0.0
    %2122 = vmatpush1.msra.mxu0 %v1945
    %2123 = vmatprep.subr.mxu0 0.0
    %2124 = vmatpush2.msra.mxu0 0.0
    %2125 = vmatprep.subr.mxu0 0.0
    %2126 = vmatpush2.msra.mxu0 0.0
    %2127 = vmatprep.subr.mxu0 0.0
    %2128 = vmatpush2.msra.mxu0 0.0
    %2129 = vmatprep.subr.mxu0 0.0
    %2130 = vmatpush2.msra.mxu0 0.0
    %2131 = vmatprep.subr.mxu0 0.0
    %2132 = vmatpush2.msra.mxu0 0.0
    %2133 = vmatprep.subr.mxu0 0.0
    %2134 = vmatpush2.msra.mxu0 0.0
    %2135 = vmatprep.subr.mxu0 0.0
    %2136 = vmatpush2.msra.mxu0 0.0
    %2137 = vmatprep.subr.mxu0 0.0
    %2138 = vmatpush2.msra.mxu0 0.0
    %2139 = vmatprep.subr.mxu0 0.0
    %2140 = vmatpush2.msra.mxu0 0.0
    %2141 = vmatprep.subr.mxu0 0.0
    %2142 = vmatpush2.msra.mxu0 0.0
    %2143 = vmatprep.subr.mxu0 0.0
    %2144 = vmatpush2.msra.mxu0 0.0
    %2145 = vmatprep.subr.mxu0 0.0
    %2146 = vmatpush2.msra.mxu0 0.0
    %2147 = vmatprep.subr.mxu0 0.0
    %2148 = vmatpush2.msra.mxu0 0.0
    %2149 = vmatprep.subr.mxu0 0.0
    %2150 = vmatpush2.msra.mxu0 0.0
    %2151 = vmatprep.subr.mxu0 0.0
    %2152 = vmatpush2.msra.mxu0 0.0
    %2153 = vmatprep.subr.mxu0 0.0
    %2154 = vmatpush2.msra.mxu0 0.0
    %2155 = vmatprep.mubr.f32.mxu0 0.0
    %2156 = vmatmul.mubr.f32.gmra.mxu0 %v966
    %v2157 = vpop.f32.mrf.mxu0
    %v2158 = vadd.f32 0.0, %v2157
    %v2159 = vpop.f32.mrf.mxu0
    %2160 = vmatprep.mubr.f32.mxu0 0.0
    %2161 = vmatmul.mubr.f32.gmra.mxu0 %v969
    %v2162 = vpop.f32.mrf.mxu0
    %v2163 = vadd.f32 0.0, %v2162
    %v2164 = vpop.f32.mrf.mxu0
    %2165 = vmatprep.mubr.f32.mxu0 0.0
    %2166 = vmatmul.mubr.f32.gmra.mxu0 %v972
    %v2167 = vpop.f32.mrf.mxu0
    %v2168 = vadd.f32 0.0, %v2167
    %v2169 = vpop.f32.mrf.mxu0
    %2170 = vmatprep.mubr.f32.mxu0 0.0
    %2171 = vmatmul.mubr.f32.gmra.mxu0 %v975
    %v2172 = vpop.f32.mrf.mxu0
    %v2173 = vadd.f32 0.0, %v2172
    %v2174 = vpop.f32.mrf.mxu0
    %2175 = vmatprep.mubr.f32.mxu0 0.0
    %2176 = vmatmul.mubr.f32.gmra.mxu0 %v978
    %v2177 = vpop.f32.mrf.mxu0
    %v2178 = vadd.f32 0.0, %v2177
    %v2179 = vpop.f32.mrf.mxu0
    %2180 = vmatprep.mubr.f32.mxu0 0.0
    %2181 = vmatmul.mubr.f32.gmra.mxu0 %v981
    %v2182 = vpop.f32.mrf.mxu0
    %v2183 = vadd.f32 0.0, %v2182
    %v2184 = vpop.f32.mrf.mxu0
    %2185 = vmatprep.mubr.f32.mxu0 0.0
    %2186 = vmatmul.mubr.f32.gmra.mxu0 %v984
    %v2187 = vpop.f32.mrf.mxu0
    %v2188 = vadd.f32 0.0, %v2187
    %v2189 = vpop.f32.mrf.mxu0
    %2190 = vmatprep.mubr.f32.mxu0 0.0
    %2191 = vmatmul.mubr.f32.gmra.mxu0 %v987
    %v2192 = vpop.f32.mrf.mxu0
    %v2193 = vadd.f32 0.0, %v2192
    %v2194 = vpop.f32.mrf.mxu0
    %2195 = vmatprep.mubr.f32.mxu0 0.0
    %2196 = vmatmul.mubr.f32.gmra.mxu0 %v990
    %v2197 = vpop.f32.mrf.mxu0
    %v2198 = vadd.f32 0.0, %v2197
    %v2199 = vpop.f32.mrf.mxu0
    %2200 = vmatprep.mubr.f32.mxu0 0.0
    %2201 = vmatmul.mubr.f32.gmra.mxu0 %v993
    %v2202 = vpop.f32.mrf.mxu0
    %v2203 = vadd.f32 0.0, %v2202
    %v2204 = vpop.f32.mrf.mxu0
    %2205 = vmatprep.mubr.f32.mxu0 0.0
    %2206 = vmatmul.mubr.f32.gmra.mxu0 %v996
    %v2207 = vpop.f32.mrf.mxu0
    %v2208 = vadd.f32 0.0, %v2207
    %v2209 = vpop.f32.mrf.mxu0
    %2210 = vmatprep.mubr.f32.mxu0 0.0
    %2211 = vmatmul.mubr.f32.gmra.mxu0 %v999
    %v2212 = vpop.f32.mrf.mxu0
    %v2213 = vadd.f32 0.0, %v2212
    %v2214 = vpop.f32.mrf.mxu0
    %2215 = vmatprep.mubr.f32.mxu0 0.0
    %2216 = vmatmul.mubr.f32.gmra.mxu0 %v1002
    %v2217 = vpop.f32.mrf.mxu0
    %v2218 = vadd.f32 0.0, %v2217
    %v2219 = vpop.f32.mrf.mxu0
    %2220 = vmatprep.mubr.f32.mxu0 0.0
    %2221 = vmatmul.mubr.f32.gmra.mxu0 %v1005
    %v2222 = vpop.f32.mrf.mxu0
    %v2223 = vadd.f32 0.0, %v2222
    %v2224 = vpop.f32.mrf.mxu0
    %2225 = vmatprep.mubr.f32.mxu0 0.0
    %2226 = vmatmul.mubr.f32.gmra.mxu0 %v1008
    %v2227 = vpop.f32.mrf.mxu0
    %v2228 = vadd.f32 0.0, %v2227
    %v2229 = vpop.f32.mrf.mxu0
    %2230 = vmatprep.mubr.f32.mxu0 0.0
    %2231 = vmatmul.mubr.f32.gmra.mxu0 %v1011
    %v2232 = vpop.f32.mrf.mxu0
    %v2233 = vadd.f32 0.0, %v2232
    %v2234 = vpop.f32.mrf.mxu0
    %2235 = vmatprep.mubr.f32.mxu0 0.0
    %2236 = vmatmul.mubr.f32.gmra.mxu0 %v1014
    %v2237 = vpop.f32.mrf.mxu0
    %v2238 = vadd.f32 0.0, %v2237
    %v2239 = vpop.f32.mrf.mxu0
    %2240 = vmatprep.mubr.f32.mxu0 0.0
    %2241 = vmatmul.mubr.f32.gmra.mxu0 %v1017
    %v2242 = vpop.f32.mrf.mxu0
    %v2243 = vadd.f32 0.0, %v2242
    %v2244 = vpop.f32.mrf.mxu0
    %2245 = vmatprep.mubr.f32.mxu0 0.0
    %2246 = vmatmul.mubr.f32.gmra.mxu0 %v1020
    %v2247 = vpop.f32.mrf.mxu0
    %v2248 = vadd.f32 0.0, %v2247
    %v2249 = vpop.f32.mrf.mxu0
    %2250 = vmatprep.mubr.f32.mxu0 0.0
    %2251 = vmatmul.mubr.f32.gmra.mxu0 %v1023
    %v2252 = vpop.f32.mrf.mxu0
    %v2253 = vadd.f32 0.0, %v2252
    %v2254 = vpop.f32.mrf.mxu0
    %2255 = vmatprep.mubr.f32.mxu0 0.0
    %2256 = vmatmul.mubr.f32.gmra.mxu0 %v1026
    %v2257 = vpop.f32.mrf.mxu0
    %v2258 = vadd.f32 0.0, %v2257
    %v2259 = vpop.f32.mrf.mxu0
    %2260 = vmatprep.mubr.f32.mxu0 0.0
    %2261 = vmatmul.mubr.f32.gmra.mxu0 %v1029
    %v2262 = vpop.f32.mrf.mxu0
    %v2263 = vadd.f32 0.0, %v2262
    %v2264 = vpop.f32.mrf.mxu0
    %2265 = vmatprep.mubr.f32.mxu0 0.0
    %2266 = vmatmul.mubr.f32.gmra.mxu0 %v1032
    %v2267 = vpop.f32.mrf.mxu0
    %v2268 = vadd.f32 0.0, %v2267
    %v2269 = vpop.f32.mrf.mxu0
    %2270 = vmatprep.mubr.f32.mxu0 0.0
    %2271 = vmatmul.mubr.f32.gmra.mxu0 %v1035
    %v2272 = vpop.f32.mrf.mxu0
    %v2273 = vadd.f32 0.0, %v2272
    %v2274 = vpop.f32.mrf.mxu0
    %2275 = vmatprep.mubr.f32.mxu0 0.0
    %2276 = vmatmul.mubr.f32.gmra.mxu0 %v1038
    %v2277 = vpop.f32.mrf.mxu0
    %v2278 = vadd.f32 0.0, %v2277
    %v2279 = vpop.f32.mrf.mxu0
    %2280 = vmatprep.mubr.f32.mxu0 0.0
    %2281 = vmatmul.mubr.f32.gmra.mxu0 %v1041
    %v2282 = vpop.f32.mrf.mxu0
    %v2283 = vadd.f32 0.0, %v2282
    %v2284 = vpop.f32.mrf.mxu0
    %2285 = vmatprep.mubr.f32.mxu0 0.0
    %2286 = vmatmul.mubr.f32.gmra.mxu0 %v1044
    %v2287 = vpop.f32.mrf.mxu0
    %v2288 = vadd.f32 0.0, %v2287
    %v2289 = vpop.f32.mrf.mxu0
    %2290 = vmatprep.mubr.f32.mxu0 0.0
    %2291 = vmatmul.mubr.f32.gmra.mxu0 %v1047
    %v2292 = vpop.f32.mrf.mxu0
    %v2293 = vadd.f32 0.0, %v2292
    %v2294 = vpop.f32.mrf.mxu0
    %2295 = vmatprep.mubr.f32.mxu0 0.0
    %2296 = vmatmul.mubr.f32.gmra.mxu0 %v1050
    %v2297 = vpop.f32.mrf.mxu0
    %v2298 = vadd.f32 0.0, %v2297
    %v2299 = vpop.f32.mrf.mxu0
    %2300 = vmatprep.mubr.f32.mxu0 0.0
    %2301 = vmatmul.mubr.f32.gmra.mxu0 %v1053
    %v2302 = vpop.f32.mrf.mxu0
    %v2303 = vadd.f32 0.0, %v2302
    %v2304 = vpop.f32.mrf.mxu0
    %2305 = vmatprep.mubr.f32.mxu0 0.0
    %2306 = vmatmul.mubr.f32.gmra.mxu0 %v1056
    %v2307 = vpop.f32.mrf.mxu0
    %v2308 = vadd.f32 0.0, %v2307
    %v2309 = vpop.f32.mrf.mxu0
    %2310 = vmatprep.mubr.f32.mxu0 0.0
    %2311 = vmatmul.mubr.f32.gmra.mxu0 %v1059
    %v2312 = vpop.f32.mrf.mxu0
    %v2313 = vadd.f32 0.0, %v2312
    %v2314 = vpop.f32.mrf.mxu0
    %2315 = vdwg.mxu0
    %v2316 = vadd.f32 %v2059, %v2158
    %v2317 = vadd.f32 %v2060, %v2163
    %v2318 = vadd.f32 %v2061, %v2168
    %v2319 = vadd.f32 %v2062, %v2173
    %v2320 = vadd.f32 %v2063, %v2178
    %v2321 = vadd.f32 %v2064, %v2183
    %v2322 = vadd.f32 %v2065, %v2188
    %v2323 = vadd.f32 %v2066, %v2193
    %v2324 = vadd.f32 %v2067, %v2198
    %v2325 = vadd.f32 %v2068, %v2203
    %v2326 = vadd.f32 %v2069, %v2208
    %v2327 = vadd.f32 %v2070, %v2213
    %v2328 = vadd.f32 %v2071, %v2218
    %v2329 = vadd.f32 %v2072, %v2223
    %v2330 = vadd.f32 %v2073, %v2228
    %v2331 = vadd.f32 %v2074, %v2233
    %v2332 = vadd.f32 %v2075, %v2238
    %v2333 = vadd.f32 %v2076, %v2243
    %v2334 = vadd.f32 %v2077, %v2248
    %v2335 = vadd.f32 %v2078, %v2253
    %v2336 = vadd.f32 %v2079, %v2258
    %v2337 = vadd.f32 %v2080, %v2263
    %v2338 = vadd.f32 %v2081, %v2268
    %v2339 = vadd.f32 %v2082, %v2273
    %v2340 = vadd.f32 %v2083, %v2278
    %v2341 = vadd.f32 %v2084, %v2283
    %v2342 = vadd.f32 %v2085, %v2288
    %v2343 = vadd.f32 %v2086, %v2293
    %v2344 = vadd.f32 %v2087, %v2298
    %v2345 = vadd.f32 %v2088, %v2303
    %v2346 = vadd.f32 %v2089, %v2308
    %v2347 = vadd.f32 %v2090, %v2313
    %v2348 = vtanh.pop %v2316
    %v2349 = vtanh.pop %v2317
    %v2350 = vtanh.pop %v2318
    %v2351 = vtanh.pop %v2319
    %v2352 = vtanh.pop %v2320
    %v2353 = vtanh.pop %v2321
    %v2354 = vtanh.pop %v2322
    %v2355 = vtanh.pop %v2323
    %v2356 = vtanh.pop %v2324
    %v2357 = vtanh.pop %v2325
    %v2358 = vtanh.pop %v2326
    %v2359 = vtanh.pop %v2327
    %v2360 = vtanh.pop %v2328
    %v2361 = vtanh.pop %v2329
    %v2362 = vtanh.pop %v2330
    %v2363 = vtanh.pop %v2331
    %v2364 = vtanh.pop %v2332
    %v2365 = vtanh.pop %v2333
    %v2366 = vtanh.pop %v2334
    %v2367 = vtanh.pop %v2335
    %v2368 = vtanh.pop %v2336
    %v2369 = vtanh.pop %v2337
    %v2370 = vtanh.pop %v2338
    %v2371 = vtanh.pop %v2339
    %v2372 = vtanh.pop %v2340
    %v2373 = vtanh.pop %v2341
    %v2374 = vtanh.pop %v2342
    %v2375 = vtanh.pop %v2343
    %v2376 = vtanh.pop %v2344
    %v2377 = vtanh.pop %v2345
    %v2378 = vtanh.pop %v2346
    %v2379 = vtanh.pop %v2347
    %v2380 = vmul.f32 %v2348, 0.5
    %v2381 = vmul.f32 %v2349, 0.5
    %v2382 = vmul.f32 %v2350, 0.5
    %v2383 = vmul.f32 %v2351, 0.5
    %v2384 = vmul.f32 %v2352, 0.5
    %v2385 = vmul.f32 %v2353, 0.5
    %v2386 = vmul.f32 %v2354, 0.5
    %v2387 = vmul.f32 %v2355, 0.5
    %v2388 = vadd.f32 %v2380, 0.5
    %v2389 = vadd.f32 %v2381, 0.5
    %v2390 = vadd.f32 %v2382, 0.5
    %v2391 = vadd.f32 %v2383, 0.5
    %v2392 = vadd.f32 %v2384, 0.5
    %v2393 = vadd.f32 %v2385, 0.5
    %v2394 = vadd.f32 %v2386, 0.5
    %v2395 = vadd.f32 %v2387, 0.5
    %v2396 = vmul.f32 %v2356, 0.5
    %v2397 = vmul.f32 %v2357, 0.5
    %v2398 = vmul.f32 %v2358, 0.5
    %v2399 = vmul.f32 %v2359, 0.5
    %v2400 = vmul.f32 %v2360, 0.5
    %v2401 = vmul.f32 %v2361, 0.5
    %v2402 = vmul.f32 %v2362, 0.5
    %v2403 = vmul.f32 %v2363, 0.5
    %v2404 = vadd.f32 %v2396, 0.5
    %v2405 = vadd.f32 %v2397, 0.5
    %v2406 = vadd.f32 %v2398, 0.5
    %v2407 = vadd.f32 %v2399, 0.5
    %v2408 = vadd.f32 %v2400, 0.5
    %v2409 = vadd.f32 %v2401, 0.5
    %v2410 = vadd.f32 %v2402, 0.5
    %v2411 = vadd.f32 %v2403, 0.5
    %v2412 = vmul.f32 %v2372, 0.5
    %v2413 = vmul.f32 %v2373, 0.5
    %v2414 = vmul.f32 %v2374, 0.5
    %v2415 = vmul.f32 %v2375, 0.5
    %v2416 = vmul.f32 %v2376, 0.5
    %v2417 = vmul.f32 %v2377, 0.5
    %v2418 = vmul.f32 %v2378, 0.5
    %v2419 = vmul.f32 %v2379, 0.5
    %v2420 = vadd.f32 %v2412, 0.5
    %v2421 = vadd.f32 %v2413, 0.5
    %v2422 = vadd.f32 %v2414, 0.5
    %v2423 = vadd.f32 %v2415, 0.5
    %v2424 = vadd.f32 %v2416, 0.5
    %v2425 = vadd.f32 %v2417, 0.5
    %v2426 = vadd.f32 %v2418, 0.5
    %v2427 = vadd.f32 %v2419, 0.5
    %v2428 = vmul.f32 %v2404, %v1929
    %v2429 = vmul.f32 %v2405, %v1930
    %v2430 = vmul.f32 %v2406, %v1931
    %v2431 = vmul.f32 %v2407, %v1932
    %v2432 = vmul.f32 %v2408, %v1933
    %v2433 = vmul.f32 %v2409, %v1934
    %v2434 = vmul.f32 %v2410, %v1935
    %v2435 = vmul.f32 %v2411, %v1936
    %v2436 = vmul.f32 %v2388, %v2364
    %v2437 = vmul.f32 %v2389, %v2365
    %v2438 = vmul.f32 %v2390, %v2366
    %v2439 = vmul.f32 %v2391, %v2367
    %v2440 = vmul.f32 %v2392, %v2368
    %v2441 = vmul.f32 %v2393, %v2369
    %v2442 = vmul.f32 %v2394, %v2370
    %v2443 = vmul.f32 %v2395, %v2371
    %v2444 = vadd.f32 %v2428, %v2436
    %v2445 = vadd.f32 %v2429, %v2437
    %v2446 = vadd.f32 %v2430, %v2438
    %v2447 = vadd.f32 %v2431, %v2439
    %v2448 = vadd.f32 %v2432, %v2440
    %v2449 = vadd.f32 %v2433, %v2441
    %v2450 = vadd.f32 %v2434, %v2442
    %v2451 = vadd.f32 %v2435, %v2443
    %v2452 = vtanh.pop %v2444
    %v2453 = vtanh.pop %v2445
    %v2454 = vtanh.pop %v2446
    %v2455 = vtanh.pop %v2447
    %v2456 = vtanh.pop %v2448
    %v2457 = vtanh.pop %v2449
    %v2458 = vtanh.pop %v2450
    %v2459 = vtanh.pop %v2451
    %v2460 = vmul.f32 %v2420, %v2452
    %v2461 = vmul.f32 %v2421, %v2453
    %v2462 = vmul.f32 %v2422, %v2454
    %v2463 = vmul.f32 %v2423, %v2455
    %v2464 = vmul.f32 %v2424, %v2456
    %v2465 = vmul.f32 %v2425, %v2457
    %v2466 = vmul.f32 %v2426, %v2458
    %v2467 = vmul.f32 %v2427, %v2459
    %s2468 = scalar_lea.vmem %s0, 6
    %v2469 = vld [vmem:[%s2468] sm:$0x3]
    %v2470 = vlaneseq
    %v2471 = vshrl.u32 %v2470, 7
    %v2472 = vsub.s32 0, %v2471
    %v2473 = vrot.slane %v2469, %v2472
    %v2474 = vmul.f32 %v383, %v2473
    %v2475 = vmul.f32 %v388, %v2473
    %v2476 = vmul.f32 %v393, %v2473
    %v2477 = vmul.f32 %v398, %v2473
    %v2478 = vmul.f32 %v403, %v2473
    %v2479 = vmul.f32 %v408, %v2473
    %v2480 = vmul.f32 %v413, %v2473
    %v2481 = vmul.f32 %v418, %v2473
    %v2482 = vmul.f32 %v423, %v2473
    %v2483 = vmul.f32 %v428, %v2473
    %v2484 = vmul.f32 %v433, %v2473
    %v2485 = vmul.f32 %v438, %v2473
    %v2486 = vmul.f32 %v443, %v2473
    %v2487 = vmul.f32 %v448, %v2473
    %v2488 = vmul.f32 %v453, %v2473
    %v2489 = vmul.f32 %v458, %v2473
    %v2490 = vmul.f32 %v463, %v2473
    %v2491 = vmul.f32 %v468, %v2473
    %v2492 = vmul.f32 %v473, %v2473
    %v2493 = vmul.f32 %v478, %v2473
    %v2494 = vmul.f32 %v483, %v2473
    %v2495 = vmul.f32 %v488, %v2473
    %v2496 = vmul.f32 %v493, %v2473
    %v2497 = vmul.f32 %v498, %v2473
    %v2498 = vmul.f32 %v503, %v2473
    %v2499 = vmul.f32 %v508, %v2473
    %v2500 = vmul.f32 %v513, %v2473
    %v2501 = vmul.f32 %v518, %v2473
    %v2502 = vmul.f32 %v523, %v2473
    %v2503 = vmul.f32 %v528, %v2473
    %v2504 = vmul.f32 %v533, %v2473
    %v2505 = vmul.f32 %v538, %v2473
    %v2506 = vadd.f32 %v579, %v2474
    %v2507 = vadd.f32 %v584, %v2475
    %v2508 = vadd.f32 %v589, %v2476
    %v2509 = vadd.f32 %v594, %v2477
    %v2510 = vadd.f32 %v599, %v2478
    %v2511 = vadd.f32 %v604, %v2479
    %v2512 = vadd.f32 %v609, %v2480
    %v2513 = vadd.f32 %v614, %v2481
    %v2514 = vadd.f32 %v619, %v2482
    %v2515 = vadd.f32 %v624, %v2483
    %v2516 = vadd.f32 %v629, %v2484
    %v2517 = vadd.f32 %v634, %v2485
    %v2518 = vadd.f32 %v639, %v2486
    %v2519 = vadd.f32 %v644, %v2487
    %v2520 = vadd.f32 %v649, %v2488
    %v2521 = vadd.f32 %v654, %v2489
    %v2522 = vadd.f32 %v659, %v2490
    %v2523 = vadd.f32 %v664, %v2491
    %v2524 = vadd.f32 %v669, %v2492
    %v2525 = vadd.f32 %v674, %v2493
    %v2526 = vadd.f32 %v679, %v2494
    %v2527 = vadd.f32 %v684, %v2495
    %v2528 = vadd.f32 %v689, %v2496
    %v2529 = vadd.f32 %v694, %v2497
    %v2530 = vadd.f32 %v699, %v2498
    %v2531 = vadd.f32 %v704, %v2499
    %v2532 = vadd.f32 %v709, %v2500
    %v2533 = vadd.f32 %v714, %v2501
    %v2534 = vadd.f32 %v719, %v2502
    %v2535 = vadd.f32 %v724, %v2503
    %v2536 = vadd.f32 %v729, %v2504
    %v2537 = vadd.f32 %v734, %v2505
    %v2538 = vlaneseq
    %v2539 = vshrl.u32 %v2538, 7
    %v2540 = vsub.s32 1, %v2539
    %v2541 = vrot.slane %v2469, %v2540
    %v2542 = vmul.f32 %v770, %v2541
    %v2543 = vmul.f32 %v774, %v2541
    %v2544 = vmul.f32 %v778, %v2541
    %v2545 = vmul.f32 %v782, %v2541
    %v2546 = vmul.f32 %v786, %v2541
    %v2547 = vmul.f32 %v790, %v2541
    %v2548 = vmul.f32 %v794, %v2541
    %v2549 = vmul.f32 %v798, %v2541
    %v2550 = vmul.f32 %v802, %v2541
    %v2551 = vmul.f32 %v806, %v2541
    %v2552 = vmul.f32 %v810, %v2541
    %v2553 = vmul.f32 %v814, %v2541
    %v2554 = vmul.f32 %v818, %v2541
    %v2555 = vmul.f32 %v822, %v2541
    %v2556 = vmul.f32 %v826, %v2541
    %v2557 = vmul.f32 %v830, %v2541
    %v2558 = vmul.f32 %v834, %v2541
    %v2559 = vmul.f32 %v838, %v2541
    %v2560 = vmul.f32 %v842, %v2541
    %v2561 = vmul.f32 %v846, %v2541
    %v2562 = vmul.f32 %v850, %v2541
    %v2563 = vmul.f32 %v854, %v2541
    %v2564 = vmul.f32 %v858, %v2541
    %v2565 = vmul.f32 %v862, %v2541
    %v2566 = vmul.f32 %v866, %v2541
    %v2567 = vmul.f32 %v870, %v2541
    %v2568 = vmul.f32 %v874, %v2541
    %v2569 = vmul.f32 %v878, %v2541
    %v2570 = vmul.f32 %v882, %v2541
    %v2571 = vmul.f32 %v886, %v2541
    %v2572 = vmul.f32 %v890, %v2541
    %v2573 = vmul.f32 %v894, %v2541
    %v2574 = vadd.f32 %v2506, %v2542
    %v2575 = vadd.f32 %v2507, %v2543
    %v2576 = vadd.f32 %v2508, %v2544
    %v2577 = vadd.f32 %v2509, %v2545
    %v2578 = vadd.f32 %v2510, %v2546
    %v2579 = vadd.f32 %v2511, %v2547
    %v2580 = vadd.f32 %v2512, %v2548
    %v2581 = vadd.f32 %v2513, %v2549
    %v2582 = vadd.f32 %v2514, %v2550
    %v2583 = vadd.f32 %v2515, %v2551
    %v2584 = vadd.f32 %v2516, %v2552
    %v2585 = vadd.f32 %v2517, %v2553
    %v2586 = vadd.f32 %v2518, %v2554
    %v2587 = vadd.f32 %v2519, %v2555
    %v2588 = vadd.f32 %v2520, %v2556
    %v2589 = vadd.f32 %v2521, %v2557
    %v2590 = vadd.f32 %v2522, %v2558
    %v2591 = vadd.f32 %v2523, %v2559
    %v2592 = vadd.f32 %v2524, %v2560
    %v2593 = vadd.f32 %v2525, %v2561
    %v2594 = vadd.f32 %v2526, %v2562
    %v2595 = vadd.f32 %v2527, %v2563
    %v2596 = vadd.f32 %v2528, %v2564
    %v2597 = vadd.f32 %v2529, %v2565
    %v2598 = vadd.f32 %v2530, %v2566
    %v2599 = vadd.f32 %v2531, %v2567
    %v2600 = vadd.f32 %v2532, %v2568
    %v2601 = vadd.f32 %v2533, %v2569
    %v2602 = vadd.f32 %v2534, %v2570
    %v2603 = vadd.f32 %v2535, %v2571
    %v2604 = vadd.f32 %v2536, %v2572
    %v2605 = vadd.f32 %v2537, %v2573
    %2606 = vmatprep.subr.mxu0 0.0
    %2607 = vmatpush1.msra.mxu0 0.0
    %2608 = vmatprep.subr.mxu0 0.0
    %2609 = vmatpush1.msra.mxu0 0.0
    %2610 = vmatprep.subr.mxu0 0.0
    %2611 = vmatpush1.msra.mxu0 0.0
    %2612 = vmatprep.subr.mxu0 0.0
    %2613 = vmatpush1.msra.mxu0 0.0
    %2614 = vmatprep.subr.mxu0 0.0
    %2615 = vmatpush1.msra.mxu0 0.0
    %2616 = vmatprep.subr.mxu0 0.0
    %2617 = vmatpush1.msra.mxu0 0.0
    %2618 = vmatprep.subr.mxu0 0.0
    %2619 = vmatpush1.msra.mxu0 0.0
    %2620 = vmatprep.subr.mxu0 0.0
    %2621 = vmatpush1.msra.mxu0 0.0
    %2622 = vmatprep.subr.mxu0 0.0
    %2623 = vmatpush1.msra.mxu0 %v2467
    %2624 = vmatprep.subr.mxu0 0.0
    %2625 = vmatpush1.msra.mxu0 %v2466
    %2626 = vmatprep.subr.mxu0 0.0
    %2627 = vmatpush1.msra.mxu0 %v2465
    %2628 = vmatprep.subr.mxu0 0.0
    %2629 = vmatpush1.msra.mxu0 %v2464
    %2630 = vmatprep.subr.mxu0 0.0
    %2631 = vmatpush1.msra.mxu0 %v2463
    %2632 = vmatprep.subr.mxu0 0.0
    %2633 = vmatpush1.msra.mxu0 %v2462
    %2634 = vmatprep.subr.mxu0 0.0
    %2635 = vmatpush1.msra.mxu0 %v2461
    %2636 = vmatprep.subr.mxu0 0.0
    %2637 = vmatpush1.msra.mxu0 %v2460
    %2638 = vmatprep.subr.mxu0 0.0
    %2639 = vmatpush2.msra.mxu0 0.0
    %2640 = vmatprep.subr.mxu0 0.0
    %2641 = vmatpush2.msra.mxu0 0.0
    %2642 = vmatprep.subr.mxu0 0.0
    %2643 = vmatpush2.msra.mxu0 0.0
    %2644 = vmatprep.subr.mxu0 0.0
    %2645 = vmatpush2.msra.mxu0 0.0
    %2646 = vmatprep.subr.mxu0 0.0
    %2647 = vmatpush2.msra.mxu0 0.0
    %2648 = vmatprep.subr.mxu0 0.0
    %2649 = vmatpush2.msra.mxu0 0.0
    %2650 = vmatprep.subr.mxu0 0.0
    %2651 = vmatpush2.msra.mxu0 0.0
    %2652 = vmatprep.subr.mxu0 0.0
    %2653 = vmatpush2.msra.mxu0 0.0
    %2654 = vmatprep.subr.mxu0 0.0
    %2655 = vmatpush2.msra.mxu0 0.0
    %2656 = vmatprep.subr.mxu0 0.0
    %2657 = vmatpush2.msra.mxu0 0.0
    %2658 = vmatprep.subr.mxu0 0.0
    %2659 = vmatpush2.msra.mxu0 0.0
    %2660 = vmatprep.subr.mxu0 0.0
    %2661 = vmatpush2.msra.mxu0 0.0
    %2662 = vmatprep.subr.mxu0 0.0
    %2663 = vmatpush2.msra.mxu0 0.0
    %2664 = vmatprep.subr.mxu0 0.0
    %2665 = vmatpush2.msra.mxu0 0.0
    %2666 = vmatprep.subr.mxu0 0.0
    %2667 = vmatpush2.msra.mxu0 0.0
    %2668 = vmatprep.subr.mxu0 0.0
    %2669 = vmatpush2.msra.mxu0 0.0
    %2670 = vmatprep.mubr.f32.mxu0 0.0
    %2671 = vmatmul.mubr.f32.gmra.mxu0 %v966
    %v2672 = vpop.f32.mrf.mxu0
    %v2673 = vadd.f32 0.0, %v2672
    %v2674 = vpop.f32.mrf.mxu0
    %2675 = vmatprep.mubr.f32.mxu0 0.0
    %2676 = vmatmul.mubr.f32.gmra.mxu0 %v969
    %v2677 = vpop.f32.mrf.mxu0
    %v2678 = vadd.f32 0.0, %v2677
    %v2679 = vpop.f32.mrf.mxu0
    %2680 = vmatprep.mubr.f32.mxu0 0.0
    %2681 = vmatmul.mubr.f32.gmra.mxu0 %v972
    %v2682 = vpop.f32.mrf.mxu0
    %v2683 = vadd.f32 0.0, %v2682
    %v2684 = vpop.f32.mrf.mxu0
    %2685 = vmatprep.mubr.f32.mxu0 0.0
    %2686 = vmatmul.mubr.f32.gmra.mxu0 %v975
    %v2687 = vpop.f32.mrf.mxu0
    %v2688 = vadd.f32 0.0, %v2687
    %v2689 = vpop.f32.mrf.mxu0
    %2690 = vmatprep.mubr.f32.mxu0 0.0
    %2691 = vmatmul.mubr.f32.gmra.mxu0 %v978
    %v2692 = vpop.f32.mrf.mxu0
    %v2693 = vadd.f32 0.0, %v2692
    %v2694 = vpop.f32.mrf.mxu0
    %2695 = vmatprep.mubr.f32.mxu0 0.0
    %2696 = vmatmul.mubr.f32.gmra.mxu0 %v981
    %v2697 = vpop.f32.mrf.mxu0
    %v2698 = vadd.f32 0.0, %v2697
    %v2699 = vpop.f32.mrf.mxu0
    %2700 = vmatprep.mubr.f32.mxu0 0.0
    %2701 = vmatmul.mubr.f32.gmra.mxu0 %v984
    %v2702 = vpop.f32.mrf.mxu0
    %v2703 = vadd.f32 0.0, %v2702
    %v2704 = vpop.f32.mrf.mxu0
    %2705 = vmatprep.mubr.f32.mxu0 0.0
    %2706 = vmatmul.mubr.f32.gmra.mxu0 %v987
    %v2707 = vpop.f32.mrf.mxu0
    %v2708 = vadd.f32 0.0, %v2707
    %v2709 = vpop.f32.mrf.mxu0
    %2710 = vmatprep.mubr.f32.mxu0 0.0
    %2711 = vmatmul.mubr.f32.gmra.mxu0 %v990
    %v2712 = vpop.f32.mrf.mxu0
    %v2713 = vadd.f32 0.0, %v2712
    %v2714 = vpop.f32.mrf.mxu0
    %2715 = vmatprep.mubr.f32.mxu0 0.0
    %2716 = vmatmul.mubr.f32.gmra.mxu0 %v993
    %v2717 = vpop.f32.mrf.mxu0
    %v2718 = vadd.f32 0.0, %v2717
    %v2719 = vpop.f32.mrf.mxu0
    %2720 = vmatprep.mubr.f32.mxu0 0.0
    %2721 = vmatmul.mubr.f32.gmra.mxu0 %v996
    %v2722 = vpop.f32.mrf.mxu0
    %v2723 = vadd.f32 0.0, %v2722
    %v2724 = vpop.f32.mrf.mxu0
    %2725 = vmatprep.mubr.f32.mxu0 0.0
    %2726 = vmatmul.mubr.f32.gmra.mxu0 %v999
    %v2727 = vpop.f32.mrf.mxu0
    %v2728 = vadd.f32 0.0, %v2727
    %v2729 = vpop.f32.mrf.mxu0
    %2730 = vmatprep.mubr.f32.mxu0 0.0
    %2731 = vmatmul.mubr.f32.gmra.mxu0 %v1002
    %v2732 = vpop.f32.mrf.mxu0
    %v2733 = vadd.f32 0.0, %v2732
    %v2734 = vpop.f32.mrf.mxu0
    %2735 = vmatprep.mubr.f32.mxu0 0.0
    %2736 = vmatmul.mubr.f32.gmra.mxu0 %v1005
    %v2737 = vpop.f32.mrf.mxu0
    %v2738 = vadd.f32 0.0, %v2737
    %v2739 = vpop.f32.mrf.mxu0
    %2740 = vmatprep.mubr.f32.mxu0 0.0
    %2741 = vmatmul.mubr.f32.gmra.mxu0 %v1008
    %v2742 = vpop.f32.mrf.mxu0
    %v2743 = vadd.f32 0.0, %v2742
    %v2744 = vpop.f32.mrf.mxu0
    %2745 = vmatprep.mubr.f32.mxu0 0.0
    %2746 = vmatmul.mubr.f32.gmra.mxu0 %v1011
    %v2747 = vpop.f32.mrf.mxu0
    %v2748 = vadd.f32 0.0, %v2747
    %v2749 = vpop.f32.mrf.mxu0
    %2750 = vmatprep.mubr.f32.mxu0 0.0
    %2751 = vmatmul.mubr.f32.gmra.mxu0 %v1014
    %v2752 = vpop.f32.mrf.mxu0
    %v2753 = vadd.f32 0.0, %v2752
    %v2754 = vpop.f32.mrf.mxu0
    %2755 = vmatprep.mubr.f32.mxu0 0.0
    %2756 = vmatmul.mubr.f32.gmra.mxu0 %v1017
    %v2757 = vpop.f32.mrf.mxu0
    %v2758 = vadd.f32 0.0, %v2757
    %v2759 = vpop.f32.mrf.mxu0
    %2760 = vmatprep.mubr.f32.mxu0 0.0
    %2761 = vmatmul.mubr.f32.gmra.mxu0 %v1020
    %v2762 = vpop.f32.mrf.mxu0
    %v2763 = vadd.f32 0.0, %v2762
    %v2764 = vpop.f32.mrf.mxu0
    %2765 = vmatprep.mubr.f32.mxu0 0.0
    %2766 = vmatmul.mubr.f32.gmra.mxu0 %v1023
    %v2767 = vpop.f32.mrf.mxu0
    %v2768 = vadd.f32 0.0, %v2767
    %v2769 = vpop.f32.mrf.mxu0
    %2770 = vmatprep.mubr.f32.mxu0 0.0
    %2771 = vmatmul.mubr.f32.gmra.mxu0 %v1026
    %v2772 = vpop.f32.mrf.mxu0
    %v2773 = vadd.f32 0.0, %v2772
    %v2774 = vpop.f32.mrf.mxu0
    %2775 = vmatprep.mubr.f32.mxu0 0.0
    %2776 = vmatmul.mubr.f32.gmra.mxu0 %v1029
    %v2777 = vpop.f32.mrf.mxu0
    %v2778 = vadd.f32 0.0, %v2777
    %v2779 = vpop.f32.mrf.mxu0
    %2780 = vmatprep.mubr.f32.mxu0 0.0
    %2781 = vmatmul.mubr.f32.gmra.mxu0 %v1032
    %v2782 = vpop.f32.mrf.mxu0
    %v2783 = vadd.f32 0.0, %v2782
    %v2784 = vpop.f32.mrf.mxu0
    %2785 = vmatprep.mubr.f32.mxu0 0.0
    %2786 = vmatmul.mubr.f32.gmra.mxu0 %v1035
    %v2787 = vpop.f32.mrf.mxu0
    %v2788 = vadd.f32 0.0, %v2787
    %v2789 = vpop.f32.mrf.mxu0
    %2790 = vmatprep.mubr.f32.mxu0 0.0
    %2791 = vmatmul.mubr.f32.gmra.mxu0 %v1038
    %v2792 = vpop.f32.mrf.mxu0
    %v2793 = vadd.f32 0.0, %v2792
    %v2794 = vpop.f32.mrf.mxu0
    %2795 = vmatprep.mubr.f32.mxu0 0.0
    %2796 = vmatmul.mubr.f32.gmra.mxu0 %v1041
    %v2797 = vpop.f32.mrf.mxu0
    %v2798 = vadd.f32 0.0, %v2797
    %v2799 = vpop.f32.mrf.mxu0
    %2800 = vmatprep.mubr.f32.mxu0 0.0
    %2801 = vmatmul.mubr.f32.gmra.mxu0 %v1044
    %v2802 = vpop.f32.mrf.mxu0
    %v2803 = vadd.f32 0.0, %v2802
    %v2804 = vpop.f32.mrf.mxu0
    %2805 = vmatprep.mubr.f32.mxu0 0.0
    %2806 = vmatmul.mubr.f32.gmra.mxu0 %v1047
    %v2807 = vpop.f32.mrf.mxu0
    %v2808 = vadd.f32 0.0, %v2807
    %v2809 = vpop.f32.mrf.mxu0
    %2810 = vmatprep.mubr.f32.mxu0 0.0
    %2811 = vmatmul.mubr.f32.gmra.mxu0 %v1050
    %v2812 = vpop.f32.mrf.mxu0
    %v2813 = vadd.f32 0.0, %v2812
    %v2814 = vpop.f32.mrf.mxu0
    %2815 = vmatprep.mubr.f32.mxu0 0.0
    %2816 = vmatmul.mubr.f32.gmra.mxu0 %v1053
    %v2817 = vpop.f32.mrf.mxu0
    %v2818 = vadd.f32 0.0, %v2817
    %v2819 = vpop.f32.mrf.mxu0
    %2820 = vmatprep.mubr.f32.mxu0 0.0
    %2821 = vmatmul.mubr.f32.gmra.mxu0 %v1056
    %v2822 = vpop.f32.mrf.mxu0
    %v2823 = vadd.f32 0.0, %v2822
    %v2824 = vpop.f32.mrf.mxu0
    %2825 = vmatprep.mubr.f32.mxu0 0.0
    %2826 = vmatmul.mubr.f32.gmra.mxu0 %v1059
    %v2827 = vpop.f32.mrf.mxu0
    %v2828 = vadd.f32 0.0, %v2827
    %v2829 = vpop.f32.mrf.mxu0
    %2830 = vdwg.mxu0
    %v2831 = vadd.f32 %v2574, %v2673
    %v2832 = vadd.f32 %v2575, %v2678
    %v2833 = vadd.f32 %v2576, %v2683
    %v2834 = vadd.f32 %v2577, %v2688
    %v2835 = vadd.f32 %v2578, %v2693
    %v2836 = vadd.f32 %v2579, %v2698
    %v2837 = vadd.f32 %v2580, %v2703
    %v2838 = vadd.f32 %v2581, %v2708
    %v2839 = vadd.f32 %v2582, %v2713
    %v2840 = vadd.f32 %v2583, %v2718
    %v2841 = vadd.f32 %v2584, %v2723
    %v2842 = vadd.f32 %v2585, %v2728
    %v2843 = vadd.f32 %v2586, %v2733
    %v2844 = vadd.f32 %v2587, %v2738
    %v2845 = vadd.f32 %v2588, %v2743
    %v2846 = vadd.f32 %v2589, %v2748
    %v2847 = vadd.f32 %v2590, %v2753
    %v2848 = vadd.f32 %v2591, %v2758
    %v2849 = vadd.f32 %v2592, %v2763
    %v2850 = vadd.f32 %v2593, %v2768
    %v2851 = vadd.f32 %v2594, %v2773
    %v2852 = vadd.f32 %v2595, %v2778
    %v2853 = vadd.f32 %v2596, %v2783
    %v2854 = vadd.f32 %v2597, %v2788
    %v2855 = vadd.f32 %v2598, %v2793
    %v2856 = vadd.f32 %v2599, %v2798
    %v2857 = vadd.f32 %v2600, %v2803
    %v2858 = vadd.f32 %v2601, %v2808
    %v2859 = vadd.f32 %v2602, %v2813
    %v2860 = vadd.f32 %v2603, %v2818
    %v2861 = vadd.f32 %v2604, %v2823
    %v2862 = vadd.f32 %v2605, %v2828
    %v2863 = vtanh.pop %v2831
    %v2864 = vtanh.pop %v2832
    %v2865 = vtanh.pop %v2833
    %v2866 = vtanh.pop %v2834
    %v2867 = vtanh.pop %v2835
    %v2868 = vtanh.pop %v2836
    %v2869 = vtanh.pop %v2837
    %v2870 = vtanh.pop %v2838
    %v2871 = vtanh.pop %v2839
    %v2872 = vtanh.pop %v2840
    %v2873 = vtanh.pop %v2841
    %v2874 = vtanh.pop %v2842
    %v2875 = vtanh.pop %v2843
    %v2876 = vtanh.pop %v2844
    %v2877 = vtanh.pop %v2845
    %v2878 = vtanh.pop %v2846
    %v2879 = vtanh.pop %v2847
    %v2880 = vtanh.pop %v2848
    %v2881 = vtanh.pop %v2849
    %v2882 = vtanh.pop %v2850
    %v2883 = vtanh.pop %v2851
    %v2884 = vtanh.pop %v2852
    %v2885 = vtanh.pop %v2853
    %v2886 = vtanh.pop %v2854
    %v2887 = vtanh.pop %v2855
    %v2888 = vtanh.pop %v2856
    %v2889 = vtanh.pop %v2857
    %v2890 = vtanh.pop %v2858
    %v2891 = vtanh.pop %v2859
    %v2892 = vtanh.pop %v2860
    %v2893 = vtanh.pop %v2861
    %v2894 = vtanh.pop %v2862
    %v2895 = vmul.f32 %v2863, 0.5
    %v2896 = vmul.f32 %v2864, 0.5
    %v2897 = vmul.f32 %v2865, 0.5
    %v2898 = vmul.f32 %v2866, 0.5
    %v2899 = vmul.f32 %v2867, 0.5
    %v2900 = vmul.f32 %v2868, 0.5
    %v2901 = vmul.f32 %v2869, 0.5
    %v2902 = vmul.f32 %v2870, 0.5
    %v2903 = vadd.f32 %v2895, 0.5
    %v2904 = vadd.f32 %v2896, 0.5
    %v2905 = vadd.f32 %v2897, 0.5
    %v2906 = vadd.f32 %v2898, 0.5
    %v2907 = vadd.f32 %v2899, 0.5
    %v2908 = vadd.f32 %v2900, 0.5
    %v2909 = vadd.f32 %v2901, 0.5
    %v2910 = vadd.f32 %v2902, 0.5
    %v2911 = vmul.f32 %v2871, 0.5
    %v2912 = vmul.f32 %v2872, 0.5
    %v2913 = vmul.f32 %v2873, 0.5
    %v2914 = vmul.f32 %v2874, 0.5
    %v2915 = vmul.f32 %v2875, 0.5
    %v2916 = vmul.f32 %v2876, 0.5
    %v2917 = vmul.f32 %v2877, 0.5
    %v2918 = vmul.f32 %v2878, 0.5
    %v2919 = vadd.f32 %v2911, 0.5
    %v2920 = vadd.f32 %v2912, 0.5
    %v2921 = vadd.f32 %v2913, 0.5
    %v2922 = vadd.f32 %v2914, 0.5
    %v2923 = vadd.f32 %v2915, 0.5
    %v2924 = vadd.f32 %v2916, 0.5
    %v2925 = vadd.f32 %v2917, 0.5
    %v2926 = vadd.f32 %v2918, 0.5
    %v2927 = vmul.f32 %v2887, 0.5
    %v2928 = vmul.f32 %v2888, 0.5
    %v2929 = vmul.f32 %v2889, 0.5
    %v2930 = vmul.f32 %v2890, 0.5
    %v2931 = vmul.f32 %v2891, 0.5
    %v2932 = vmul.f32 %v2892, 0.5
    %v2933 = vmul.f32 %v2893, 0.5
    %v2934 = vmul.f32 %v2894, 0.5
    %v2935 = vadd.f32 %v2927, 0.5
    %v2936 = vadd.f32 %v2928, 0.5
    %v2937 = vadd.f32 %v2929, 0.5
    %v2938 = vadd.f32 %v2930, 0.5
    %v2939 = vadd.f32 %v2931, 0.5
    %v2940 = vadd.f32 %v2932, 0.5
    %v2941 = vadd.f32 %v2933, 0.5
    %v2942 = vadd.f32 %v2934, 0.5
    %v2943 = vmul.f32 %v2919, %v2444
    %v2944 = vmul.f32 %v2920, %v2445
    %v2945 = vmul.f32 %v2921, %v2446
    %v2946 = vmul.f32 %v2922, %v2447
    %v2947 = vmul.f32 %v2923, %v2448
    %v2948 = vmul.f32 %v2924, %v2449
    %v2949 = vmul.f32 %v2925, %v2450
    %v2950 = vmul.f32 %v2926, %v2451
    %v2951 = vmul.f32 %v2903, %v2879
    %v2952 = vmul.f32 %v2904, %v2880
    %v2953 = vmul.f32 %v2905, %v2881
    %v2954 = vmul.f32 %v2906, %v2882
    %v2955 = vmul.f32 %v2907, %v2883
    %v2956 = vmul.f32 %v2908, %v2884
    %v2957 = vmul.f32 %v2909, %v2885
    %v2958 = vmul.f32 %v2910, %v2886
    %v2959 = vadd.f32 %v2943, %v2951
    %v2960 = vadd.f32 %v2944, %v2952
    %v2961 = vadd.f32 %v2945, %v2953
    %v2962 = vadd.f32 %v2946, %v2954
    %v2963 = vadd.f32 %v2947, %v2955
    %v2964 = vadd.f32 %v2948, %v2956
    %v2965 = vadd.f32 %v2949, %v2957
    %v2966 = vadd.f32 %v2950, %v2958
    %v2967 = vtanh.pop %v2959
    %v2968 = vtanh.pop %v2960
    %v2969 = vtanh.pop %v2961
    %v2970 = vtanh.pop %v2962
    %v2971 = vtanh.pop %v2963
    %v2972 = vtanh.pop %v2964
    %v2973 = vtanh.pop %v2965
    %v2974 = vtanh.pop %v2966
    %v2975 = vmul.f32 %v2935, %v2967
    %v2976 = vmul.f32 %v2936, %v2968
    %v2977 = vmul.f32 %v2937, %v2969
    %v2978 = vmul.f32 %v2938, %v2970
    %v2979 = vmul.f32 %v2939, %v2971
    %v2980 = vmul.f32 %v2940, %v2972
    %v2981 = vmul.f32 %v2941, %v2973
    %v2982 = vmul.f32 %v2942, %v2974
    %s2983 = scalar_lea.vmem %s0, 8
    %v2984 = vld [vmem:[%s2983] sm:$0x3]
    %v2985 = vlaneseq
    %v2986 = vshrl.u32 %v2985, 7
    %v2987 = vsub.s32 0, %v2986
    %v2988 = vrot.slane %v2984, %v2987
    %v2989 = vmul.f32 %v383, %v2988
    %v2990 = vmul.f32 %v388, %v2988
    %v2991 = vmul.f32 %v393, %v2988
    %v2992 = vmul.f32 %v398, %v2988
    %v2993 = vmul.f32 %v403, %v2988
    %v2994 = vmul.f32 %v408, %v2988
    %v2995 = vmul.f32 %v413, %v2988
    %v2996 = vmul.f32 %v418, %v2988
    %v2997 = vmul.f32 %v423, %v2988
    %v2998 = vmul.f32 %v428, %v2988
    %v2999 = vmul.f32 %v433, %v2988
    %v3000 = vmul.f32 %v438, %v2988
    %v3001 = vmul.f32 %v443, %v2988
    %v3002 = vmul.f32 %v448, %v2988
    %v3003 = vmul.f32 %v453, %v2988
    %v3004 = vmul.f32 %v458, %v2988
    %v3005 = vmul.f32 %v463, %v2988
    %v3006 = vmul.f32 %v468, %v2988
    %v3007 = vmul.f32 %v473, %v2988
    %v3008 = vmul.f32 %v478, %v2988
    %v3009 = vmul.f32 %v483, %v2988
    %v3010 = vmul.f32 %v488, %v2988
    %v3011 = vmul.f32 %v493, %v2988
    %v3012 = vmul.f32 %v498, %v2988
    %v3013 = vmul.f32 %v503, %v2988
    %v3014 = vmul.f32 %v508, %v2988
    %v3015 = vmul.f32 %v513, %v2988
    %v3016 = vmul.f32 %v518, %v2988
    %v3017 = vmul.f32 %v523, %v2988
    %v3018 = vmul.f32 %v528, %v2988
    %v3019 = vmul.f32 %v533, %v2988
    %v3020 = vmul.f32 %v538, %v2988
    %v3021 = vadd.f32 %v579, %v2989
    %v3022 = vadd.f32 %v584, %v2990
    %v3023 = vadd.f32 %v589, %v2991
    %v3024 = vadd.f32 %v594, %v2992
    %v3025 = vadd.f32 %v599, %v2993
    %v3026 = vadd.f32 %v604, %v2994
    %v3027 = vadd.f32 %v609, %v2995
    %v3028 = vadd.f32 %v614, %v2996
    %v3029 = vadd.f32 %v619, %v2997
    %v3030 = vadd.f32 %v624, %v2998
    %v3031 = vadd.f32 %v629, %v2999
    %v3032 = vadd.f32 %v634, %v3000
    %v3033 = vadd.f32 %v639, %v3001
    %v3034 = vadd.f32 %v644, %v3002
    %v3035 = vadd.f32 %v649, %v3003
    %v3036 = vadd.f32 %v654, %v3004
    %v3037 = vadd.f32 %v659, %v3005
    %v3038 = vadd.f32 %v664, %v3006
    %v3039 = vadd.f32 %v669, %v3007
    %v3040 = vadd.f32 %v674, %v3008
    %v3041 = vadd.f32 %v679, %v3009
    %v3042 = vadd.f32 %v684, %v3010
    %v3043 = vadd.f32 %v689, %v3011
    %v3044 = vadd.f32 %v694, %v3012
    %v3045 = vadd.f32 %v699, %v3013
    %v3046 = vadd.f32 %v704, %v3014
    %v3047 = vadd.f32 %v709, %v3015
    %v3048 = vadd.f32 %v714, %v3016
    %v3049 = vadd.f32 %v719, %v3017
    %v3050 = vadd.f32 %v724, %v3018
    %v3051 = vadd.f32 %v729, %v3019
    %v3052 = vadd.f32 %v734, %v3020
    %v3053 = vlaneseq
    %v3054 = vshrl.u32 %v3053, 7
    %v3055 = vsub.s32 1, %v3054
    %v3056 = vrot.slane %v2984, %v3055
    %v3057 = vmul.f32 %v770, %v3056
    %v3058 = vmul.f32 %v774, %v3056
    %v3059 = vmul.f32 %v778, %v3056
    %v3060 = vmul.f32 %v782, %v3056
    %v3061 = vmul.f32 %v786, %v3056
    %v3062 = vmul.f32 %v790, %v3056
    %v3063 = vmul.f32 %v794, %v3056
    %v3064 = vmul.f32 %v798, %v3056
    %v3065 = vmul.f32 %v802, %v3056
    %v3066 = vmul.f32 %v806, %v3056
    %v3067 = vmul.f32 %v810, %v3056
    %v3068 = vmul.f32 %v814, %v3056
    %v3069 = vmul.f32 %v818, %v3056
    %v3070 = vmul.f32 %v822, %v3056
    %v3071 = vmul.f32 %v826, %v3056
    %v3072 = vmul.f32 %v830, %v3056
    %v3073 = vmul.f32 %v834, %v3056
    %v3074 = vmul.f32 %v838, %v3056
    %v3075 = vmul.f32 %v842, %v3056
    %v3076 = vmul.f32 %v846, %v3056
    %v3077 = vmul.f32 %v850, %v3056
    %v3078 = vmul.f32 %v854, %v3056
    %v3079 = vmul.f32 %v858, %v3056
    %v3080 = vmul.f32 %v862, %v3056
    %v3081 = vmul.f32 %v866, %v3056
    %v3082 = vmul.f32 %v870, %v3056
    %v3083 = vmul.f32 %v874, %v3056
    %v3084 = vmul.f32 %v878, %v3056
    %v3085 = vmul.f32 %v882, %v3056
    %v3086 = vmul.f32 %v886, %v3056
    %v3087 = vmul.f32 %v890, %v3056
    %v3088 = vmul.f32 %v894, %v3056
    %v3089 = vadd.f32 %v3021, %v3057
    %v3090 = vadd.f32 %v3022, %v3058
    %v3091 = vadd.f32 %v3023, %v3059
    %v3092 = vadd.f32 %v3024, %v3060
    %v3093 = vadd.f32 %v3025, %v3061
    %v3094 = vadd.f32 %v3026, %v3062
    %v3095 = vadd.f32 %v3027, %v3063
    %v3096 = vadd.f32 %v3028, %v3064
    %v3097 = vadd.f32 %v3029, %v3065
    %v3098 = vadd.f32 %v3030, %v3066
    %v3099 = vadd.f32 %v3031, %v3067
    %v3100 = vadd.f32 %v3032, %v3068
    %v3101 = vadd.f32 %v3033, %v3069
    %v3102 = vadd.f32 %v3034, %v3070
    %v3103 = vadd.f32 %v3035, %v3071
    %v3104 = vadd.f32 %v3036, %v3072
    %v3105 = vadd.f32 %v3037, %v3073
    %v3106 = vadd.f32 %v3038, %v3074
    %v3107 = vadd.f32 %v3039, %v3075
    %v3108 = vadd.f32 %v3040, %v3076
    %v3109 = vadd.f32 %v3041, %v3077
    %v3110 = vadd.f32 %v3042, %v3078
    %v3111 = vadd.f32 %v3043, %v3079
    %v3112 = vadd.f32 %v3044, %v3080
    %v3113 = vadd.f32 %v3045, %v3081
    %v3114 = vadd.f32 %v3046, %v3082
    %v3115 = vadd.f32 %v3047, %v3083
    %v3116 = vadd.f32 %v3048, %v3084
    %v3117 = vadd.f32 %v3049, %v3085
    %v3118 = vadd.f32 %v3050, %v3086
    %v3119 = vadd.f32 %v3051, %v3087
    %v3120 = vadd.f32 %v3052, %v3088
    %3121 = vmatprep.subr.mxu0 0.0
    %3122 = vmatpush1.msra.mxu0 0.0
    %3123 = vmatprep.subr.mxu0 0.0
    %3124 = vmatpush1.msra.mxu0 0.0
    %3125 = vmatprep.subr.mxu0 0.0
    %3126 = vmatpush1.msra.mxu0 0.0
    %3127 = vmatprep.subr.mxu0 0.0
    %3128 = vmatpush1.msra.mxu0 0.0
    %3129 = vmatprep.subr.mxu0 0.0
    %3130 = vmatpush1.msra.mxu0 0.0
    %3131 = vmatprep.subr.mxu0 0.0
    %3132 = vmatpush1.msra.mxu0 0.0
    %3133 = vmatprep.subr.mxu0 0.0
    %3134 = vmatpush1.msra.mxu0 0.0
    %3135 = vmatprep.subr.mxu0 0.0
    %3136 = vmatpush1.msra.mxu0 0.0
    %3137 = vmatprep.subr.mxu0 0.0
    %3138 = vmatpush1.msra.mxu0 %v2982
    %3139 = vmatprep.subr.mxu0 0.0
    %3140 = vmatpush1.msra.mxu0 %v2981
    %3141 = vmatprep.subr.mxu0 0.0
    %3142 = vmatpush1.msra.mxu0 %v2980
    %3143 = vmatprep.subr.mxu0 0.0
    %3144 = vmatpush1.msra.mxu0 %v2979
    %3145 = vmatprep.subr.mxu0 0.0
    %3146 = vmatpush1.msra.mxu0 %v2978
    %3147 = vmatprep.subr.mxu0 0.0
    %3148 = vmatpush1.msra.mxu0 %v2977
    %3149 = vmatprep.subr.mxu0 0.0
    %3150 = vmatpush1.msra.mxu0 %v2976
    %3151 = vmatprep.subr.mxu0 0.0
    %3152 = vmatpush1.msra.mxu0 %v2975
    %3153 = vmatprep.subr.mxu0 0.0
    %3154 = vmatpush2.msra.mxu0 0.0
    %3155 = vmatprep.subr.mxu0 0.0
    %3156 = vmatpush2.msra.mxu0 0.0
    %3157 = vmatprep.subr.mxu0 0.0
    %3158 = vmatpush2.msra.mxu0 0.0
    %3159 = vmatprep.subr.mxu0 0.0
    %3160 = vmatpush2.msra.mxu0 0.0
    %3161 = vmatprep.subr.mxu0 0.0
    %3162 = vmatpush2.msra.mxu0 0.0
    %3163 = vmatprep.subr.mxu0 0.0
    %3164 = vmatpush2.msra.mxu0 0.0
    %3165 = vmatprep.subr.mxu0 0.0
    %3166 = vmatpush2.msra.mxu0 0.0
    %3167 = vmatprep.subr.mxu0 0.0
    %3168 = vmatpush2.msra.mxu0 0.0
    %3169 = vmatprep.subr.mxu0 0.0
    %3170 = vmatpush2.msra.mxu0 0.0
    %3171 = vmatprep.subr.mxu0 0.0
    %3172 = vmatpush2.msra.mxu0 0.0
    %3173 = vmatprep.subr.mxu0 0.0
    %3174 = vmatpush2.msra.mxu0 0.0
    %3175 = vmatprep.subr.mxu0 0.0
    %3176 = vmatpush2.msra.mxu0 0.0
    %3177 = vmatprep.subr.mxu0 0.0
    %3178 = vmatpush2.msra.mxu0 0.0
    %3179 = vmatprep.subr.mxu0 0.0
    %3180 = vmatpush2.msra.mxu0 0.0
    %3181 = vmatprep.subr.mxu0 0.0
    %3182 = vmatpush2.msra.mxu0 0.0
    %3183 = vmatprep.subr.mxu0 0.0
    %3184 = vmatpush2.msra.mxu0 0.0
    %3185 = vmatprep.mubr.f32.mxu0 0.0
    %3186 = vmatmul.mubr.f32.gmra.mxu0 %v966
    %v3187 = vpop.f32.mrf.mxu0
    %v3188 = vadd.f32 0.0, %v3187
    %v3189 = vpop.f32.mrf.mxu0
    %3190 = vmatprep.mubr.f32.mxu0 0.0
    %3191 = vmatmul.mubr.f32.gmra.mxu0 %v969
    %v3192 = vpop.f32.mrf.mxu0
    %v3193 = vadd.f32 0.0, %v3192
    %v3194 = vpop.f32.mrf.mxu0
    %3195 = vmatprep.mubr.f32.mxu0 0.0
    %3196 = vmatmul.mubr.f32.gmra.mxu0 %v972
    %v3197 = vpop.f32.mrf.mxu0
    %v3198 = vadd.f32 0.0, %v3197
    %v3199 = vpop.f32.mrf.mxu0
    %3200 = vmatprep.mubr.f32.mxu0 0.0
    %3201 = vmatmul.mubr.f32.gmra.mxu0 %v975
    %v3202 = vpop.f32.mrf.mxu0
    %v3203 = vadd.f32 0.0, %v3202
    %v3204 = vpop.f32.mrf.mxu0
    %3205 = vmatprep.mubr.f32.mxu0 0.0
    %3206 = vmatmul.mubr.f32.gmra.mxu0 %v978
    %v3207 = vpop.f32.mrf.mxu0
    %v3208 = vadd.f32 0.0, %v3207
    %v3209 = vpop.f32.mrf.mxu0
    %3210 = vmatprep.mubr.f32.mxu0 0.0
    %3211 = vmatmul.mubr.f32.gmra.mxu0 %v981
    %v3212 = vpop.f32.mrf.mxu0
    %v3213 = vadd.f32 0.0, %v3212
    %v3214 = vpop.f32.mrf.mxu0
    %3215 = vmatprep.mubr.f32.mxu0 0.0
    %3216 = vmatmul.mubr.f32.gmra.mxu0 %v984
    %v3217 = vpop.f32.mrf.mxu0
    %v3218 = vadd.f32 0.0, %v3217
    %v3219 = vpop.f32.mrf.mxu0
    %3220 = vmatprep.mubr.f32.mxu0 0.0
    %3221 = vmatmul.mubr.f32.gmra.mxu0 %v987
    %v3222 = vpop.f32.mrf.mxu0
    %v3223 = vadd.f32 0.0, %v3222
    %v3224 = vpop.f32.mrf.mxu0
    %3225 = vmatprep.mubr.f32.mxu0 0.0
    %3226 = vmatmul.mubr.f32.gmra.mxu0 %v990
    %v3227 = vpop.f32.mrf.mxu0
    %v3228 = vadd.f32 0.0, %v3227
    %v3229 = vpop.f32.mrf.mxu0
    %3230 = vmatprep.mubr.f32.mxu0 0.0
    %3231 = vmatmul.mubr.f32.gmra.mxu0 %v993
    %v3232 = vpop.f32.mrf.mxu0
    %v3233 = vadd.f32 0.0, %v3232
    %v3234 = vpop.f32.mrf.mxu0
    %3235 = vmatprep.mubr.f32.mxu0 0.0
    %3236 = vmatmul.mubr.f32.gmra.mxu0 %v996
    %v3237 = vpop.f32.mrf.mxu0
    %v3238 = vadd.f32 0.0, %v3237
    %v3239 = vpop.f32.mrf.mxu0
    %3240 = vmatprep.mubr.f32.mxu0 0.0
    %3241 = vmatmul.mubr.f32.gmra.mxu0 %v999
    %v3242 = vpop.f32.mrf.mxu0
    %v3243 = vadd.f32 0.0, %v3242
    %v3244 = vpop.f32.mrf.mxu0
    %3245 = vmatprep.mubr.f32.mxu0 0.0
    %3246 = vmatmul.mubr.f32.gmra.mxu0 %v1002
    %v3247 = vpop.f32.mrf.mxu0
    %v3248 = vadd.f32 0.0, %v3247
    %v3249 = vpop.f32.mrf.mxu0
    %3250 = vmatprep.mubr.f32.mxu0 0.0
    %3251 = vmatmul.mubr.f32.gmra.mxu0 %v1005
    %v3252 = vpop.f32.mrf.mxu0
    %v3253 = vadd.f32 0.0, %v3252
    %v3254 = vpop.f32.mrf.mxu0
    %3255 = vmatprep.mubr.f32.mxu0 0.0
    %3256 = vmatmul.mubr.f32.gmra.mxu0 %v1008
    %v3257 = vpop.f32.mrf.mxu0
    %v3258 = vadd.f32 0.0, %v3257
    %v3259 = vpop.f32.mrf.mxu0
    %3260 = vmatprep.mubr.f32.mxu0 0.0
    %3261 = vmatmul.mubr.f32.gmra.mxu0 %v1011
    %v3262 = vpop.f32.mrf.mxu0
    %v3263 = vadd.f32 0.0, %v3262
    %v3264 = vpop.f32.mrf.mxu0
    %3265 = vmatprep.mubr.f32.mxu0 0.0
    %3266 = vmatmul.mubr.f32.gmra.mxu0 %v1014
    %v3267 = vpop.f32.mrf.mxu0
    %v3268 = vadd.f32 0.0, %v3267
    %v3269 = vpop.f32.mrf.mxu0
    %3270 = vmatprep.mubr.f32.mxu0 0.0
    %3271 = vmatmul.mubr.f32.gmra.mxu0 %v1017
    %v3272 = vpop.f32.mrf.mxu0
    %v3273 = vadd.f32 0.0, %v3272
    %v3274 = vpop.f32.mrf.mxu0
    %3275 = vmatprep.mubr.f32.mxu0 0.0
    %3276 = vmatmul.mubr.f32.gmra.mxu0 %v1020
    %v3277 = vpop.f32.mrf.mxu0
    %v3278 = vadd.f32 0.0, %v3277
    %v3279 = vpop.f32.mrf.mxu0
    %3280 = vmatprep.mubr.f32.mxu0 0.0
    %3281 = vmatmul.mubr.f32.gmra.mxu0 %v1023
    %v3282 = vpop.f32.mrf.mxu0
    %v3283 = vadd.f32 0.0, %v3282
    %v3284 = vpop.f32.mrf.mxu0
    %3285 = vmatprep.mubr.f32.mxu0 0.0
    %3286 = vmatmul.mubr.f32.gmra.mxu0 %v1026
    %v3287 = vpop.f32.mrf.mxu0
    %v3288 = vadd.f32 0.0, %v3287
    %v3289 = vpop.f32.mrf.mxu0
    %3290 = vmatprep.mubr.f32.mxu0 0.0
    %3291 = vmatmul.mubr.f32.gmra.mxu0 %v1029
    %v3292 = vpop.f32.mrf.mxu0
    %v3293 = vadd.f32 0.0, %v3292
    %v3294 = vpop.f32.mrf.mxu0
    %3295 = vmatprep.mubr.f32.mxu0 0.0
    %3296 = vmatmul.mubr.f32.gmra.mxu0 %v1032
    %v3297 = vpop.f32.mrf.mxu0
    %v3298 = vadd.f32 0.0, %v3297
    %v3299 = vpop.f32.mrf.mxu0
    %3300 = vmatprep.mubr.f32.mxu0 0.0
    %3301 = vmatmul.mubr.f32.gmra.mxu0 %v1035
    %v3302 = vpop.f32.mrf.mxu0
    %v3303 = vadd.f32 0.0, %v3302
    %v3304 = vpop.f32.mrf.mxu0
    %3305 = vmatprep.mubr.f32.mxu0 0.0
    %3306 = vmatmul.mubr.f32.gmra.mxu0 %v1038
    %v3307 = vpop.f32.mrf.mxu0
    %v3308 = vadd.f32 0.0, %v3307
    %v3309 = vpop.f32.mrf.mxu0
    %3310 = vmatprep.mubr.f32.mxu0 0.0
    %3311 = vmatmul.mubr.f32.gmra.mxu0 %v1041
    %v3312 = vpop.f32.mrf.mxu0
    %v3313 = vadd.f32 0.0, %v3312
    %v3314 = vpop.f32.mrf.mxu0
    %3315 = vmatprep.mubr.f32.mxu0 0.0
    %3316 = vmatmul.mubr.f32.gmra.mxu0 %v1044
    %v3317 = vpop.f32.mrf.mxu0
    %v3318 = vadd.f32 0.0, %v3317
    %v3319 = vpop.f32.mrf.mxu0
    %3320 = vmatprep.mubr.f32.mxu0 0.0
    %3321 = vmatmul.mubr.f32.gmra.mxu0 %v1047
    %v3322 = vpop.f32.mrf.mxu0
    %v3323 = vadd.f32 0.0, %v3322
    %v3324 = vpop.f32.mrf.mxu0
    %3325 = vmatprep.mubr.f32.mxu0 0.0
    %3326 = vmatmul.mubr.f32.gmra.mxu0 %v1050
    %v3327 = vpop.f32.mrf.mxu0
    %v3328 = vadd.f32 0.0, %v3327
    %v3329 = vpop.f32.mrf.mxu0
    %3330 = vmatprep.mubr.f32.mxu0 0.0
    %3331 = vmatmul.mubr.f32.gmra.mxu0 %v1053
    %v3332 = vpop.f32.mrf.mxu0
    %v3333 = vadd.f32 0.0, %v3332
    %v3334 = vpop.f32.mrf.mxu0
    %3335 = vmatprep.mubr.f32.mxu0 0.0
    %3336 = vmatmul.mubr.f32.gmra.mxu0 %v1056
    %v3337 = vpop.f32.mrf.mxu0
    %v3338 = vadd.f32 0.0, %v3337
    %v3339 = vpop.f32.mrf.mxu0
    %3340 = vmatprep.mubr.f32.mxu0 0.0
    %3341 = vmatmul.mubr.f32.gmra.mxu0 %v1059
    %v3342 = vpop.f32.mrf.mxu0
    %v3343 = vadd.f32 0.0, %v3342
    %v3344 = vpop.f32.mrf.mxu0
    %3345 = vdwg.mxu0
    %v3346 = vadd.f32 %v3089, %v3188
    %v3347 = vadd.f32 %v3090, %v3193
    %v3348 = vadd.f32 %v3091, %v3198
    %v3349 = vadd.f32 %v3092, %v3203
    %v3350 = vadd.f32 %v3093, %v3208
    %v3351 = vadd.f32 %v3094, %v3213
    %v3352 = vadd.f32 %v3095, %v3218
    %v3353 = vadd.f32 %v3096, %v3223
    %v3354 = vadd.f32 %v3097, %v3228
    %v3355 = vadd.f32 %v3098, %v3233
    %v3356 = vadd.f32 %v3099, %v3238
    %v3357 = vadd.f32 %v3100, %v3243
    %v3358 = vadd.f32 %v3101, %v3248
    %v3359 = vadd.f32 %v3102, %v3253
    %v3360 = vadd.f32 %v3103, %v3258
    %v3361 = vadd.f32 %v3104, %v3263
    %v3362 = vadd.f32 %v3105, %v3268
    %v3363 = vadd.f32 %v3106, %v3273
    %v3364 = vadd.f32 %v3107, %v3278
    %v3365 = vadd.f32 %v3108, %v3283
    %v3366 = vadd.f32 %v3109, %v3288
    %v3367 = vadd.f32 %v3110, %v3293
    %v3368 = vadd.f32 %v3111, %v3298
    %v3369 = vadd.f32 %v3112, %v3303
    %v3370 = vadd.f32 %v3113, %v3308
    %v3371 = vadd.f32 %v3114, %v3313
    %v3372 = vadd.f32 %v3115, %v3318
    %v3373 = vadd.f32 %v3116, %v3323
    %v3374 = vadd.f32 %v3117, %v3328
    %v3375 = vadd.f32 %v3118, %v3333
    %v3376 = vadd.f32 %v3119, %v3338
    %v3377 = vadd.f32 %v3120, %v3343
    %v3378 = vtanh.pop %v3346
    %v3379 = vtanh.pop %v3347
    %v3380 = vtanh.pop %v3348
    %v3381 = vtanh.pop %v3349
    %v3382 = vtanh.pop %v3350
    %v3383 = vtanh.pop %v3351
    %v3384 = vtanh.pop %v3352
    %v3385 = vtanh.pop %v3353
    %v3386 = vtanh.pop %v3354
    %v3387 = vtanh.pop %v3355
    %v3388 = vtanh.pop %v3356
    %v3389 = vtanh.pop %v3357
    %v3390 = vtanh.pop %v3358
    %v3391 = vtanh.pop %v3359
    %v3392 = vtanh.pop %v3360
    %v3393 = vtanh.pop %v3361
    %v3394 = vtanh.pop %v3362
    %v3395 = vtanh.pop %v3363
    %v3396 = vtanh.pop %v3364
    %v3397 = vtanh.pop %v3365
    %v3398 = vtanh.pop %v3366
    %v3399 = vtanh.pop %v3367
    %v3400 = vtanh.pop %v3368
    %v3401 = vtanh.pop %v3369
    %v3402 = vtanh.pop %v3370
    %v3403 = vtanh.pop %v3371
    %v3404 = vtanh.pop %v3372
    %v3405 = vtanh.pop %v3373
    %v3406 = vtanh.pop %v3374
    %v3407 = vtanh.pop %v3375
    %v3408 = vtanh.pop %v3376
    %v3409 = vtanh.pop %v3377
    %v3410 = vmul.f32 %v3378, 0.5
    %v3411 = vmul.f32 %v3379, 0.5
    %v3412 = vmul.f32 %v3380, 0.5
    %v3413 = vmul.f32 %v3381, 0.5
    %v3414 = vmul.f32 %v3382, 0.5
    %v3415 = vmul.f32 %v3383, 0.5
    %v3416 = vmul.f32 %v3384, 0.5
    %v3417 = vmul.f32 %v3385, 0.5
    %v3418 = vadd.f32 %v3410, 0.5
    %v3419 = vadd.f32 %v3411, 0.5
    %v3420 = vadd.f32 %v3412, 0.5
    %v3421 = vadd.f32 %v3413, 0.5
    %v3422 = vadd.f32 %v3414, 0.5
    %v3423 = vadd.f32 %v3415, 0.5
    %v3424 = vadd.f32 %v3416, 0.5
    %v3425 = vadd.f32 %v3417, 0.5
    %v3426 = vmul.f32 %v3386, 0.5
    %v3427 = vmul.f32 %v3387, 0.5
    %v3428 = vmul.f32 %v3388, 0.5
    %v3429 = vmul.f32 %v3389, 0.5
    %v3430 = vmul.f32 %v3390, 0.5
    %v3431 = vmul.f32 %v3391, 0.5
    %v3432 = vmul.f32 %v3392, 0.5
    %v3433 = vmul.f32 %v3393, 0.5
    %v3434 = vadd.f32 %v3426, 0.5
    %v3435 = vadd.f32 %v3427, 0.5
    %v3436 = vadd.f32 %v3428, 0.5
    %v3437 = vadd.f32 %v3429, 0.5
    %v3438 = vadd.f32 %v3430, 0.5
    %v3439 = vadd.f32 %v3431, 0.5
    %v3440 = vadd.f32 %v3432, 0.5
    %v3441 = vadd.f32 %v3433, 0.5
    %v3442 = vmul.f32 %v3402, 0.5
    %v3443 = vmul.f32 %v3403, 0.5
    %v3444 = vmul.f32 %v3404, 0.5
    %v3445 = vmul.f32 %v3405, 0.5
    %v3446 = vmul.f32 %v3406, 0.5
    %v3447 = vmul.f32 %v3407, 0.5
    %v3448 = vmul.f32 %v3408, 0.5
    %v3449 = vmul.f32 %v3409, 0.5
    %v3450 = vadd.f32 %v3442, 0.5
    %v3451 = vadd.f32 %v3443, 0.5
    %v3452 = vadd.f32 %v3444, 0.5
    %v3453 = vadd.f32 %v3445, 0.5
    %v3454 = vadd.f32 %v3446, 0.5
    %v3455 = vadd.f32 %v3447, 0.5
    %v3456 = vadd.f32 %v3448, 0.5
    %v3457 = vadd.f32 %v3449, 0.5
    %v3458 = vmul.f32 %v3434, %v2959
    %v3459 = vmul.f32 %v3435, %v2960
    %v3460 = vmul.f32 %v3436, %v2961
    %v3461 = vmul.f32 %v3437, %v2962
    %v3462 = vmul.f32 %v3438, %v2963
    %v3463 = vmul.f32 %v3439, %v2964
    %v3464 = vmul.f32 %v3440, %v2965
    %v3465 = vmul.f32 %v3441, %v2966
    %v3466 = vmul.f32 %v3418, %v3394
    %v3467 = vmul.f32 %v3419, %v3395
    %v3468 = vmul.f32 %v3420, %v3396
    %v3469 = vmul.f32 %v3421, %v3397
    %v3470 = vmul.f32 %v3422, %v3398
    %v3471 = vmul.f32 %v3423, %v3399
    %v3472 = vmul.f32 %v3424, %v3400
    %v3473 = vmul.f32 %v3425, %v3401
    %v3474 = vadd.f32 %v3458, %v3466
    %v3475 = vadd.f32 %v3459, %v3467
    %v3476 = vadd.f32 %v3460, %v3468
    %v3477 = vadd.f32 %v3461, %v3469
    %v3478 = vadd.f32 %v3462, %v3470
    %v3479 = vadd.f32 %v3463, %v3471
    %v3480 = vadd.f32 %v3464, %v3472
    %v3481 = vadd.f32 %v3465, %v3473
    %v3482 = vtanh.pop %v3474
    %v3483 = vtanh.pop %v3475
    %v3484 = vtanh.pop %v3476
    %v3485 = vtanh.pop %v3477
    %v3486 = vtanh.pop %v3478
    %v3487 = vtanh.pop %v3479
    %v3488 = vtanh.pop %v3480
    %v3489 = vtanh.pop %v3481
    %v3490 = vmul.f32 %v3450, %v3482
    %v3491 = vmul.f32 %v3451, %v3483
    %v3492 = vmul.f32 %v3452, %v3484
    %v3493 = vmul.f32 %v3453, %v3485
    %v3494 = vmul.f32 %v3454, %v3486
    %v3495 = vmul.f32 %v3455, %v3487
    %v3496 = vmul.f32 %v3456, %v3488
    %v3497 = vmul.f32 %v3457, %v3489
    %s3498 = scalar_lea.vmem %s0, 10
    %v3499 = vld [vmem:[%s3498] sm:$0x3]
    %v3500 = vlaneseq
    %v3501 = vshrl.u32 %v3500, 7
    %v3502 = vsub.s32 0, %v3501
    %v3503 = vrot.slane %v3499, %v3502
    %v3504 = vmul.f32 %v383, %v3503
    %v3505 = vmul.f32 %v388, %v3503
    %v3506 = vmul.f32 %v393, %v3503
    %v3507 = vmul.f32 %v398, %v3503
    %v3508 = vmul.f32 %v403, %v3503
    %v3509 = vmul.f32 %v408, %v3503
    %v3510 = vmul.f32 %v413, %v3503
    %v3511 = vmul.f32 %v418, %v3503
    %v3512 = vmul.f32 %v423, %v3503
    %v3513 = vmul.f32 %v428, %v3503
    %v3514 = vmul.f32 %v433, %v3503
    %v3515 = vmul.f32 %v438, %v3503
    %v3516 = vmul.f32 %v443, %v3503
    %v3517 = vmul.f32 %v448, %v3503
    %v3518 = vmul.f32 %v453, %v3503
    %v3519 = vmul.f32 %v458, %v3503
    %v3520 = vmul.f32 %v463, %v3503
    %v3521 = vmul.f32 %v468, %v3503
    %v3522 = vmul.f32 %v473, %v3503
    %v3523 = vmul.f32 %v478, %v3503
    %v3524 = vmul.f32 %v483, %v3503
    %v3525 = vmul.f32 %v488, %v3503
    %v3526 = vmul.f32 %v493, %v3503
    %v3527 = vmul.f32 %v498, %v3503
    %v3528 = vmul.f32 %v503, %v3503
    %v3529 = vmul.f32 %v508, %v3503
    %v3530 = vmul.f32 %v513, %v3503
    %v3531 = vmul.f32 %v518, %v3503
    %v3532 = vmul.f32 %v523, %v3503
    %v3533 = vmul.f32 %v528, %v3503
    %v3534 = vmul.f32 %v533, %v3503
    %v3535 = vmul.f32 %v538, %v3503
    %v3536 = vadd.f32 %v579, %v3504
    %v3537 = vadd.f32 %v584, %v3505
    %v3538 = vadd.f32 %v589, %v3506
    %v3539 = vadd.f32 %v594, %v3507
    %v3540 = vadd.f32 %v599, %v3508
    %v3541 = vadd.f32 %v604, %v3509
    %v3542 = vadd.f32 %v609, %v3510
    %v3543 = vadd.f32 %v614, %v3511
    %v3544 = vadd.f32 %v619, %v3512
    %v3545 = vadd.f32 %v624, %v3513
    %v3546 = vadd.f32 %v629, %v3514
    %v3547 = vadd.f32 %v634, %v3515
    %v3548 = vadd.f32 %v639, %v3516
    %v3549 = vadd.f32 %v644, %v3517
    %v3550 = vadd.f32 %v649, %v3518
    %v3551 = vadd.f32 %v654, %v3519
    %v3552 = vadd.f32 %v659, %v3520
    %v3553 = vadd.f32 %v664, %v3521
    %v3554 = vadd.f32 %v669, %v3522
    %v3555 = vadd.f32 %v674, %v3523
    %v3556 = vadd.f32 %v679, %v3524
    %v3557 = vadd.f32 %v684, %v3525
    %v3558 = vadd.f32 %v689, %v3526
    %v3559 = vadd.f32 %v694, %v3527
    %v3560 = vadd.f32 %v699, %v3528
    %v3561 = vadd.f32 %v704, %v3529
    %v3562 = vadd.f32 %v709, %v3530
    %v3563 = vadd.f32 %v714, %v3531
    %v3564 = vadd.f32 %v719, %v3532
    %v3565 = vadd.f32 %v724, %v3533
    %v3566 = vadd.f32 %v729, %v3534
    %v3567 = vadd.f32 %v734, %v3535
    %v3568 = vlaneseq
    %v3569 = vshrl.u32 %v3568, 7
    %v3570 = vsub.s32 1, %v3569
    %v3571 = vrot.slane %v3499, %v3570
    %v3572 = vmul.f32 %v770, %v3571
    %v3573 = vmul.f32 %v774, %v3571
    %v3574 = vmul.f32 %v778, %v3571
    %v3575 = vmul.f32 %v782, %v3571
    %v3576 = vmul.f32 %v786, %v3571
    %v3577 = vmul.f32 %v790, %v3571
    %v3578 = vmul.f32 %v794, %v3571
    %v3579 = vmul.f32 %v798, %v3571
    %v3580 = vmul.f32 %v802, %v3571
    %v3581 = vmul.f32 %v806, %v3571
    %v3582 = vmul.f32 %v810, %v3571
    %v3583 = vmul.f32 %v814, %v3571
    %v3584 = vmul.f32 %v818, %v3571
    %v3585 = vmul.f32 %v822, %v3571
    %v3586 = vmul.f32 %v826, %v3571
    %v3587 = vmul.f32 %v830, %v3571
    %v3588 = vmul.f32 %v834, %v3571
    %v3589 = vmul.f32 %v838, %v3571
    %v3590 = vmul.f32 %v842, %v3571
    %v3591 = vmul.f32 %v846, %v3571
    %v3592 = vmul.f32 %v850, %v3571
    %v3593 = vmul.f32 %v854, %v3571
    %v3594 = vmul.f32 %v858, %v3571
    %v3595 = vmul.f32 %v862, %v3571
    %v3596 = vmul.f32 %v866, %v3571
    %v3597 = vmul.f32 %v870, %v3571
    %v3598 = vmul.f32 %v874, %v3571
    %v3599 = vmul.f32 %v878, %v3571
    %v3600 = vmul.f32 %v882, %v3571
    %v3601 = vmul.f32 %v886, %v3571
    %v3602 = vmul.f32 %v890, %v3571
    %v3603 = vmul.f32 %v894, %v3571
    %v3604 = vadd.f32 %v3536, %v3572
    %v3605 = vadd.f32 %v3537, %v3573
    %v3606 = vadd.f32 %v3538, %v3574
    %v3607 = vadd.f32 %v3539, %v3575
    %v3608 = vadd.f32 %v3540, %v3576
    %v3609 = vadd.f32 %v3541, %v3577
    %v3610 = vadd.f32 %v3542, %v3578
    %v3611 = vadd.f32 %v3543, %v3579
    %v3612 = vadd.f32 %v3544, %v3580
    %v3613 = vadd.f32 %v3545, %v3581
    %v3614 = vadd.f32 %v3546, %v3582
    %v3615 = vadd.f32 %v3547, %v3583
    %v3616 = vadd.f32 %v3548, %v3584
    %v3617 = vadd.f32 %v3549, %v3585
    %v3618 = vadd.f32 %v3550, %v3586
    %v3619 = vadd.f32 %v3551, %v3587
    %v3620 = vadd.f32 %v3552, %v3588
    %v3621 = vadd.f32 %v3553, %v3589
    %v3622 = vadd.f32 %v3554, %v3590
    %v3623 = vadd.f32 %v3555, %v3591
    %v3624 = vadd.f32 %v3556, %v3592
    %v3625 = vadd.f32 %v3557, %v3593
    %v3626 = vadd.f32 %v3558, %v3594
    %v3627 = vadd.f32 %v3559, %v3595
    %v3628 = vadd.f32 %v3560, %v3596
    %v3629 = vadd.f32 %v3561, %v3597
    %v3630 = vadd.f32 %v3562, %v3598
    %v3631 = vadd.f32 %v3563, %v3599
    %v3632 = vadd.f32 %v3564, %v3600
    %v3633 = vadd.f32 %v3565, %v3601
    %v3634 = vadd.f32 %v3566, %v3602
    %v3635 = vadd.f32 %v3567, %v3603
    %3636 = vmatprep.subr.mxu0 0.0
    %3637 = vmatpush1.msra.mxu0 0.0
    %3638 = vmatprep.subr.mxu0 0.0
    %3639 = vmatpush1.msra.mxu0 0.0
    %3640 = vmatprep.subr.mxu0 0.0
    %3641 = vmatpush1.msra.mxu0 0.0
    %3642 = vmatprep.subr.mxu0 0.0
    %3643 = vmatpush1.msra.mxu0 0.0
    %3644 = vmatprep.subr.mxu0 0.0
    %3645 = vmatpush1.msra.mxu0 0.0
    %3646 = vmatprep.subr.mxu0 0.0
    %3647 = vmatpush1.msra.mxu0 0.0
    %3648 = vmatprep.subr.mxu0 0.0
    %3649 = vmatpush1.msra.mxu0 0.0
    %3650 = vmatprep.subr.mxu0 0.0
    %3651 = vmatpush1.msra.mxu0 0.0
    %3652 = vmatprep.subr.mxu0 0.0
    %3653 = vmatpush1.msra.mxu0 %v3497
    %3654 = vmatprep.subr.mxu0 0.0
    %3655 = vmatpush1.msra.mxu0 %v3496
    %3656 = vmatprep.subr.mxu0 0.0
    %3657 = vmatpush1.msra.mxu0 %v3495
    %3658 = vmatprep.subr.mxu0 0.0
    %3659 = vmatpush1.msra.mxu0 %v3494
    %3660 = vmatprep.subr.mxu0 0.0
    %3661 = vmatpush1.msra.mxu0 %v3493
    %3662 = vmatprep.subr.mxu0 0.0
    %3663 = vmatpush1.msra.mxu0 %v3492
    %3664 = vmatprep.subr.mxu0 0.0
    %3665 = vmatpush1.msra.mxu0 %v3491
    %3666 = vmatprep.subr.mxu0 0.0
    %3667 = vmatpush1.msra.mxu0 %v3490
    %3668 = vmatprep.subr.mxu0 0.0
    %3669 = vmatpush2.msra.mxu0 0.0
    %3670 = vmatprep.subr.mxu0 0.0
    %3671 = vmatpush2.msra.mxu0 0.0
    %3672 = vmatprep.subr.mxu0 0.0
    %3673 = vmatpush2.msra.mxu0 0.0
    %3674 = vmatprep.subr.mxu0 0.0
    %3675 = vmatpush2.msra.mxu0 0.0
    %3676 = vmatprep.subr.mxu0 0.0
    %3677 = vmatpush2.msra.mxu0 0.0
    %3678 = vmatprep.subr.mxu0 0.0
    %3679 = vmatpush2.msra.mxu0 0.0
    %3680 = vmatprep.subr.mxu0 0.0
    %3681 = vmatpush2.msra.mxu0 0.0
    %3682 = vmatprep.subr.mxu0 0.0
    %3683 = vmatpush2.msra.mxu0 0.0
    %3684 = vmatprep.subr.mxu0 0.0
    %3685 = vmatpush2.msra.mxu0 0.0
    %3686 = vmatprep.subr.mxu0 0.0
    %3687 = vmatpush2.msra.mxu0 0.0
    %3688 = vmatprep.subr.mxu0 0.0
    %3689 = vmatpush2.msra.mxu0 0.0
    %3690 = vmatprep.subr.mxu0 0.0
    %3691 = vmatpush2.msra.mxu0 0.0
    %3692 = vmatprep.subr.mxu0 0.0
    %3693 = vmatpush2.msra.mxu0 0.0
    %3694 = vmatprep.subr.mxu0 0.0
    %3695 = vmatpush2.msra.mxu0 0.0
    %3696 = vmatprep.subr.mxu0 0.0
    %3697 = vmatpush2.msra.mxu0 0.0
    %3698 = vmatprep.subr.mxu0 0.0
    %3699 = vmatpush2.msra.mxu0 0.0
    %3700 = vmatprep.mubr.f32.mxu0 0.0
    %3701 = vmatmul.mubr.f32.gmra.mxu0 %v966
    %v3702 = vpop.f32.mrf.mxu0
    %v3703 = vadd.f32 0.0, %v3702
    %v3704 = vpop.f32.mrf.mxu0
    %3705 = vmatprep.mubr.f32.mxu0 0.0
    %3706 = vmatmul.mubr.f32.gmra.mxu0 %v969
    %v3707 = vpop.f32.mrf.mxu0
    %v3708 = vadd.f32 0.0, %v3707
    %v3709 = vpop.f32.mrf.mxu0
    %3710 = vmatprep.mubr.f32.mxu0 0.0
    %3711 = vmatmul.mubr.f32.gmra.mxu0 %v972
    %v3712 = vpop.f32.mrf.mxu0
    %v3713 = vadd.f32 0.0, %v3712
    %v3714 = vpop.f32.mrf.mxu0
    %3715 = vmatprep.mubr.f32.mxu0 0.0
    %3716 = vmatmul.mubr.f32.gmra.mxu0 %v975
    %v3717 = vpop.f32.mrf.mxu0
    %v3718 = vadd.f32 0.0, %v3717
    %v3719 = vpop.f32.mrf.mxu0
    %3720 = vmatprep.mubr.f32.mxu0 0.0
    %3721 = vmatmul.mubr.f32.gmra.mxu0 %v978
    %v3722 = vpop.f32.mrf.mxu0
    %v3723 = vadd.f32 0.0, %v3722
    %v3724 = vpop.f32.mrf.mxu0
    %3725 = vmatprep.mubr.f32.mxu0 0.0
    %3726 = vmatmul.mubr.f32.gmra.mxu0 %v981
    %v3727 = vpop.f32.mrf.mxu0
    %v3728 = vadd.f32 0.0, %v3727
    %v3729 = vpop.f32.mrf.mxu0
    %3730 = vmatprep.mubr.f32.mxu0 0.0
    %3731 = vmatmul.mubr.f32.gmra.mxu0 %v984
    %v3732 = vpop.f32.mrf.mxu0
    %v3733 = vadd.f32 0.0, %v3732
    %v3734 = vpop.f32.mrf.mxu0
    %3735 = vmatprep.mubr.f32.mxu0 0.0
    %3736 = vmatmul.mubr.f32.gmra.mxu0 %v987
    %v3737 = vpop.f32.mrf.mxu0
    %v3738 = vadd.f32 0.0, %v3737
    %v3739 = vpop.f32.mrf.mxu0
    %3740 = vmatprep.mubr.f32.mxu0 0.0
    %3741 = vmatmul.mubr.f32.gmra.mxu0 %v990
    %v3742 = vpop.f32.mrf.mxu0
    %v3743 = vadd.f32 0.0, %v3742
    %v3744 = vpop.f32.mrf.mxu0
    %3745 = vmatprep.mubr.f32.mxu0 0.0
    %3746 = vmatmul.mubr.f32.gmra.mxu0 %v993
    %v3747 = vpop.f32.mrf.mxu0
    %v3748 = vadd.f32 0.0, %v3747
    %v3749 = vpop.f32.mrf.mxu0
    %3750 = vmatprep.mubr.f32.mxu0 0.0
    %3751 = vmatmul.mubr.f32.gmra.mxu0 %v996
    %v3752 = vpop.f32.mrf.mxu0
    %v3753 = vadd.f32 0.0, %v3752
    %v3754 = vpop.f32.mrf.mxu0
    %3755 = vmatprep.mubr.f32.mxu0 0.0
    %3756 = vmatmul.mubr.f32.gmra.mxu0 %v999
    %v3757 = vpop.f32.mrf.mxu0
    %v3758 = vadd.f32 0.0, %v3757
    %v3759 = vpop.f32.mrf.mxu0
    %3760 = vmatprep.mubr.f32.mxu0 0.0
    %3761 = vmatmul.mubr.f32.gmra.mxu0 %v1002
    %v3762 = vpop.f32.mrf.mxu0
    %v3763 = vadd.f32 0.0, %v3762
    %v3764 = vpop.f32.mrf.mxu0
    %3765 = vmatprep.mubr.f32.mxu0 0.0
    %3766 = vmatmul.mubr.f32.gmra.mxu0 %v1005
    %v3767 = vpop.f32.mrf.mxu0
    %v3768 = vadd.f32 0.0, %v3767
    %v3769 = vpop.f32.mrf.mxu0
    %3770 = vmatprep.mubr.f32.mxu0 0.0
    %3771 = vmatmul.mubr.f32.gmra.mxu0 %v1008
    %v3772 = vpop.f32.mrf.mxu0
    %v3773 = vadd.f32 0.0, %v3772
    %v3774 = vpop.f32.mrf.mxu0
    %3775 = vmatprep.mubr.f32.mxu0 0.0
    %3776 = vmatmul.mubr.f32.gmra.mxu0 %v1011
    %v3777 = vpop.f32.mrf.mxu0
    %v3778 = vadd.f32 0.0, %v3777
    %v3779 = vpop.f32.mrf.mxu0
    %3780 = vmatprep.mubr.f32.mxu0 0.0
    %3781 = vmatmul.mubr.f32.gmra.mxu0 %v1014
    %v3782 = vpop.f32.mrf.mxu0
    %v3783 = vadd.f32 0.0, %v3782
    %v3784 = vpop.f32.mrf.mxu0
    %3785 = vmatprep.mubr.f32.mxu0 0.0
    %3786 = vmatmul.mubr.f32.gmra.mxu0 %v1017
    %v3787 = vpop.f32.mrf.mxu0
    %v3788 = vadd.f32 0.0, %v3787
    %v3789 = vpop.f32.mrf.mxu0
    %3790 = vmatprep.mubr.f32.mxu0 0.0
    %3791 = vmatmul.mubr.f32.gmra.mxu0 %v1020
    %v3792 = vpop.f32.mrf.mxu0
    %v3793 = vadd.f32 0.0, %v3792
    %v3794 = vpop.f32.mrf.mxu0
    %3795 = vmatprep.mubr.f32.mxu0 0.0
    %3796 = vmatmul.mubr.f32.gmra.mxu0 %v1023
    %v3797 = vpop.f32.mrf.mxu0
    %v3798 = vadd.f32 0.0, %v3797
    %v3799 = vpop.f32.mrf.mxu0
    %3800 = vmatprep.mubr.f32.mxu0 0.0
    %3801 = vmatmul.mubr.f32.gmra.mxu0 %v1026
    %v3802 = vpop.f32.mrf.mxu0
    %v3803 = vadd.f32 0.0, %v3802
    %v3804 = vpop.f32.mrf.mxu0
    %3805 = vmatprep.mubr.f32.mxu0 0.0
    %3806 = vmatmul.mubr.f32.gmra.mxu0 %v1029
    %v3807 = vpop.f32.mrf.mxu0
    %v3808 = vadd.f32 0.0, %v3807
    %v3809 = vpop.f32.mrf.mxu0
    %3810 = vmatprep.mubr.f32.mxu0 0.0
    %3811 = vmatmul.mubr.f32.gmra.mxu0 %v1032
    %v3812 = vpop.f32.mrf.mxu0
    %v3813 = vadd.f32 0.0, %v3812
    %v3814 = vpop.f32.mrf.mxu0
    %3815 = vmatprep.mubr.f32.mxu0 0.0
    %3816 = vmatmul.mubr.f32.gmra.mxu0 %v1035
    %v3817 = vpop.f32.mrf.mxu0
    %v3818 = vadd.f32 0.0, %v3817
    %v3819 = vpop.f32.mrf.mxu0
    %3820 = vmatprep.mubr.f32.mxu0 0.0
    %3821 = vmatmul.mubr.f32.gmra.mxu0 %v1038
    %v3822 = vpop.f32.mrf.mxu0
    %v3823 = vadd.f32 0.0, %v3822
    %v3824 = vpop.f32.mrf.mxu0
    %3825 = vmatprep.mubr.f32.mxu0 0.0
    %3826 = vmatmul.mubr.f32.gmra.mxu0 %v1041
    %v3827 = vpop.f32.mrf.mxu0
    %v3828 = vadd.f32 0.0, %v3827
    %v3829 = vpop.f32.mrf.mxu0
    %3830 = vmatprep.mubr.f32.mxu0 0.0
    %3831 = vmatmul.mubr.f32.gmra.mxu0 %v1044
    %v3832 = vpop.f32.mrf.mxu0
    %v3833 = vadd.f32 0.0, %v3832
    %v3834 = vpop.f32.mrf.mxu0
    %3835 = vmatprep.mubr.f32.mxu0 0.0
    %3836 = vmatmul.mubr.f32.gmra.mxu0 %v1047
    %v3837 = vpop.f32.mrf.mxu0
    %v3838 = vadd.f32 0.0, %v3837
    %v3839 = vpop.f32.mrf.mxu0
    %3840 = vmatprep.mubr.f32.mxu0 0.0
    %3841 = vmatmul.mubr.f32.gmra.mxu0 %v1050
    %v3842 = vpop.f32.mrf.mxu0
    %v3843 = vadd.f32 0.0, %v3842
    %v3844 = vpop.f32.mrf.mxu0
    %3845 = vmatprep.mubr.f32.mxu0 0.0
    %3846 = vmatmul.mubr.f32.gmra.mxu0 %v1053
    %v3847 = vpop.f32.mrf.mxu0
    %v3848 = vadd.f32 0.0, %v3847
    %v3849 = vpop.f32.mrf.mxu0
    %3850 = vmatprep.mubr.f32.mxu0 0.0
    %3851 = vmatmul.mubr.f32.gmra.mxu0 %v1056
    %v3852 = vpop.f32.mrf.mxu0
    %v3853 = vadd.f32 0.0, %v3852
    %v3854 = vpop.f32.mrf.mxu0
    %3855 = vmatprep.mubr.f32.mxu0 0.0
    %3856 = vmatmul.mubr.f32.gmra.mxu0 %v1059
    %v3857 = vpop.f32.mrf.mxu0
    %v3858 = vadd.f32 0.0, %v3857
    %v3859 = vpop.f32.mrf.mxu0
    %3860 = vdwg.mxu0
    %v3861 = vadd.f32 %v3604, %v3703
    %v3862 = vadd.f32 %v3605, %v3708
    %v3863 = vadd.f32 %v3606, %v3713
    %v3864 = vadd.f32 %v3607, %v3718
    %v3865 = vadd.f32 %v3608, %v3723
    %v3866 = vadd.f32 %v3609, %v3728
    %v3867 = vadd.f32 %v3610, %v3733
    %v3868 = vadd.f32 %v3611, %v3738
    %v3869 = vadd.f32 %v3612, %v3743
    %v3870 = vadd.f32 %v3613, %v3748
    %v3871 = vadd.f32 %v3614, %v3753
    %v3872 = vadd.f32 %v3615, %v3758
    %v3873 = vadd.f32 %v3616, %v3763
    %v3874 = vadd.f32 %v3617, %v3768
    %v3875 = vadd.f32 %v3618, %v3773
    %v3876 = vadd.f32 %v3619, %v3778
    %v3877 = vadd.f32 %v3620, %v3783
    %v3878 = vadd.f32 %v3621, %v3788
    %v3879 = vadd.f32 %v3622, %v3793
    %v3880 = vadd.f32 %v3623, %v3798
    %v3881 = vadd.f32 %v3624, %v3803
    %v3882 = vadd.f32 %v3625, %v3808
    %v3883 = vadd.f32 %v3626, %v3813
    %v3884 = vadd.f32 %v3627, %v3818
    %v3885 = vadd.f32 %v3628, %v3823
    %v3886 = vadd.f32 %v3629, %v3828
    %v3887 = vadd.f32 %v3630, %v3833
    %v3888 = vadd.f32 %v3631, %v3838
    %v3889 = vadd.f32 %v3632, %v3843
    %v3890 = vadd.f32 %v3633, %v3848
    %v3891 = vadd.f32 %v3634, %v3853
    %v3892 = vadd.f32 %v3635, %v3858
    %v3893 = vtanh.pop %v3861
    %v3894 = vtanh.pop %v3862
    %v3895 = vtanh.pop %v3863
    %v3896 = vtanh.pop %v3864
    %v3897 = vtanh.pop %v3865
    %v3898 = vtanh.pop %v3866
    %v3899 = vtanh.pop %v3867
    %v3900 = vtanh.pop %v3868
    %v3901 = vtanh.pop %v3869
    %v3902 = vtanh.pop %v3870
    %v3903 = vtanh.pop %v3871
    %v3904 = vtanh.pop %v3872
    %v3905 = vtanh.pop %v3873
    %v3906 = vtanh.pop %v3874
    %v3907 = vtanh.pop %v3875
    %v3908 = vtanh.pop %v3876
    %v3909 = vtanh.pop %v3877
    %v3910 = vtanh.pop %v3878
    %v3911 = vtanh.pop %v3879
    %v3912 = vtanh.pop %v3880
    %v3913 = vtanh.pop %v3881
    %v3914 = vtanh.pop %v3882
    %v3915 = vtanh.pop %v3883
    %v3916 = vtanh.pop %v3884
    %v3917 = vtanh.pop %v3885
    %v3918 = vtanh.pop %v3886
    %v3919 = vtanh.pop %v3887
    %v3920 = vtanh.pop %v3888
    %v3921 = vtanh.pop %v3889
    %v3922 = vtanh.pop %v3890
    %v3923 = vtanh.pop %v3891
    %v3924 = vtanh.pop %v3892
    %v3925 = vmul.f32 %v3893, 0.5
    %v3926 = vmul.f32 %v3894, 0.5
    %v3927 = vmul.f32 %v3895, 0.5
    %v3928 = vmul.f32 %v3896, 0.5
    %v3929 = vmul.f32 %v3897, 0.5
    %v3930 = vmul.f32 %v3898, 0.5
    %v3931 = vmul.f32 %v3899, 0.5
    %v3932 = vmul.f32 %v3900, 0.5
    %v3933 = vadd.f32 %v3925, 0.5
    %v3934 = vadd.f32 %v3926, 0.5
    %v3935 = vadd.f32 %v3927, 0.5
    %v3936 = vadd.f32 %v3928, 0.5
    %v3937 = vadd.f32 %v3929, 0.5
    %v3938 = vadd.f32 %v3930, 0.5
    %v3939 = vadd.f32 %v3931, 0.5
    %v3940 = vadd.f32 %v3932, 0.5
    %v3941 = vmul.f32 %v3901, 0.5
    %v3942 = vmul.f32 %v3902, 0.5
    %v3943 = vmul.f32 %v3903, 0.5
    %v3944 = vmul.f32 %v3904, 0.5
    %v3945 = vmul.f32 %v3905, 0.5
    %v3946 = vmul.f32 %v3906, 0.5
    %v3947 = vmul.f32 %v3907, 0.5
    %v3948 = vmul.f32 %v3908, 0.5
    %v3949 = vadd.f32 %v3941, 0.5
    %v3950 = vadd.f32 %v3942, 0.5
    %v3951 = vadd.f32 %v3943, 0.5
    %v3952 = vadd.f32 %v3944, 0.5
    %v3953 = vadd.f32 %v3945, 0.5
    %v3954 = vadd.f32 %v3946, 0.5
    %v3955 = vadd.f32 %v3947, 0.5
    %v3956 = vadd.f32 %v3948, 0.5
    %v3957 = vmul.f32 %v3917, 0.5
    %v3958 = vmul.f32 %v3918, 0.5
    %v3959 = vmul.f32 %v3919, 0.5
    %v3960 = vmul.f32 %v3920, 0.5
    %v3961 = vmul.f32 %v3921, 0.5
    %v3962 = vmul.f32 %v3922, 0.5
    %v3963 = vmul.f32 %v3923, 0.5
    %v3964 = vmul.f32 %v3924, 0.5
    %v3965 = vadd.f32 %v3957, 0.5
    %v3966 = vadd.f32 %v3958, 0.5
    %v3967 = vadd.f32 %v3959, 0.5
    %v3968 = vadd.f32 %v3960, 0.5
    %v3969 = vadd.f32 %v3961, 0.5
    %v3970 = vadd.f32 %v3962, 0.5
    %v3971 = vadd.f32 %v3963, 0.5
    %v3972 = vadd.f32 %v3964, 0.5
    %v3973 = vmul.f32 %v3949, %v3474
    %v3974 = vmul.f32 %v3950, %v3475
    %v3975 = vmul.f32 %v3951, %v3476
    %v3976 = vmul.f32 %v3952, %v3477
    %v3977 = vmul.f32 %v3953, %v3478
    %v3978 = vmul.f32 %v3954, %v3479
    %v3979 = vmul.f32 %v3955, %v3480
    %v3980 = vmul.f32 %v3956, %v3481
    %v3981 = vmul.f32 %v3933, %v3909
    %v3982 = vmul.f32 %v3934, %v3910
    %v3983 = vmul.f32 %v3935, %v3911
    %v3984 = vmul.f32 %v3936, %v3912
    %v3985 = vmul.f32 %v3937, %v3913
    %v3986 = vmul.f32 %v3938, %v3914
    %v3987 = vmul.f32 %v3939, %v3915
    %v3988 = vmul.f32 %v3940, %v3916
    %v3989 = vadd.f32 %v3973, %v3981
    %v3990 = vadd.f32 %v3974, %v3982
    %v3991 = vadd.f32 %v3975, %v3983
    %v3992 = vadd.f32 %v3976, %v3984
    %v3993 = vadd.f32 %v3977, %v3985
    %v3994 = vadd.f32 %v3978, %v3986
    %v3995 = vadd.f32 %v3979, %v3987
    %v3996 = vadd.f32 %v3980, %v3988
    %v3997 = vtanh.pop %v3989
    %v3998 = vtanh.pop %v3990
    %v3999 = vtanh.pop %v3991
    %v4000 = vtanh.pop %v3992
    %v4001 = vtanh.pop %v3993
    %v4002 = vtanh.pop %v3994
    %v4003 = vtanh.pop %v3995
    %v4004 = vtanh.pop %v3996
    %v4005 = vmul.f32 %v3965, %v3997
    %v4006 = vmul.f32 %v3966, %v3998
    %v4007 = vmul.f32 %v3967, %v3999
    %v4008 = vmul.f32 %v3968, %v4000
    %v4009 = vmul.f32 %v3969, %v4001
    %v4010 = vmul.f32 %v3970, %v4002
    %v4011 = vmul.f32 %v3971, %v4003
    %v4012 = vmul.f32 %v3972, %v4004
    %s4013 = scalar_lea.vmem %s0, 12
    %v4014 = vld [vmem:[%s4013] sm:$0x3]
    %v4015 = vlaneseq
    %v4016 = vshrl.u32 %v4015, 7
    %v4017 = vsub.s32 0, %v4016
    %v4018 = vrot.slane %v4014, %v4017
    %v4019 = vmul.f32 %v383, %v4018
    %v4020 = vmul.f32 %v388, %v4018
    %v4021 = vmul.f32 %v393, %v4018
    %v4022 = vmul.f32 %v398, %v4018
    %v4023 = vmul.f32 %v403, %v4018
    %v4024 = vmul.f32 %v408, %v4018
    %v4025 = vmul.f32 %v413, %v4018
    %v4026 = vmul.f32 %v418, %v4018
    %v4027 = vmul.f32 %v423, %v4018
    %v4028 = vmul.f32 %v428, %v4018
    %v4029 = vmul.f32 %v433, %v4018
    %v4030 = vmul.f32 %v438, %v4018
    %v4031 = vmul.f32 %v443, %v4018
    %v4032 = vmul.f32 %v448, %v4018
    %v4033 = vmul.f32 %v453, %v4018
    %v4034 = vmul.f32 %v458, %v4018
    %v4035 = vmul.f32 %v463, %v4018
    %v4036 = vmul.f32 %v468, %v4018
    %v4037 = vmul.f32 %v473, %v4018
    %v4038 = vmul.f32 %v478, %v4018
    %v4039 = vmul.f32 %v483, %v4018
    %v4040 = vmul.f32 %v488, %v4018
    %v4041 = vmul.f32 %v493, %v4018
    %v4042 = vmul.f32 %v498, %v4018
    %v4043 = vmul.f32 %v503, %v4018
    %v4044 = vmul.f32 %v508, %v4018
    %v4045 = vmul.f32 %v513, %v4018
    %v4046 = vmul.f32 %v518, %v4018
    %v4047 = vmul.f32 %v523, %v4018
    %v4048 = vmul.f32 %v528, %v4018
    %v4049 = vmul.f32 %v533, %v4018
    %v4050 = vmul.f32 %v538, %v4018
    %v4051 = vadd.f32 %v579, %v4019
    %v4052 = vadd.f32 %v584, %v4020
    %v4053 = vadd.f32 %v589, %v4021
    %v4054 = vadd.f32 %v594, %v4022
    %v4055 = vadd.f32 %v599, %v4023
    %v4056 = vadd.f32 %v604, %v4024
    %v4057 = vadd.f32 %v609, %v4025
    %v4058 = vadd.f32 %v614, %v4026
    %v4059 = vadd.f32 %v619, %v4027
    %v4060 = vadd.f32 %v624, %v4028
    %v4061 = vadd.f32 %v629, %v4029
    %v4062 = vadd.f32 %v634, %v4030
    %v4063 = vadd.f32 %v639, %v4031
    %v4064 = vadd.f32 %v644, %v4032
    %v4065 = vadd.f32 %v649, %v4033
    %v4066 = vadd.f32 %v654, %v4034
    %v4067 = vadd.f32 %v659, %v4035
    %v4068 = vadd.f32 %v664, %v4036
    %v4069 = vadd.f32 %v669, %v4037
    %v4070 = vadd.f32 %v674, %v4038
    %v4071 = vadd.f32 %v679, %v4039
    %v4072 = vadd.f32 %v684, %v4040
    %v4073 = vadd.f32 %v689, %v4041
    %v4074 = vadd.f32 %v694, %v4042
    %v4075 = vadd.f32 %v699, %v4043
    %v4076 = vadd.f32 %v704, %v4044
    %v4077 = vadd.f32 %v709, %v4045
    %v4078 = vadd.f32 %v714, %v4046
    %v4079 = vadd.f32 %v719, %v4047
    %v4080 = vadd.f32 %v724, %v4048
    %v4081 = vadd.f32 %v729, %v4049
    %v4082 = vadd.f32 %v734, %v4050
    %v4083 = vlaneseq
    %v4084 = vshrl.u32 %v4083, 7
    %v4085 = vsub.s32 1, %v4084
    %v4086 = vrot.slane %v4014, %v4085
    %v4087 = vmul.f32 %v770, %v4086
    %v4088 = vmul.f32 %v774, %v4086
    %v4089 = vmul.f32 %v778, %v4086
    %v4090 = vmul.f32 %v782, %v4086
    %v4091 = vmul.f32 %v786, %v4086
    %v4092 = vmul.f32 %v790, %v4086
    %v4093 = vmul.f32 %v794, %v4086
    %v4094 = vmul.f32 %v798, %v4086
    %v4095 = vmul.f32 %v802, %v4086
    %v4096 = vmul.f32 %v806, %v4086
    %v4097 = vmul.f32 %v810, %v4086
    %v4098 = vmul.f32 %v814, %v4086
    %v4099 = vmul.f32 %v818, %v4086
    %v4100 = vmul.f32 %v822, %v4086
    %v4101 = vmul.f32 %v826, %v4086
    %v4102 = vmul.f32 %v830, %v4086
    %v4103 = vmul.f32 %v834, %v4086
    %v4104 = vmul.f32 %v838, %v4086
    %v4105 = vmul.f32 %v842, %v4086
    %v4106 = vmul.f32 %v846, %v4086
    %v4107 = vmul.f32 %v850, %v4086
    %v4108 = vmul.f32 %v854, %v4086
    %v4109 = vmul.f32 %v858, %v4086
    %v4110 = vmul.f32 %v862, %v4086
    %v4111 = vmul.f32 %v866, %v4086
    %v4112 = vmul.f32 %v870, %v4086
    %v4113 = vmul.f32 %v874, %v4086
    %v4114 = vmul.f32 %v878, %v4086
    %v4115 = vmul.f32 %v882, %v4086
    %v4116 = vmul.f32 %v886, %v4086
    %v4117 = vmul.f32 %v890, %v4086
    %v4118 = vmul.f32 %v894, %v4086
    %v4119 = vadd.f32 %v4051, %v4087
    %v4120 = vadd.f32 %v4052, %v4088
    %v4121 = vadd.f32 %v4053, %v4089
    %v4122 = vadd.f32 %v4054, %v4090
    %v4123 = vadd.f32 %v4055, %v4091
    %v4124 = vadd.f32 %v4056, %v4092
    %v4125 = vadd.f32 %v4057, %v4093
    %v4126 = vadd.f32 %v4058, %v4094
    %v4127 = vadd.f32 %v4059, %v4095
    %v4128 = vadd.f32 %v4060, %v4096
    %v4129 = vadd.f32 %v4061, %v4097
    %v4130 = vadd.f32 %v4062, %v4098
    %v4131 = vadd.f32 %v4063, %v4099
    %v4132 = vadd.f32 %v4064, %v4100
    %v4133 = vadd.f32 %v4065, %v4101
    %v4134 = vadd.f32 %v4066, %v4102
    %v4135 = vadd.f32 %v4067, %v4103
    %v4136 = vadd.f32 %v4068, %v4104
    %v4137 = vadd.f32 %v4069, %v4105
    %v4138 = vadd.f32 %v4070, %v4106
    %v4139 = vadd.f32 %v4071, %v4107
    %v4140 = vadd.f32 %v4072, %v4108
    %v4141 = vadd.f32 %v4073, %v4109
    %v4142 = vadd.f32 %v4074, %v4110
    %v4143 = vadd.f32 %v4075, %v4111
    %v4144 = vadd.f32 %v4076, %v4112
    %v4145 = vadd.f32 %v4077, %v4113
    %v4146 = vadd.f32 %v4078, %v4114
    %v4147 = vadd.f32 %v4079, %v4115
    %v4148 = vadd.f32 %v4080, %v4116
    %v4149 = vadd.f32 %v4081, %v4117
    %v4150 = vadd.f32 %v4082, %v4118
    %4151 = vmatprep.subr.mxu0 0.0
    %4152 = vmatpush1.msra.mxu0 0.0
    %4153 = vmatprep.subr.mxu0 0.0
    %4154 = vmatpush1.msra.mxu0 0.0
    %4155 = vmatprep.subr.mxu0 0.0
    %4156 = vmatpush1.msra.mxu0 0.0
    %4157 = vmatprep.subr.mxu0 0.0
    %4158 = vmatpush1.msra.mxu0 0.0
    %4159 = vmatprep.subr.mxu0 0.0
    %4160 = vmatpush1.msra.mxu0 0.0
    %4161 = vmatprep.subr.mxu0 0.0
    %4162 = vmatpush1.msra.mxu0 0.0
    %4163 = vmatprep.subr.mxu0 0.0
    %4164 = vmatpush1.msra.mxu0 0.0
    %4165 = vmatprep.subr.mxu0 0.0
    %4166 = vmatpush1.msra.mxu0 0.0
    %4167 = vmatprep.subr.mxu0 0.0
    %4168 = vmatpush1.msra.mxu0 %v4012
    %4169 = vmatprep.subr.mxu0 0.0
    %4170 = vmatpush1.msra.mxu0 %v4011
    %4171 = vmatprep.subr.mxu0 0.0
    %4172 = vmatpush1.msra.mxu0 %v4010
    %4173 = vmatprep.subr.mxu0 0.0
    %4174 = vmatpush1.msra.mxu0 %v4009
    %4175 = vmatprep.subr.mxu0 0.0
    %4176 = vmatpush1.msra.mxu0 %v4008
    %4177 = vmatprep.subr.mxu0 0.0
    %4178 = vmatpush1.msra.mxu0 %v4007
    %4179 = vmatprep.subr.mxu0 0.0
    %4180 = vmatpush1.msra.mxu0 %v4006
    %4181 = vmatprep.subr.mxu0 0.0
    %4182 = vmatpush1.msra.mxu0 %v4005
    %4183 = vmatprep.subr.mxu0 0.0
    %4184 = vmatpush2.msra.mxu0 0.0
    %4185 = vmatprep.subr.mxu0 0.0
    %4186 = vmatpush2.msra.mxu0 0.0
    %4187 = vmatprep.subr.mxu0 0.0
    %4188 = vmatpush2.msra.mxu0 0.0
    %4189 = vmatprep.subr.mxu0 0.0
    %4190 = vmatpush2.msra.mxu0 0.0
    %4191 = vmatprep.subr.mxu0 0.0
    %4192 = vmatpush2.msra.mxu0 0.0
    %4193 = vmatprep.subr.mxu0 0.0
    %4194 = vmatpush2.msra.mxu0 0.0
    %4195 = vmatprep.subr.mxu0 0.0
    %4196 = vmatpush2.msra.mxu0 0.0
    %4197 = vmatprep.subr.mxu0 0.0
    %4198 = vmatpush2.msra.mxu0 0.0
    %4199 = vmatprep.subr.mxu0 0.0
    %4200 = vmatpush2.msra.mxu0 0.0
    %4201 = vmatprep.subr.mxu0 0.0
    %4202 = vmatpush2.msra.mxu0 0.0
    %4203 = vmatprep.subr.mxu0 0.0
    %4204 = vmatpush2.msra.mxu0 0.0
    %4205 = vmatprep.subr.mxu0 0.0
    %4206 = vmatpush2.msra.mxu0 0.0
    %4207 = vmatprep.subr.mxu0 0.0
    %4208 = vmatpush2.msra.mxu0 0.0
    %4209 = vmatprep.subr.mxu0 0.0
    %4210 = vmatpush2.msra.mxu0 0.0
    %4211 = vmatprep.subr.mxu0 0.0
    %4212 = vmatpush2.msra.mxu0 0.0
    %4213 = vmatprep.subr.mxu0 0.0
    %4214 = vmatpush2.msra.mxu0 0.0
    %4215 = vmatprep.mubr.f32.mxu0 0.0
    %4216 = vmatmul.mubr.f32.gmra.mxu0 %v966
    %v4217 = vpop.f32.mrf.mxu0
    %v4218 = vadd.f32 0.0, %v4217
    %v4219 = vpop.f32.mrf.mxu0
    %4220 = vmatprep.mubr.f32.mxu0 0.0
    %4221 = vmatmul.mubr.f32.gmra.mxu0 %v969
    %v4222 = vpop.f32.mrf.mxu0
    %v4223 = vadd.f32 0.0, %v4222
    %v4224 = vpop.f32.mrf.mxu0
    %4225 = vmatprep.mubr.f32.mxu0 0.0
    %4226 = vmatmul.mubr.f32.gmra.mxu0 %v972
    %v4227 = vpop.f32.mrf.mxu0
    %v4228 = vadd.f32 0.0, %v4227
    %v4229 = vpop.f32.mrf.mxu0
    %4230 = vmatprep.mubr.f32.mxu0 0.0
    %4231 = vmatmul.mubr.f32.gmra.mxu0 %v975
    %v4232 = vpop.f32.mrf.mxu0
    %v4233 = vadd.f32 0.0, %v4232
    %v4234 = vpop.f32.mrf.mxu0
    %4235 = vmatprep.mubr.f32.mxu0 0.0
    %4236 = vmatmul.mubr.f32.gmra.mxu0 %v978
    %v4237 = vpop.f32.mrf.mxu0
    %v4238 = vadd.f32 0.0, %v4237
    %v4239 = vpop.f32.mrf.mxu0
    %4240 = vmatprep.mubr.f32.mxu0 0.0
    %4241 = vmatmul.mubr.f32.gmra.mxu0 %v981
    %v4242 = vpop.f32.mrf.mxu0
    %v4243 = vadd.f32 0.0, %v4242
    %v4244 = vpop.f32.mrf.mxu0
    %4245 = vmatprep.mubr.f32.mxu0 0.0
    %4246 = vmatmul.mubr.f32.gmra.mxu0 %v984
    %v4247 = vpop.f32.mrf.mxu0
    %v4248 = vadd.f32 0.0, %v4247
    %v4249 = vpop.f32.mrf.mxu0
    %4250 = vmatprep.mubr.f32.mxu0 0.0
    %4251 = vmatmul.mubr.f32.gmra.mxu0 %v987
    %v4252 = vpop.f32.mrf.mxu0
    %v4253 = vadd.f32 0.0, %v4252
    %v4254 = vpop.f32.mrf.mxu0
    %4255 = vmatprep.mubr.f32.mxu0 0.0
    %4256 = vmatmul.mubr.f32.gmra.mxu0 %v990
    %v4257 = vpop.f32.mrf.mxu0
    %v4258 = vadd.f32 0.0, %v4257
    %v4259 = vpop.f32.mrf.mxu0
    %4260 = vmatprep.mubr.f32.mxu0 0.0
    %4261 = vmatmul.mubr.f32.gmra.mxu0 %v993
    %v4262 = vpop.f32.mrf.mxu0
    %v4263 = vadd.f32 0.0, %v4262
    %v4264 = vpop.f32.mrf.mxu0
    %4265 = vmatprep.mubr.f32.mxu0 0.0
    %4266 = vmatmul.mubr.f32.gmra.mxu0 %v996
    %v4267 = vpop.f32.mrf.mxu0
    %v4268 = vadd.f32 0.0, %v4267
    %v4269 = vpop.f32.mrf.mxu0
    %4270 = vmatprep.mubr.f32.mxu0 0.0
    %4271 = vmatmul.mubr.f32.gmra.mxu0 %v999
    %v4272 = vpop.f32.mrf.mxu0
    %v4273 = vadd.f32 0.0, %v4272
    %v4274 = vpop.f32.mrf.mxu0
    %4275 = vmatprep.mubr.f32.mxu0 0.0
    %4276 = vmatmul.mubr.f32.gmra.mxu0 %v1002
    %v4277 = vpop.f32.mrf.mxu0
    %v4278 = vadd.f32 0.0, %v4277
    %v4279 = vpop.f32.mrf.mxu0
    %4280 = vmatprep.mubr.f32.mxu0 0.0
    %4281 = vmatmul.mubr.f32.gmra.mxu0 %v1005
    %v4282 = vpop.f32.mrf.mxu0
    %v4283 = vadd.f32 0.0, %v4282
    %v4284 = vpop.f32.mrf.mxu0
    %4285 = vmatprep.mubr.f32.mxu0 0.0
    %4286 = vmatmul.mubr.f32.gmra.mxu0 %v1008
    %v4287 = vpop.f32.mrf.mxu0
    %v4288 = vadd.f32 0.0, %v4287
    %v4289 = vpop.f32.mrf.mxu0
    %4290 = vmatprep.mubr.f32.mxu0 0.0
    %4291 = vmatmul.mubr.f32.gmra.mxu0 %v1011
    %v4292 = vpop.f32.mrf.mxu0
    %v4293 = vadd.f32 0.0, %v4292
    %v4294 = vpop.f32.mrf.mxu0
    %4295 = vmatprep.mubr.f32.mxu0 0.0
    %4296 = vmatmul.mubr.f32.gmra.mxu0 %v1014
    %v4297 = vpop.f32.mrf.mxu0
    %v4298 = vadd.f32 0.0, %v4297
    %v4299 = vpop.f32.mrf.mxu0
    %4300 = vmatprep.mubr.f32.mxu0 0.0
    %4301 = vmatmul.mubr.f32.gmra.mxu0 %v1017
    %v4302 = vpop.f32.mrf.mxu0
    %v4303 = vadd.f32 0.0, %v4302
    %v4304 = vpop.f32.mrf.mxu0
    %4305 = vmatprep.mubr.f32.mxu0 0.0
    %4306 = vmatmul.mubr.f32.gmra.mxu0 %v1020
    %v4307 = vpop.f32.mrf.mxu0
    %v4308 = vadd.f32 0.0, %v4307
    %v4309 = vpop.f32.mrf.mxu0
    %4310 = vmatprep.mubr.f32.mxu0 0.0
    %4311 = vmatmul.mubr.f32.gmra.mxu0 %v1023
    %v4312 = vpop.f32.mrf.mxu0
    %v4313 = vadd.f32 0.0, %v4312
    %v4314 = vpop.f32.mrf.mxu0
    %4315 = vmatprep.mubr.f32.mxu0 0.0
    %4316 = vmatmul.mubr.f32.gmra.mxu0 %v1026
    %v4317 = vpop.f32.mrf.mxu0
    %v4318 = vadd.f32 0.0, %v4317
    %v4319 = vpop.f32.mrf.mxu0
    %4320 = vmatprep.mubr.f32.mxu0 0.0
    %4321 = vmatmul.mubr.f32.gmra.mxu0 %v1029
    %v4322 = vpop.f32.mrf.mxu0
    %v4323 = vadd.f32 0.0, %v4322
    %v4324 = vpop.f32.mrf.mxu0
    %4325 = vmatprep.mubr.f32.mxu0 0.0
    %4326 = vmatmul.mubr.f32.gmra.mxu0 %v1032
    %v4327 = vpop.f32.mrf.mxu0
    %v4328 = vadd.f32 0.0, %v4327
    %v4329 = vpop.f32.mrf.mxu0
    %4330 = vmatprep.mubr.f32.mxu0 0.0
    %4331 = vmatmul.mubr.f32.gmra.mxu0 %v1035
    %v4332 = vpop.f32.mrf.mxu0
    %v4333 = vadd.f32 0.0, %v4332
    %v4334 = vpop.f32.mrf.mxu0
    %4335 = vmatprep.mubr.f32.mxu0 0.0
    %4336 = vmatmul.mubr.f32.gmra.mxu0 %v1038
    %v4337 = vpop.f32.mrf.mxu0
    %v4338 = vadd.f32 0.0, %v4337
    %v4339 = vpop.f32.mrf.mxu0
    %4340 = vmatprep.mubr.f32.mxu0 0.0
    %4341 = vmatmul.mubr.f32.gmra.mxu0 %v1041
    %v4342 = vpop.f32.mrf.mxu0
    %v4343 = vadd.f32 0.0, %v4342
    %v4344 = vpop.f32.mrf.mxu0
    %4345 = vmatprep.mubr.f32.mxu0 0.0
    %4346 = vmatmul.mubr.f32.gmra.mxu0 %v1044
    %v4347 = vpop.f32.mrf.mxu0
    %v4348 = vadd.f32 0.0, %v4347
    %v4349 = vpop.f32.mrf.mxu0
    %4350 = vmatprep.mubr.f32.mxu0 0.0
    %4351 = vmatmul.mubr.f32.gmra.mxu0 %v1047
    %v4352 = vpop.f32.mrf.mxu0
    %v4353 = vadd.f32 0.0, %v4352
    %v4354 = vpop.f32.mrf.mxu0
    %4355 = vmatprep.mubr.f32.mxu0 0.0
    %4356 = vmatmul.mubr.f32.gmra.mxu0 %v1050
    %v4357 = vpop.f32.mrf.mxu0
    %v4358 = vadd.f32 0.0, %v4357
    %v4359 = vpop.f32.mrf.mxu0
    %4360 = vmatprep.mubr.f32.mxu0 0.0
    %4361 = vmatmul.mubr.f32.gmra.mxu0 %v1053
    %v4362 = vpop.f32.mrf.mxu0
    %v4363 = vadd.f32 0.0, %v4362
    %v4364 = vpop.f32.mrf.mxu0
    %4365 = vmatprep.mubr.f32.mxu0 0.0
    %4366 = vmatmul.mubr.f32.gmra.mxu0 %v1056
    %v4367 = vpop.f32.mrf.mxu0
    %v4368 = vadd.f32 0.0, %v4367
    %v4369 = vpop.f32.mrf.mxu0
    %4370 = vmatprep.mubr.f32.mxu0 0.0
    %4371 = vmatmul.mubr.f32.gmra.mxu0 %v1059
    %v4372 = vpop.f32.mrf.mxu0
    %v4373 = vadd.f32 0.0, %v4372
    %v4374 = vpop.f32.mrf.mxu0
    %4375 = vdwg.mxu0
    %v4376 = vadd.f32 %v4119, %v4218
    %v4377 = vadd.f32 %v4120, %v4223
    %v4378 = vadd.f32 %v4121, %v4228
    %v4379 = vadd.f32 %v4122, %v4233
    %v4380 = vadd.f32 %v4123, %v4238
    %v4381 = vadd.f32 %v4124, %v4243
    %v4382 = vadd.f32 %v4125, %v4248
    %v4383 = vadd.f32 %v4126, %v4253
    %v4384 = vadd.f32 %v4127, %v4258
    %v4385 = vadd.f32 %v4128, %v4263
    %v4386 = vadd.f32 %v4129, %v4268
    %v4387 = vadd.f32 %v4130, %v4273
    %v4388 = vadd.f32 %v4131, %v4278
    %v4389 = vadd.f32 %v4132, %v4283
    %v4390 = vadd.f32 %v4133, %v4288
    %v4391 = vadd.f32 %v4134, %v4293
    %v4392 = vadd.f32 %v4135, %v4298
    %v4393 = vadd.f32 %v4136, %v4303
    %v4394 = vadd.f32 %v4137, %v4308
    %v4395 = vadd.f32 %v4138, %v4313
    %v4396 = vadd.f32 %v4139, %v4318
    %v4397 = vadd.f32 %v4140, %v4323
    %v4398 = vadd.f32 %v4141, %v4328
    %v4399 = vadd.f32 %v4142, %v4333
    %v4400 = vadd.f32 %v4143, %v4338
    %v4401 = vadd.f32 %v4144, %v4343
    %v4402 = vadd.f32 %v4145, %v4348
    %v4403 = vadd.f32 %v4146, %v4353
    %v4404 = vadd.f32 %v4147, %v4358
    %v4405 = vadd.f32 %v4148, %v4363
    %v4406 = vadd.f32 %v4149, %v4368
    %v4407 = vadd.f32 %v4150, %v4373
    %v4408 = vtanh.pop %v4376
    %v4409 = vtanh.pop %v4377
    %v4410 = vtanh.pop %v4378
    %v4411 = vtanh.pop %v4379
    %v4412 = vtanh.pop %v4380
    %v4413 = vtanh.pop %v4381
    %v4414 = vtanh.pop %v4382
    %v4415 = vtanh.pop %v4383
    %v4416 = vtanh.pop %v4384
    %v4417 = vtanh.pop %v4385
    %v4418 = vtanh.pop %v4386
    %v4419 = vtanh.pop %v4387
    %v4420 = vtanh.pop %v4388
    %v4421 = vtanh.pop %v4389
    %v4422 = vtanh.pop %v4390
    %v4423 = vtanh.pop %v4391
    %v4424 = vtanh.pop %v4392
    %v4425 = vtanh.pop %v4393
    %v4426 = vtanh.pop %v4394
    %v4427 = vtanh.pop %v4395
    %v4428 = vtanh.pop %v4396
    %v4429 = vtanh.pop %v4397
    %v4430 = vtanh.pop %v4398
    %v4431 = vtanh.pop %v4399
    %v4432 = vtanh.pop %v4400
    %v4433 = vtanh.pop %v4401
    %v4434 = vtanh.pop %v4402
    %v4435 = vtanh.pop %v4403
    %v4436 = vtanh.pop %v4404
    %v4437 = vtanh.pop %v4405
    %v4438 = vtanh.pop %v4406
    %v4439 = vtanh.pop %v4407
    %v4440 = vmul.f32 %v4408, 0.5
    %v4441 = vmul.f32 %v4409, 0.5
    %v4442 = vmul.f32 %v4410, 0.5
    %v4443 = vmul.f32 %v4411, 0.5
    %v4444 = vmul.f32 %v4412, 0.5
    %v4445 = vmul.f32 %v4413, 0.5
    %v4446 = vmul.f32 %v4414, 0.5
    %v4447 = vmul.f32 %v4415, 0.5
    %v4448 = vadd.f32 %v4440, 0.5
    %v4449 = vadd.f32 %v4441, 0.5
    %v4450 = vadd.f32 %v4442, 0.5
    %v4451 = vadd.f32 %v4443, 0.5
    %v4452 = vadd.f32 %v4444, 0.5
    %v4453 = vadd.f32 %v4445, 0.5
    %v4454 = vadd.f32 %v4446, 0.5
    %v4455 = vadd.f32 %v4447, 0.5
    %v4456 = vmul.f32 %v4416, 0.5
    %v4457 = vmul.f32 %v4417, 0.5
    %v4458 = vmul.f32 %v4418, 0.5
    %v4459 = vmul.f32 %v4419, 0.5
    %v4460 = vmul.f32 %v4420, 0.5
    %v4461 = vmul.f32 %v4421, 0.5
    %v4462 = vmul.f32 %v4422, 0.5
    %v4463 = vmul.f32 %v4423, 0.5
    %v4464 = vadd.f32 %v4456, 0.5
    %v4465 = vadd.f32 %v4457, 0.5
    %v4466 = vadd.f32 %v4458, 0.5
    %v4467 = vadd.f32 %v4459, 0.5
    %v4468 = vadd.f32 %v4460, 0.5
    %v4469 = vadd.f32 %v4461, 0.5
    %v4470 = vadd.f32 %v4462, 0.5
    %v4471 = vadd.f32 %v4463, 0.5
    %v4472 = vmul.f32 %v4432, 0.5
    %v4473 = vmul.f32 %v4433, 0.5
    %v4474 = vmul.f32 %v4434, 0.5
    %v4475 = vmul.f32 %v4435, 0.5
    %v4476 = vmul.f32 %v4436, 0.5
    %v4477 = vmul.f32 %v4437, 0.5
    %v4478 = vmul.f32 %v4438, 0.5
    %v4479 = vmul.f32 %v4439, 0.5
    %v4480 = vadd.f32 %v4472, 0.5
    %v4481 = vadd.f32 %v4473, 0.5
    %v4482 = vadd.f32 %v4474, 0.5
    %v4483 = vadd.f32 %v4475, 0.5
    %v4484 = vadd.f32 %v4476, 0.5
    %v4485 = vadd.f32 %v4477, 0.5
    %v4486 = vadd.f32 %v4478, 0.5
    %v4487 = vadd.f32 %v4479, 0.5
    %v4488 = vmul.f32 %v4464, %v3989
    %v4489 = vmul.f32 %v4465, %v3990
    %v4490 = vmul.f32 %v4466, %v3991
    %v4491 = vmul.f32 %v4467, %v3992
    %v4492 = vmul.f32 %v4468, %v3993
    %v4493 = vmul.f32 %v4469, %v3994
    %v4494 = vmul.f32 %v4470, %v3995
    %v4495 = vmul.f32 %v4471, %v3996
    %v4496 = vmul.f32 %v4448, %v4424
    %v4497 = vmul.f32 %v4449, %v4425
    %v4498 = vmul.f32 %v4450, %v4426
    %v4499 = vmul.f32 %v4451, %v4427
    %v4500 = vmul.f32 %v4452, %v4428
    %v4501 = vmul.f32 %v4453, %v4429
    %v4502 = vmul.f32 %v4454, %v4430
    %v4503 = vmul.f32 %v4455, %v4431
    %v4504 = vadd.f32 %v4488, %v4496
    %v4505 = vadd.f32 %v4489, %v4497
    %v4506 = vadd.f32 %v4490, %v4498
    %v4507 = vadd.f32 %v4491, %v4499
    %v4508 = vadd.f32 %v4492, %v4500
    %v4509 = vadd.f32 %v4493, %v4501
    %v4510 = vadd.f32 %v4494, %v4502
    %v4511 = vadd.f32 %v4495, %v4503
    %v4512 = vtanh.pop %v4504
    %v4513 = vtanh.pop %v4505
    %v4514 = vtanh.pop %v4506
    %v4515 = vtanh.pop %v4507
    %v4516 = vtanh.pop %v4508
    %v4517 = vtanh.pop %v4509
    %v4518 = vtanh.pop %v4510
    %v4519 = vtanh.pop %v4511
    %v4520 = vmul.f32 %v4480, %v4512
    %v4521 = vmul.f32 %v4481, %v4513
    %v4522 = vmul.f32 %v4482, %v4514
    %v4523 = vmul.f32 %v4483, %v4515
    %v4524 = vmul.f32 %v4484, %v4516
    %v4525 = vmul.f32 %v4485, %v4517
    %v4526 = vmul.f32 %v4486, %v4518
    %v4527 = vmul.f32 %v4487, %v4519
    %s4528 = scalar_lea.vmem %s0, 14
    %v4529 = vld [vmem:[%s4528] sm:$0x3]
    %v4530 = vlaneseq
    %v4531 = vshrl.u32 %v4530, 7
    %v4532 = vsub.s32 0, %v4531
    %v4533 = vrot.slane %v4529, %v4532
    %v4534 = vmul.f32 %v383, %v4533
    %v4535 = vmul.f32 %v388, %v4533
    %v4536 = vmul.f32 %v393, %v4533
    %v4537 = vmul.f32 %v398, %v4533
    %v4538 = vmul.f32 %v403, %v4533
    %v4539 = vmul.f32 %v408, %v4533
    %v4540 = vmul.f32 %v413, %v4533
    %v4541 = vmul.f32 %v418, %v4533
    %v4542 = vmul.f32 %v423, %v4533
    %v4543 = vmul.f32 %v428, %v4533
    %v4544 = vmul.f32 %v433, %v4533
    %v4545 = vmul.f32 %v438, %v4533
    %v4546 = vmul.f32 %v443, %v4533
    %v4547 = vmul.f32 %v448, %v4533
    %v4548 = vmul.f32 %v453, %v4533
    %v4549 = vmul.f32 %v458, %v4533
    %v4550 = vmul.f32 %v463, %v4533
    %v4551 = vmul.f32 %v468, %v4533
    %v4552 = vmul.f32 %v473, %v4533
    %v4553 = vmul.f32 %v478, %v4533
    %v4554 = vmul.f32 %v483, %v4533
    %v4555 = vmul.f32 %v488, %v4533
    %v4556 = vmul.f32 %v493, %v4533
    %v4557 = vmul.f32 %v498, %v4533
    %v4558 = vmul.f32 %v503, %v4533
    %v4559 = vmul.f32 %v508, %v4533
    %v4560 = vmul.f32 %v513, %v4533
    %v4561 = vmul.f32 %v518, %v4533
    %v4562 = vmul.f32 %v523, %v4533
    %v4563 = vmul.f32 %v528, %v4533
    %v4564 = vmul.f32 %v533, %v4533
    %v4565 = vmul.f32 %v538, %v4533
    %v4566 = vadd.f32 %v579, %v4534
    %v4567 = vadd.f32 %v584, %v4535
    %v4568 = vadd.f32 %v589, %v4536
    %v4569 = vadd.f32 %v594, %v4537
    %v4570 = vadd.f32 %v599, %v4538
    %v4571 = vadd.f32 %v604, %v4539
    %v4572 = vadd.f32 %v609, %v4540
    %v4573 = vadd.f32 %v614, %v4541
    %v4574 = vadd.f32 %v619, %v4542
    %v4575 = vadd.f32 %v624, %v4543
    %v4576 = vadd.f32 %v629, %v4544
    %v4577 = vadd.f32 %v634, %v4545
    %v4578 = vadd.f32 %v639, %v4546
    %v4579 = vadd.f32 %v644, %v4547
    %v4580 = vadd.f32 %v649, %v4548
    %v4581 = vadd.f32 %v654, %v4549
    %v4582 = vadd.f32 %v659, %v4550
    %v4583 = vadd.f32 %v664, %v4551
    %v4584 = vadd.f32 %v669, %v4552
    %v4585 = vadd.f32 %v674, %v4553
    %v4586 = vadd.f32 %v679, %v4554
    %v4587 = vadd.f32 %v684, %v4555
    %v4588 = vadd.f32 %v689, %v4556
    %v4589 = vadd.f32 %v694, %v4557
    %v4590 = vadd.f32 %v699, %v4558
    %v4591 = vadd.f32 %v704, %v4559
    %v4592 = vadd.f32 %v709, %v4560
    %v4593 = vadd.f32 %v714, %v4561
    %v4594 = vadd.f32 %v719, %v4562
    %v4595 = vadd.f32 %v724, %v4563
    %v4596 = vadd.f32 %v729, %v4564
    %v4597 = vadd.f32 %v734, %v4565
    %v4598 = vlaneseq
    %v4599 = vshrl.u32 %v4598, 7
    %v4600 = vsub.s32 1, %v4599
    %v4601 = vrot.slane %v4529, %v4600
    %v4602 = vmul.f32 %v770, %v4601
    %v4603 = vmul.f32 %v774, %v4601
    %v4604 = vmul.f32 %v778, %v4601
    %v4605 = vmul.f32 %v782, %v4601
    %v4606 = vmul.f32 %v786, %v4601
    %v4607 = vmul.f32 %v790, %v4601
    %v4608 = vmul.f32 %v794, %v4601
    %v4609 = vmul.f32 %v798, %v4601
    %v4610 = vmul.f32 %v802, %v4601
    %v4611 = vmul.f32 %v806, %v4601
    %v4612 = vmul.f32 %v810, %v4601
    %v4613 = vmul.f32 %v814, %v4601
    %v4614 = vmul.f32 %v818, %v4601
    %v4615 = vmul.f32 %v822, %v4601
    %v4616 = vmul.f32 %v826, %v4601
    %v4617 = vmul.f32 %v830, %v4601
    %v4618 = vmul.f32 %v834, %v4601
    %v4619 = vmul.f32 %v838, %v4601
    %v4620 = vmul.f32 %v842, %v4601
    %v4621 = vmul.f32 %v846, %v4601
    %v4622 = vmul.f32 %v850, %v4601
    %v4623 = vmul.f32 %v854, %v4601
    %v4624 = vmul.f32 %v858, %v4601
    %v4625 = vmul.f32 %v862, %v4601
    %v4626 = vmul.f32 %v866, %v4601
    %v4627 = vmul.f32 %v870, %v4601
    %v4628 = vmul.f32 %v874, %v4601
    %v4629 = vmul.f32 %v878, %v4601
    %v4630 = vmul.f32 %v882, %v4601
    %v4631 = vmul.f32 %v886, %v4601
    %v4632 = vmul.f32 %v890, %v4601
    %v4633 = vmul.f32 %v894, %v4601
    %v4634 = vadd.f32 %v4566, %v4602
    %v4635 = vadd.f32 %v4567, %v4603
    %v4636 = vadd.f32 %v4568, %v4604
    %v4637 = vadd.f32 %v4569, %v4605
    %v4638 = vadd.f32 %v4570, %v4606
    %v4639 = vadd.f32 %v4571, %v4607
    %v4640 = vadd.f32 %v4572, %v4608
    %v4641 = vadd.f32 %v4573, %v4609
    %v4642 = vadd.f32 %v4574, %v4610
    %v4643 = vadd.f32 %v4575, %v4611
    %v4644 = vadd.f32 %v4576, %v4612
    %v4645 = vadd.f32 %v4577, %v4613
    %v4646 = vadd.f32 %v4578, %v4614
    %v4647 = vadd.f32 %v4579, %v4615
    %v4648 = vadd.f32 %v4580, %v4616
    %v4649 = vadd.f32 %v4581, %v4617
    %v4650 = vadd.f32 %v4582, %v4618
    %v4651 = vadd.f32 %v4583, %v4619
    %v4652 = vadd.f32 %v4584, %v4620
    %v4653 = vadd.f32 %v4585, %v4621
    %v4654 = vadd.f32 %v4586, %v4622
    %v4655 = vadd.f32 %v4587, %v4623
    %v4656 = vadd.f32 %v4588, %v4624
    %v4657 = vadd.f32 %v4589, %v4625
    %v4658 = vadd.f32 %v4590, %v4626
    %v4659 = vadd.f32 %v4591, %v4627
    %v4660 = vadd.f32 %v4592, %v4628
    %v4661 = vadd.f32 %v4593, %v4629
    %v4662 = vadd.f32 %v4594, %v4630
    %v4663 = vadd.f32 %v4595, %v4631
    %v4664 = vadd.f32 %v4596, %v4632
    %v4665 = vadd.f32 %v4597, %v4633
    %4666 = vmatprep.subr.mxu0 0.0
    %4667 = vmatpush1.msra.mxu0 0.0
    %4668 = vmatprep.subr.mxu0 0.0
    %4669 = vmatpush1.msra.mxu0 0.0
    %4670 = vmatprep.subr.mxu0 0.0
    %4671 = vmatpush1.msra.mxu0 0.0
    %4672 = vmatprep.subr.mxu0 0.0
    %4673 = vmatpush1.msra.mxu0 0.0
    %4674 = vmatprep.subr.mxu0 0.0
    %4675 = vmatpush1.msra.mxu0 0.0
    %4676 = vmatprep.subr.mxu0 0.0
    %4677 = vmatpush1.msra.mxu0 0.0
    %4678 = vmatprep.subr.mxu0 0.0
    %4679 = vmatpush1.msra.mxu0 0.0
    %4680 = vmatprep.subr.mxu0 0.0
    %4681 = vmatpush1.msra.mxu0 0.0
    %4682 = vmatprep.subr.mxu0 0.0
    %4683 = vmatpush1.msra.mxu0 %v4527
    %4684 = vmatprep.subr.mxu0 0.0
    %4685 = vmatpush1.msra.mxu0 %v4526
    %4686 = vmatprep.subr.mxu0 0.0
    %4687 = vmatpush1.msra.mxu0 %v4525
    %4688 = vmatprep.subr.mxu0 0.0
    %4689 = vmatpush1.msra.mxu0 %v4524
    %4690 = vmatprep.subr.mxu0 0.0
    %4691 = vmatpush1.msra.mxu0 %v4523
    %4692 = vmatprep.subr.mxu0 0.0
    %4693 = vmatpush1.msra.mxu0 %v4522
    %4694 = vmatprep.subr.mxu0 0.0
    %4695 = vmatpush1.msra.mxu0 %v4521
    %4696 = vmatprep.subr.mxu0 0.0
    %4697 = vmatpush1.msra.mxu0 %v4520
    %4698 = vmatprep.subr.mxu0 0.0
    %4699 = vmatpush2.msra.mxu0 0.0
    %4700 = vmatprep.subr.mxu0 0.0
    %4701 = vmatpush2.msra.mxu0 0.0
    %4702 = vmatprep.subr.mxu0 0.0
    %4703 = vmatpush2.msra.mxu0 0.0
    %4704 = vmatprep.subr.mxu0 0.0
    %4705 = vmatpush2.msra.mxu0 0.0
    %4706 = vmatprep.subr.mxu0 0.0
    %4707 = vmatpush2.msra.mxu0 0.0
    %4708 = vmatprep.subr.mxu0 0.0
    %4709 = vmatpush2.msra.mxu0 0.0
    %4710 = vmatprep.subr.mxu0 0.0
    %4711 = vmatpush2.msra.mxu0 0.0
    %4712 = vmatprep.subr.mxu0 0.0
    %4713 = vmatpush2.msra.mxu0 0.0
    %4714 = vmatprep.subr.mxu0 0.0
    %4715 = vmatpush2.msra.mxu0 0.0
    %4716 = vmatprep.subr.mxu0 0.0
    %4717 = vmatpush2.msra.mxu0 0.0
    %4718 = vmatprep.subr.mxu0 0.0
    %4719 = vmatpush2.msra.mxu0 0.0
    %4720 = vmatprep.subr.mxu0 0.0
    %4721 = vmatpush2.msra.mxu0 0.0
    %4722 = vmatprep.subr.mxu0 0.0
    %4723 = vmatpush2.msra.mxu0 0.0
    %4724 = vmatprep.subr.mxu0 0.0
    %4725 = vmatpush2.msra.mxu0 0.0
    %4726 = vmatprep.subr.mxu0 0.0
    %4727 = vmatpush2.msra.mxu0 0.0
    %4728 = vmatprep.subr.mxu0 0.0
    %4729 = vmatpush2.msra.mxu0 0.0
    %4730 = vmatprep.mubr.f32.mxu0 0.0
    %4731 = vmatmul.mubr.f32.gmra.mxu0 %v966
    %v4732 = vpop.f32.mrf.mxu0
    %v4733 = vadd.f32 0.0, %v4732
    %v4734 = vpop.f32.mrf.mxu0
    %4735 = vmatprep.mubr.f32.mxu0 0.0
    %4736 = vmatmul.mubr.f32.gmra.mxu0 %v969
    %v4737 = vpop.f32.mrf.mxu0
    %v4738 = vadd.f32 0.0, %v4737
    %v4739 = vpop.f32.mrf.mxu0
    %4740 = vmatprep.mubr.f32.mxu0 0.0
    %4741 = vmatmul.mubr.f32.gmra.mxu0 %v972
    %v4742 = vpop.f32.mrf.mxu0
    %v4743 = vadd.f32 0.0, %v4742
    %v4744 = vpop.f32.mrf.mxu0
    %4745 = vmatprep.mubr.f32.mxu0 0.0
    %4746 = vmatmul.mubr.f32.gmra.mxu0 %v975
    %v4747 = vpop.f32.mrf.mxu0
    %v4748 = vadd.f32 0.0, %v4747
    %v4749 = vpop.f32.mrf.mxu0
    %4750 = vmatprep.mubr.f32.mxu0 0.0
    %4751 = vmatmul.mubr.f32.gmra.mxu0 %v978
    %v4752 = vpop.f32.mrf.mxu0
    %v4753 = vadd.f32 0.0, %v4752
    %v4754 = vpop.f32.mrf.mxu0
    %4755 = vmatprep.mubr.f32.mxu0 0.0
    %4756 = vmatmul.mubr.f32.gmra.mxu0 %v981
    %v4757 = vpop.f32.mrf.mxu0
    %v4758 = vadd.f32 0.0, %v4757
    %v4759 = vpop.f32.mrf.mxu0
    %4760 = vmatprep.mubr.f32.mxu0 0.0
    %4761 = vmatmul.mubr.f32.gmra.mxu0 %v984
    %v4762 = vpop.f32.mrf.mxu0
    %v4763 = vadd.f32 0.0, %v4762
    %v4764 = vpop.f32.mrf.mxu0
    %4765 = vmatprep.mubr.f32.mxu0 0.0
    %4766 = vmatmul.mubr.f32.gmra.mxu0 %v987
    %v4767 = vpop.f32.mrf.mxu0
    %v4768 = vadd.f32 0.0, %v4767
    %v4769 = vpop.f32.mrf.mxu0
    %4770 = vmatprep.mubr.f32.mxu0 0.0
    %4771 = vmatmul.mubr.f32.gmra.mxu0 %v990
    %v4772 = vpop.f32.mrf.mxu0
    %v4773 = vadd.f32 0.0, %v4772
    %v4774 = vpop.f32.mrf.mxu0
    %4775 = vmatprep.mubr.f32.mxu0 0.0
    %4776 = vmatmul.mubr.f32.gmra.mxu0 %v993
    %v4777 = vpop.f32.mrf.mxu0
    %v4778 = vadd.f32 0.0, %v4777
    %v4779 = vpop.f32.mrf.mxu0
    %4780 = vmatprep.mubr.f32.mxu0 0.0
    %4781 = vmatmul.mubr.f32.gmra.mxu0 %v996
    %v4782 = vpop.f32.mrf.mxu0
    %v4783 = vadd.f32 0.0, %v4782
    %v4784 = vpop.f32.mrf.mxu0
    %4785 = vmatprep.mubr.f32.mxu0 0.0
    %4786 = vmatmul.mubr.f32.gmra.mxu0 %v999
    %v4787 = vpop.f32.mrf.mxu0
    %v4788 = vadd.f32 0.0, %v4787
    %v4789 = vpop.f32.mrf.mxu0
    %4790 = vmatprep.mubr.f32.mxu0 0.0
    %4791 = vmatmul.mubr.f32.gmra.mxu0 %v1002
    %v4792 = vpop.f32.mrf.mxu0
    %v4793 = vadd.f32 0.0, %v4792
    %v4794 = vpop.f32.mrf.mxu0
    %4795 = vmatprep.mubr.f32.mxu0 0.0
    %4796 = vmatmul.mubr.f32.gmra.mxu0 %v1005
    %v4797 = vpop.f32.mrf.mxu0
    %v4798 = vadd.f32 0.0, %v4797
    %v4799 = vpop.f32.mrf.mxu0
    %4800 = vmatprep.mubr.f32.mxu0 0.0
    %4801 = vmatmul.mubr.f32.gmra.mxu0 %v1008
    %v4802 = vpop.f32.mrf.mxu0
    %v4803 = vadd.f32 0.0, %v4802
    %v4804 = vpop.f32.mrf.mxu0
    %4805 = vmatprep.mubr.f32.mxu0 0.0
    %4806 = vmatmul.mubr.f32.gmra.mxu0 %v1011
    %v4807 = vpop.f32.mrf.mxu0
    %v4808 = vadd.f32 0.0, %v4807
    %v4809 = vpop.f32.mrf.mxu0
    %4810 = vmatprep.mubr.f32.mxu0 0.0
    %4811 = vmatmul.mubr.f32.gmra.mxu0 %v1014
    %v4812 = vpop.f32.mrf.mxu0
    %v4813 = vadd.f32 0.0, %v4812
    %v4814 = vpop.f32.mrf.mxu0
    %4815 = vmatprep.mubr.f32.mxu0 0.0
    %4816 = vmatmul.mubr.f32.gmra.mxu0 %v1017
    %v4817 = vpop.f32.mrf.mxu0
    %v4818 = vadd.f32 0.0, %v4817
    %v4819 = vpop.f32.mrf.mxu0
    %4820 = vmatprep.mubr.f32.mxu0 0.0
    %4821 = vmatmul.mubr.f32.gmra.mxu0 %v1020
    %v4822 = vpop.f32.mrf.mxu0
    %v4823 = vadd.f32 0.0, %v4822
    %v4824 = vpop.f32.mrf.mxu0
    %4825 = vmatprep.mubr.f32.mxu0 0.0
    %4826 = vmatmul.mubr.f32.gmra.mxu0 %v1023
    %v4827 = vpop.f32.mrf.mxu0
    %v4828 = vadd.f32 0.0, %v4827
    %v4829 = vpop.f32.mrf.mxu0
    %4830 = vmatprep.mubr.f32.mxu0 0.0
    %4831 = vmatmul.mubr.f32.gmra.mxu0 %v1026
    %v4832 = vpop.f32.mrf.mxu0
    %v4833 = vadd.f32 0.0, %v4832
    %v4834 = vpop.f32.mrf.mxu0
    %4835 = vmatprep.mubr.f32.mxu0 0.0
    %4836 = vmatmul.mubr.f32.gmra.mxu0 %v1029
    %v4837 = vpop.f32.mrf.mxu0
    %v4838 = vadd.f32 0.0, %v4837
    %v4839 = vpop.f32.mrf.mxu0
    %4840 = vmatprep.mubr.f32.mxu0 0.0
    %4841 = vmatmul.mubr.f32.gmra.mxu0 %v1032
    %v4842 = vpop.f32.mrf.mxu0
    %v4843 = vadd.f32 0.0, %v4842
    %v4844 = vpop.f32.mrf.mxu0
    %4845 = vmatprep.mubr.f32.mxu0 0.0
    %4846 = vmatmul.mubr.f32.gmra.mxu0 %v1035
    %v4847 = vpop.f32.mrf.mxu0
    %v4848 = vadd.f32 0.0, %v4847
    %v4849 = vpop.f32.mrf.mxu0
    %4850 = vmatprep.mubr.f32.mxu0 0.0
    %4851 = vmatmul.mubr.f32.gmra.mxu0 %v1038
    %v4852 = vpop.f32.mrf.mxu0
    %v4853 = vadd.f32 0.0, %v4852
    %v4854 = vpop.f32.mrf.mxu0
    %4855 = vmatprep.mubr.f32.mxu0 0.0
    %4856 = vmatmul.mubr.f32.gmra.mxu0 %v1041
    %v4857 = vpop.f32.mrf.mxu0
    %v4858 = vadd.f32 0.0, %v4857
    %v4859 = vpop.f32.mrf.mxu0
    %4860 = vmatprep.mubr.f32.mxu0 0.0
    %4861 = vmatmul.mubr.f32.gmra.mxu0 %v1044
    %v4862 = vpop.f32.mrf.mxu0
    %v4863 = vadd.f32 0.0, %v4862
    %v4864 = vpop.f32.mrf.mxu0
    %4865 = vmatprep.mubr.f32.mxu0 0.0
    %4866 = vmatmul.mubr.f32.gmra.mxu0 %v1047
    %v4867 = vpop.f32.mrf.mxu0
    %v4868 = vadd.f32 0.0, %v4867
    %v4869 = vpop.f32.mrf.mxu0
    %4870 = vmatprep.mubr.f32.mxu0 0.0
    %4871 = vmatmul.mubr.f32.gmra.mxu0 %v1050
    %v4872 = vpop.f32.mrf.mxu0
    %v4873 = vadd.f32 0.0, %v4872
    %v4874 = vpop.f32.mrf.mxu0
    %4875 = vmatprep.mubr.f32.mxu0 0.0
    %4876 = vmatmul.mubr.f32.gmra.mxu0 %v1053
    %v4877 = vpop.f32.mrf.mxu0
    %v4878 = vadd.f32 0.0, %v4877
    %v4879 = vpop.f32.mrf.mxu0
    %4880 = vmatprep.mubr.f32.mxu0 0.0
    %4881 = vmatmul.mubr.f32.gmra.mxu0 %v1056
    %v4882 = vpop.f32.mrf.mxu0
    %v4883 = vadd.f32 0.0, %v4882
    %v4884 = vpop.f32.mrf.mxu0
    %4885 = vmatprep.mubr.f32.mxu0 0.0
    %4886 = vmatmul.mubr.f32.gmra.mxu0 %v1059
    %v4887 = vpop.f32.mrf.mxu0
    %v4888 = vadd.f32 0.0, %v4887
    %v4889 = vpop.f32.mrf.mxu0
    %4890 = vdwg.mxu0
    %v4891 = vadd.f32 %v4634, %v4733
    %v4892 = vadd.f32 %v4635, %v4738
    %v4893 = vadd.f32 %v4636, %v4743
    %v4894 = vadd.f32 %v4637, %v4748
    %v4895 = vadd.f32 %v4638, %v4753
    %v4896 = vadd.f32 %v4639, %v4758
    %v4897 = vadd.f32 %v4640, %v4763
    %v4898 = vadd.f32 %v4641, %v4768
    %v4899 = vadd.f32 %v4642, %v4773
    %v4900 = vadd.f32 %v4643, %v4778
    %v4901 = vadd.f32 %v4644, %v4783
    %v4902 = vadd.f32 %v4645, %v4788
    %v4903 = vadd.f32 %v4646, %v4793
    %v4904 = vadd.f32 %v4647, %v4798
    %v4905 = vadd.f32 %v4648, %v4803
    %v4906 = vadd.f32 %v4649, %v4808
    %v4907 = vadd.f32 %v4650, %v4813
    %v4908 = vadd.f32 %v4651, %v4818
    %v4909 = vadd.f32 %v4652, %v4823
    %v4910 = vadd.f32 %v4653, %v4828
    %v4911 = vadd.f32 %v4654, %v4833
    %v4912 = vadd.f32 %v4655, %v4838
    %v4913 = vadd.f32 %v4656, %v4843
    %v4914 = vadd.f32 %v4657, %v4848
    %v4915 = vadd.f32 %v4658, %v4853
    %v4916 = vadd.f32 %v4659, %v4858
    %v4917 = vadd.f32 %v4660, %v4863
    %v4918 = vadd.f32 %v4661, %v4868
    %v4919 = vadd.f32 %v4662, %v4873
    %v4920 = vadd.f32 %v4663, %v4878
    %v4921 = vadd.f32 %v4664, %v4883
    %v4922 = vadd.f32 %v4665, %v4888
    %v4923 = vtanh.pop %v4891
    %v4924 = vtanh.pop %v4892
    %v4925 = vtanh.pop %v4893
    %v4926 = vtanh.pop %v4894
    %v4927 = vtanh.pop %v4895
    %v4928 = vtanh.pop %v4896
    %v4929 = vtanh.pop %v4897
    %v4930 = vtanh.pop %v4898
    %v4931 = vtanh.pop %v4899
    %v4932 = vtanh.pop %v4900
    %v4933 = vtanh.pop %v4901
    %v4934 = vtanh.pop %v4902
    %v4935 = vtanh.pop %v4903
    %v4936 = vtanh.pop %v4904
    %v4937 = vtanh.pop %v4905
    %v4938 = vtanh.pop %v4906
    %v4939 = vtanh.pop %v4907
    %v4940 = vtanh.pop %v4908
    %v4941 = vtanh.pop %v4909
    %v4942 = vtanh.pop %v4910
    %v4943 = vtanh.pop %v4911
    %v4944 = vtanh.pop %v4912
    %v4945 = vtanh.pop %v4913
    %v4946 = vtanh.pop %v4914
    %v4947 = vtanh.pop %v4915
    %v4948 = vtanh.pop %v4916
    %v4949 = vtanh.pop %v4917
    %v4950 = vtanh.pop %v4918
    %v4951 = vtanh.pop %v4919
    %v4952 = vtanh.pop %v4920
    %v4953 = vtanh.pop %v4921
    %v4954 = vtanh.pop %v4922
    %v4955 = vmul.f32 %v4923, 0.5
    %v4956 = vmul.f32 %v4924, 0.5
    %v4957 = vmul.f32 %v4925, 0.5
    %v4958 = vmul.f32 %v4926, 0.5
    %v4959 = vmul.f32 %v4927, 0.5
    %v4960 = vmul.f32 %v4928, 0.5
    %v4961 = vmul.f32 %v4929, 0.5
    %v4962 = vmul.f32 %v4930, 0.5
    %v4963 = vadd.f32 %v4955, 0.5
    %v4964 = vadd.f32 %v4956, 0.5
    %v4965 = vadd.f32 %v4957, 0.5
    %v4966 = vadd.f32 %v4958, 0.5
    %v4967 = vadd.f32 %v4959, 0.5
    %v4968 = vadd.f32 %v4960, 0.5
    %v4969 = vadd.f32 %v4961, 0.5
    %v4970 = vadd.f32 %v4962, 0.5
    %v4971 = vmul.f32 %v4931, 0.5
    %v4972 = vmul.f32 %v4932, 0.5
    %v4973 = vmul.f32 %v4933, 0.5
    %v4974 = vmul.f32 %v4934, 0.5
    %v4975 = vmul.f32 %v4935, 0.5
    %v4976 = vmul.f32 %v4936, 0.5
    %v4977 = vmul.f32 %v4937, 0.5
    %v4978 = vmul.f32 %v4938, 0.5
    %v4979 = vadd.f32 %v4971, 0.5
    %v4980 = vadd.f32 %v4972, 0.5
    %v4981 = vadd.f32 %v4973, 0.5
    %v4982 = vadd.f32 %v4974, 0.5
    %v4983 = vadd.f32 %v4975, 0.5
    %v4984 = vadd.f32 %v4976, 0.5
    %v4985 = vadd.f32 %v4977, 0.5
    %v4986 = vadd.f32 %v4978, 0.5
    %v4987 = vmul.f32 %v4947, 0.5
    %v4988 = vmul.f32 %v4948, 0.5
    %v4989 = vmul.f32 %v4949, 0.5
    %v4990 = vmul.f32 %v4950, 0.5
    %v4991 = vmul.f32 %v4951, 0.5
    %v4992 = vmul.f32 %v4952, 0.5
    %v4993 = vmul.f32 %v4953, 0.5
    %v4994 = vmul.f32 %v4954, 0.5
    %v4995 = vadd.f32 %v4987, 0.5
    %v4996 = vadd.f32 %v4988, 0.5
    %v4997 = vadd.f32 %v4989, 0.5
    %v4998 = vadd.f32 %v4990, 0.5
    %v4999 = vadd.f32 %v4991, 0.5
    %v5000 = vadd.f32 %v4992, 0.5
    %v5001 = vadd.f32 %v4993, 0.5
    %v5002 = vadd.f32 %v4994, 0.5
    %v5003 = vmul.f32 %v4979, %v4504
    %v5004 = vmul.f32 %v4980, %v4505
    %v5005 = vmul.f32 %v4981, %v4506
    %v5006 = vmul.f32 %v4982, %v4507
    %v5007 = vmul.f32 %v4983, %v4508
    %v5008 = vmul.f32 %v4984, %v4509
    %v5009 = vmul.f32 %v4985, %v4510
    %v5010 = vmul.f32 %v4986, %v4511
    %v5011 = vmul.f32 %v4963, %v4939
    %v5012 = vmul.f32 %v4964, %v4940
    %v5013 = vmul.f32 %v4965, %v4941
    %v5014 = vmul.f32 %v4966, %v4942
    %v5015 = vmul.f32 %v4967, %v4943
    %v5016 = vmul.f32 %v4968, %v4944
    %v5017 = vmul.f32 %v4969, %v4945
    %v5018 = vmul.f32 %v4970, %v4946
    %v5019 = vadd.f32 %v5003, %v5011
    %v5020 = vadd.f32 %v5004, %v5012
    %v5021 = vadd.f32 %v5005, %v5013
    %v5022 = vadd.f32 %v5006, %v5014
    %v5023 = vadd.f32 %v5007, %v5015
    %v5024 = vadd.f32 %v5008, %v5016
    %v5025 = vadd.f32 %v5009, %v5017
    %v5026 = vadd.f32 %v5010, %v5018
    %v5027 = vtanh.pop %v5019
    %v5028 = vtanh.pop %v5020
    %v5029 = vtanh.pop %v5021
    %v5030 = vtanh.pop %v5022
    %v5031 = vtanh.pop %v5023
    %v5032 = vtanh.pop %v5024
    %v5033 = vtanh.pop %v5025
    %v5034 = vtanh.pop %v5026
    %v5035 = vmul.f32 %v4995, %v5027
    %v5036 = vmul.f32 %v4996, %v5028
    %v5037 = vmul.f32 %v4997, %v5029
    %v5038 = vmul.f32 %v4998, %v5030
    %v5039 = vmul.f32 %v4999, %v5031
    %v5040 = vmul.f32 %v5000, %v5032
    %v5041 = vmul.f32 %v5001, %v5033
    %v5042 = vmul.f32 %v5002, %v5034
    %v5043 = vld [vmem:[%s4] sm:$0xff]
    %v5044 = vld [vmem:[%s4 + $0x8] sm:$0xff]
    %v5045 = vld [vmem:[%s4 + $0x10] sm:$0xff]
    %v5046 = vld [vmem:[%s4 + $0x18] sm:$0xff]
    %v5047 = vld [vmem:[%s4 + $0x20] sm:$0xff]
    %v5048 = vld [vmem:[%s4 + $0x28] sm:$0xff]
    %v5049 = vld [vmem:[%s4 + $0x30] sm:$0xff]
    %v5050 = vld [vmem:[%s4 + $0x38] sm:$0xff]
    %5052 = vset.pattern.permute.xlu0 0
    %5053 = vperm.xlu0 %5052, %v5043
    %v5054 = vpop.permute.xlu0 %5053
    %5057 = vset.pattern.permute.xlu0 0
    %5058 = vperm.xlu0 %5057, %v5044
    %v5059 = vpop.permute.xlu0 %5058
    %5062 = vset.pattern.permute.xlu0 0
    %5063 = vperm.xlu0 %5062, %v5045
    %v5064 = vpop.permute.xlu0 %5063
    %5067 = vset.pattern.permute.xlu0 0
    %5068 = vperm.xlu0 %5067, %v5046
    %v5069 = vpop.permute.xlu0 %5068
    %5072 = vset.pattern.permute.xlu0 0
    %5073 = vperm.xlu0 %5072, %v5047
    %v5074 = vpop.permute.xlu0 %5073
    %5077 = vset.pattern.permute.xlu0 0
    %5078 = vperm.xlu0 %5077, %v5048
    %v5079 = vpop.permute.xlu0 %5078
    %5082 = vset.pattern.permute.xlu0 0
    %5083 = vperm.xlu0 %5082, %v5049
    %v5084 = vpop.permute.xlu0 %5083
    %5087 = vset.pattern.permute.xlu0 0
    %5088 = vperm.xlu0 %5087, %v5050
    %v5089 = vpop.permute.xlu0 %5088
    %v5091 = vmul.f32 %v5035, %v5054
    %v5092 = vmul.f32 %v5036, %v5059
    %v5093 = vmul.f32 %v5037, %v5064
    %v5094 = vmul.f32 %v5038, %v5069
    %v5095 = vmul.f32 %v5039, %v5074
    %v5096 = vmul.f32 %v5040, %v5079
    %v5097 = vmul.f32 %v5041, %v5084
    %v5098 = vmul.f32 %v5042, %v5089
    %vm5099 = vcmask 15360
    %v5100 = vsel %vm5099, %v5091, 0.0
    %v5101 = vsel %vm5099, %v5092, 0.0
    %v5102 = vadd.f32 %v5100, %v5101
    %v5103 = vsel %vm5099, %v5093, 0.0
    %v5104 = vadd.f32 %v5102, %v5103
    %v5105 = vsel %vm5099, %v5094, 0.0
    %v5106 = vadd.f32 %v5104, %v5105
    %v5107 = vsel %vm5099, %v5095, 0.0
    %v5108 = vadd.f32 %v5106, %v5107
    %v5109 = vsel %vm5099, %v5096, 0.0
    %v5110 = vadd.f32 %v5108, %v5109
    %v5111 = vsel %vm5099, %v5097, 0.0
    %v5112 = vadd.f32 %v5110, %v5111
    %v5113 = vsel %vm5099, %v5098, 0.0
    %v5114 = vadd.f32 %v5112, %v5113
    %v5115 = vrot.slane %v5114, 4
    %v5116 = vadd.f32 %v5114, %v5115
    %v5117 = vrot.slane %v5116, 2
    %v5118 = vadd.f32 %v5116, %v5117
    %v5119 = vrot.slane %v5118, 1
    %v5120 = vadd.f32 %v5118, %v5119
    %v5121 = vld [vmem:[#allocation2] sm:$0x1]
    %5123 = vset.pattern.permute.xlu0 0
    %5124 = vperm.xlu0 %5123, %v5121
    %v5125 = vpop.permute.xlu0 %5124
    %v5127 = vlaneseq
    %v5128 = vshrl.u32 %v5127, 7
    %v5129 = vsub.s32 0, %v5128
    %v5130 = vrot.slane %v5125, %v5129
    %v5131 = vadd.f32 %v5120, %v5130
    %v5132 = vxor.u32 %v5131, 2147483648
    %v5133 = vmul.f32 %v5132, 1.442695
    %v5134 = vpow.pop %v5133
    %v5135 = vadd.f32 %v5134, 1.0
    %v5136 = vrcp.pop %v5135
    %v5137 = vmul.f32 1.0, %v5136
    %vm5138 = vcmask 8192
    %5139 = vst.msk [vmem:[#allocation3] sm:$0x1] %vm5138, %v5137
    // Predicated region
    $region26: #{tpu_custom_call.1} parent=1 // pred_check
      _
    $region27: #{tpu_custom_call.1} parent=1 // pred_check_branch
      %5141 = sbr.rel (0) target = $region29
    $region28: #{tpu_custom_call.1} parent=1 // pred_region
      %s5143 = ssub.s32 16, 16
      %5144 = vsyncadd [#allocation4], %s5143
      %s5146 = sshll.u32 [#allocation3], 4
      %s5147 = int_to_ptr.vmem [resolvable:$true] %s5146
      %5149 = dma.vmem_to_hbm [thread:$0]  %s5147, 16, %s6, [#allocation4]
    $region29: #{tpu_custom_call.1} parent=1 // pred_fallthru
      _
    // Predicated region
    $region30: #{tpu_custom_call.1} parent=1 // pred_check
      _
    $region31: #{tpu_custom_call.1} parent=1 // pred_check_branch
      %5151 = sbr.rel (0) target = $region33
    $region32: #{tpu_custom_call.1} parent=1 // pred_region
      %5152 = dma.done [#allocation4], 16
    $region33: #{tpu_custom_call.1} parent=1 // pred_fallthru
      _
    %5153 = vsyncpa [#allocation4], 1

</llo_original>
